<compile_context>
chip_gen: v5e
topology: v5e:2x2
jax: 0.10.0
libtpu: 0.0.40
codegen_flags: <defaults>
</compile_context>

<pallas_src>
import numpy as np

import jax
import jax.numpy as jnp
from jax.experimental import pallas as pl
from jax.experimental.pallas import tpu as pltpu


# --------------------------- architecture constants --------------------------
# fc1: (latent+cond) -> 64 ; fc2: 64 -> 16*4*4
# deconv1: ConvTranspose2d(16, 8, 5, stride=2) : (16, 4, 4) -> (8, 11, 11), ReLU
# deconv2: ConvTranspose2d(8, 1, 5, stride=2)  : (8, 11,11) -> (1, 25, 25), ReLU
# deconv3: ConvTranspose2d(1, 1, 4, stride=1)  : (1, 25,25) -> (1, 28, 28), Sigmoid
_H1, _H2, _H3, _HO = 4, 11, 25, 28


# ------------------------------ Pallas kernel --------------------------------

def _decoder_kernel(lat_ref, cond_ref,
                    w1a_ref, w1b_ref, b1_ref, w2_ref, b2_ref,
                    d1_ref, c1_ref, d2_ref, c2_ref, d3_ref, c3_ref,
                    o_ref):
    f32 = jnp.float32
    # fc1 (the concat is fused as two partial matmuls) + ReLU
    h = (jnp.dot(lat_ref[...], w1a_ref[...], preferred_element_type=f32)
         + jnp.dot(cond_ref[...], w1b_ref[...], preferred_element_type=f32)
         + b1_ref[...])
    h = jnp.maximum(h, 0.0)
    # fc2 + ReLU  -> (B, 256) == flattened (16, 4, 4)
    h = jnp.dot(h, w2_ref[...], preferred_element_type=f32) + b2_ref[...]
    h = jnp.maximum(h, 0.0)
    # ConvTranspose2d(16, 8, 5, stride=2) + ReLU, as dense matmul -> (B, 8*11*11)
    h = jnp.dot(h, d1_ref[...], preferred_element_type=f32) + c1_ref[...]
    h = jnp.maximum(h, 0.0)
    # ConvTranspose2d(8, 1, 5, stride=2) + ReLU -> (B, 25*25)
    h = jnp.dot(h, d2_ref[...], preferred_element_type=f32) + c2_ref[...]
    h = jnp.maximum(h, 0.0)
    # ConvTranspose2d(1, 1, 4, stride=1) + Sigmoid -> (B, 28*28)
    h = jnp.dot(h, d3_ref[...], preferred_element_type=f32) + c3_ref[...]
    o_ref[...] = jax.nn.sigmoid(h)


def _batch_block(batch):
    # Whole batch in one step unless it can be split into sublane-aligned
    # (multiple-of-8) blocks -> >=2 "parallel" grid steps so both v7x
    # TensorCores get work (harmless on single-TC v5e / v6e).
    if batch >= 16 and batch % 16 == 0:
        return batch // 2
    return batch


def _decoder_pallas(lat, cond, prep):
    batch, ld = lat.shape
    _, cd = cond.shape
    out_dim = prep["d3"].shape[1]        # 28 * 28 = 784
    bb = _batch_block(batch)
    grid = (pl.cdiv(batch, bb),)

    weight_names = ("w1_lat", "w1_cond", "b1", "w2", "b2",
                    "d1", "c1", "d2", "c2", "d3", "c3")
    weights = [prep[name] for name in weight_names]

    def full_spec(arr):
        return pl.BlockSpec(arr.shape, lambda i: (0,) * arr.ndim)

    in_specs = ([pl.BlockSpec((bb, ld), lambda i: (i, 0)),
                 pl.BlockSpec((bb, cd), lambda i: (i, 0))]
                + [full_spec(w) for w in weights])

    return pl.pallas_call(
        _decoder_kernel,
        grid=grid,
        in_specs=in_specs,
        out_specs=pl.BlockSpec((bb, out_dim), lambda i: (i, 0)),
        out_shape=jax.ShapeDtypeStruct((batch, out_dim), jnp.float32),
        compiler_params=pltpu.CompilerParams(
            dimension_semantics=("parallel",),
            vmem_limit_bytes=32 * 1024 * 1024,
        ),
    )(lat, cond, *weights)


def conv_conditional_decoder(latent_vector, condition, prep):
    """Forward pass, semantics identical to the PyTorch module."""
    batch = latent_vector.shape[0]
    out = _decoder_pallas(latent_vector.astype(jnp.float32),
                          condition.astype(jnp.float32), prep)
    return out.reshape(batch, 1, _HO, _HO)


# --------------------- one-time (init) weight preparation ---------------------

def _dense_from_convtranspose(w, hin, win, stride):
    """PyTorch ConvTranspose2d weight (C_in, C_out, K, K), padding=0, as a dense
    matrix mapping flat (C_in*Hin*Win) -> flat (C_out*Hout*Wout)."""
    w = np.asarray(w, dtype=np.float32)
    c_in, c_out, k, _ = w.shape
    hout, wout = (hin - 1) * stride + k, (win - 1) * stride + k
    d = np.zeros((c_in, hin, win, c_out, hout, wout), np.float32)
    for i in range(hin):
        for j in range(win):
            # out[co, i*s+ky, j*s+kx] += x[ci, i, j] * w[ci, co, ky, kx]
            d[:, i, j, :, i * stride:i * stride + k, j * stride:j * stride + k] += w
    return d.reshape(c_in * hin * win, c_out * hout * wout)


def _flat_bias(b, hout, wout):
    b = np.asarray(b, np.float32).reshape(-1)
    return np.repeat(b, hout * wout).reshape(1, -1)


def prepare_params(params, latent_dim):
    """Hoisted weight prep: dense deconv operators + lane-dense biases."""
    w1 = np.asarray(params["w1"], np.float32)
    prep = {
        "w1_lat": jnp.asarray(w1[:latent_dim]),
        "w1_cond": jnp.asarray(w1[latent_dim:]),
        "b1": jnp.asarray(np.asarray(params["b1"], np.float32).reshape(1, -1)),
        "w2": jnp.asarray(params["w2"], jnp.float32),
        "b2": jnp.asarray(np.asarray(params["b2"], np.float32).reshape(1, -1)),
        "d1": jnp.asarray(_dense_from_convtranspose(params["dw1"], _H1, _H1, 2)),
        "c1": jnp.asarray(_flat_bias(params["db1"], _H2, _H2)),
        "d2": jnp.asarray(_dense_from_convtranspose(params["dw2"], _H2, _H2, 2)),
        "c2": jnp.asarray(_flat_bias(params["db2"], _H3, _H3)),
        "d3": jnp.asarray(_dense_from_convtranspose(params["dw3"], _H3, _H3, 1)),
        "c3": jnp.asarray(_flat_bias(params["db3"], _HO, _HO)),
    }
    return prep


def init_params(key, latent_dim, condition_vector_size=4):
    ks = jax.random.split(key, 10)

    def lin(k, fan_in, fan_out):
        return jax.random.normal(k, (fan_in, fan_out), jnp.float32) / jnp.sqrt(fan_in)

    def convt(k, c_in, c_out, ksz):
        return jax.random.normal(k, (c_in, c_out, ksz, ksz), jnp.float32) * 0.1

    d_in = latent_dim + condition_vector_size
    return {
        "w1": lin(ks[0], d_in, 64),
        "b1": jax.random.normal(ks[1], (64,), jnp.float32) * 0.01,
        "w2": lin(ks[2], 64, 16 * _H1 * _H1),
        "b2": jax.random.normal(ks[3], (16 * _H1 * _H1,), jnp.float32) * 0.01,
        "dw1": convt(ks[4], 16, 8, 5),
        "db1": jax.random.normal(ks[5], (8,), jnp.float32) * 0.01,
        "dw2": convt(ks[6], 8, 1, 5),
        "db2": jax.random.normal(ks[7], (1,), jnp.float32) * 0.01,
        "dw3": convt(ks[8], 1, 1, 4),
        "db3": jax.random.normal(ks[9], (1,), jnp.float32) * 0.01,
    }


# ------------------------ numpy reference (for checking) ----------------------

def _np_convtranspose(x, w, b, stride):
    x = np.asarray(x, np.float64)
    w = np.asarray(w, np.float64)
    b = np.asarray(b, np.float64).reshape(-1)
    bsz, c_in, h, wd = x.shape
    _, c_out, k, _ = w.shape
    ho, wo = (h - 1) * stride + k, (wd - 1) * stride + k
    out = np.zeros((bsz, c_out, ho, wo), np.float64)
    for i in range(h):
        for j in range(wd):
            out[:, :, i * stride:i * stride + k, j * stride:j * stride + k] += (
                np.einsum("bi,iokl->bokl", x[:, :, i, j], w))
    return out + b.reshape(1, c_out, 1, 1)


def _reference_forward(latent, condition, p):
    x = np.concatenate([np.asarray(latent, np.float64),
                        np.asarray(condition, np.float64)], axis=-1)
    h = np.maximum(x @ np.asarray(p["w1"], np.float64)
                   + np.asarray(p["b1"], np.float64), 0.0)
    h = np.maximum(h @ np.asarray(p["w2"], np.float64)
                   + np.asarray(p["b2"], np.float64), 0.0)
    z = h.reshape(-1, 16, _H1, _H1)
    z = np.maximum(_np_convtranspose(z, p["dw1"], p["db1"], 2), 0.0)
    z = np.maximum(_np_convtranspose(z, p["dw2"], p["db2"], 2), 0.0)
    z = _np_convtranspose(z, p["dw3"], p["db3"], 1)
    return 1.0 / (1.0 + np.exp(-z))


# ------------------------------------ main ------------------------------------

if __name__ == "__main__":
    key = jax.random.PRNGKey(0)
    latent_dim = 8
    condition_vector_size = 4
    B = 2

    k_lat, k_cond, k_par = jax.random.split(key, 3)
    latent = jax.random.normal(k_lat, (B, latent_dim), jnp.float32)
    condition = jax.random.normal(k_cond, (B, condition_vector_size), jnp.float32)

    params = init_params(k_par, latent_dim, condition_vector_size)
    prep = prepare_params(params, latent_dim)   # one-time weight prep (not per call)

    fwd = jax.jit(conv_conditional_decoder)
    out = jax.block_until_ready(fwd(latent, condition, prep))

    assert out.shape == (B, 1, _HO, _HO), out.shape
    out_np = np.asarray(out)
    assert np.all(np.isfinite(out_np)) and np.all((out_np >= 0.0) & (out_np <= 1.0))

    ref = _reference_forward(latent, condition, params)
    max_err = float(np.max(np.abs(out_np - ref)))
    assert np.allclose(out_np, ref, rtol=1e-2, atol=1e-2), max_err

    print("KERNEL_OK")
</pallas_src>

<mosaic_0001>
module attributes {stable_mosaic.version = 11 : i64} {
  func.func @_decoder_kernel(%arg0: i32, %arg1: memref<2x8xf32, #tpu.memory_space<vmem>>, %arg2: memref<2x4xf32, #tpu.memory_space<vmem>>, %arg3: memref<8x64xf32, #tpu.memory_space<vmem>>, %arg4: memref<4x64xf32, #tpu.memory_space<vmem>>, %arg5: memref<1x64xf32, #tpu.memory_space<vmem>>, %arg6: memref<64x256xf32, #tpu.memory_space<vmem>>, %arg7: memref<1x256xf32, #tpu.memory_space<vmem>>, %arg8: memref<256x968xf32, #tpu.memory_space<vmem>>, %arg9: memref<1x968xf32, #tpu.memory_space<vmem>>, %arg10: memref<968x625xf32, #tpu.memory_space<vmem>>, %arg11: memref<1x625xf32, #tpu.memory_space<vmem>>, %arg12: memref<625x784xf32, #tpu.memory_space<vmem>>, %arg13: memref<1x784xf32, #tpu.memory_space<vmem>>, %arg14: memref<2x784xf32, #tpu.memory_space<vmem>>) attributes {dimension_semantics = [#tpu.dimension_semantics<parallel>], iteration_bounds = array<i64: 1>, scalar_prefetch = 0 : i64, scratch_operands = 0 : i64, tpu.core_type = #tpu.core_type<tc>, window_params = [{transform_indices = @transform_0, window_bounds = array<i64: 2, 8>}, {transform_indices = @transform_1, window_bounds = array<i64: 2, 4>}, {pipeline_mode = #tpu.pipeline_mode<synchronous>, transform_indices = @transform_2, window_bounds = array<i64: 8, 64>}, {pipeline_mode = #tpu.pipeline_mode<synchronous>, transform_indices = @transform_3, window_bounds = array<i64: 4, 64>}, {pipeline_mode = #tpu.pipeline_mode<synchronous>, transform_indices = @transform_4, window_bounds = array<i64: 1, 64>}, {pipeline_mode = #tpu.pipeline_mode<synchronous>, transform_indices = @transform_5, window_bounds = array<i64: 64, 256>}, {pipeline_mode = #tpu.pipeline_mode<synchronous>, transform_indices = @transform_6, window_bounds = array<i64: 1, 256>}, {pipeline_mode = #tpu.pipeline_mode<synchronous>, transform_indices = @transform_7, window_bounds = array<i64: 256, 968>}, {pipeline_mode = #tpu.pipeline_mode<synchronous>, transform_indices = @transform_8, window_bounds = array<i64: 1, 968>}, {pipeline_mode = #tpu.pipeline_mode<synchronous>, transform_indices = @transform_9, window_bounds = array<i64: 968, 625>}, {pipeline_mode = #tpu.pipeline_mode<synchronous>, transform_indices = @transform_10, window_bounds = array<i64: 1, 625>}, {pipeline_mode = #tpu.pipeline_mode<synchronous>, transform_indices = @transform_11, window_bounds = array<i64: 625, 784>}, {pipeline_mode = #tpu.pipeline_mode<synchronous>, transform_indices = @transform_12, window_bounds = array<i64: 1, 784>}, {transform_indices = @transform_13, window_bounds = array<i64: 2, 784>}]} {
    %c0 = arith.constant 0 : index
    %c0_0 = arith.constant 0 : index
    %0 = vector.load %arg1[%c0, %c0_0] : memref<2x8xf32, #tpu.memory_space<vmem>>, vector<2x8xf32>
    %c0_1 = arith.constant 0 : index
    %c0_2 = arith.constant 0 : index
    %1 = vector.load %arg3[%c0_1, %c0_2] : memref<8x64xf32, #tpu.memory_space<vmem>>, vector<8x64xf32>
    %cst = arith.constant dense<0.000000e+00> : vector<2x64xf32>
    %2 = tpu.matmul %0, %1, %cst {dimension_numbers = #tpu.dot_dimension_numbers<[1], [0], [0], [1], [0, 0, 1, 1], [], []>} : vector<2x8xf32>, vector<8x64xf32>, vector<2x64xf32> -> vector<2x64xf32>
    %c0_3 = arith.constant 0 : index
    %c0_4 = arith.constant 0 : index
    %3 = vector.load %arg2[%c0_3, %c0_4] : memref<2x4xf32, #tpu.memory_space<vmem>>, vector<2x4xf32>
    %c0_5 = arith.constant 0 : index
    %c0_6 = arith.constant 0 : index
    %4 = vector.load %arg4[%c0_5, %c0_6] : memref<4x64xf32, #tpu.memory_space<vmem>>, vector<4x64xf32>
    %cst_7 = arith.constant dense<0.000000e+00> : vector<2x64xf32>
    %5 = tpu.matmul %3, %4, %cst_7 {dimension_numbers = #tpu.dot_dimension_numbers<[1], [0], [0], [1], [0, 0, 1, 1], [], []>} : vector<2x4xf32>, vector<4x64xf32>, vector<2x64xf32> -> vector<2x64xf32>
    %6 = arith.addf %2, %5 : vector<2x64xf32>
    %c0_8 = arith.constant 0 : index
    %c0_9 = arith.constant 0 : index
    %7 = vector.load %arg5[%c0_8, %c0_9] : memref<1x64xf32, #tpu.memory_space<vmem>>, vector<1x64xf32>
    %8 = vector.broadcast %7 : vector<1x64xf32> to vector<2x64xf32>
    %9 = arith.addf %6, %8 : vector<2x64xf32>
    %cst_10 = arith.constant 0.000000e+00 : f32
    %10 = vector.broadcast %cst_10 : f32 to vector<2x64xf32>
    %11 = arith.maximumf %9, %10 : vector<2x64xf32>
    %c0_11 = arith.constant 0 : index
    %c0_12 = arith.constant 0 : index
    %12 = vector.load %arg6[%c0_11, %c0_12] : memref<64x256xf32, #tpu.memory_space<vmem>>, vector<64x256xf32>
    %cst_13 = arith.constant dense<0.000000e+00> : vector<2x256xf32>
    %13 = tpu.matmul %11, %12, %cst_13 {dimension_numbers = #tpu.dot_dimension_numbers<[1], [0], [0], [1], [0, 0, 1, 1], [], []>} : vector<2x64xf32>, vector<64x256xf32>, vector<2x256xf32> -> vector<2x256xf32>
    %c0_14 = arith.constant 0 : index
    %c0_15 = arith.constant 0 : index
    %14 = vector.load %arg7[%c0_14, %c0_15] : memref<1x256xf32, #tpu.memory_space<vmem>>, vector<1x256xf32>
    %15 = vector.broadcast %14 : vector<1x256xf32> to vector<2x256xf32>
    %16 = arith.addf %13, %15 : vector<2x256xf32>
    %cst_16 = arith.constant 0.000000e+00 : f32
    %17 = vector.broadcast %cst_16 : f32 to vector<2x256xf32>
    %18 = arith.maximumf %16, %17 : vector<2x256xf32>
    %c0_17 = arith.constant 0 : index
    %c0_18 = arith.constant 0 : index
    %19 = vector.load %arg8[%c0_17, %c0_18] : memref<256x968xf32, #tpu.memory_space<vmem>>, vector<256x968xf32>
    %cst_19 = arith.constant dense<0.000000e+00> : vector<2x968xf32>
    %20 = tpu.matmul %18, %19, %cst_19 {dimension_numbers = #tpu.dot_dimension_numbers<[1], [0], [0], [1], [0, 0, 1, 1], [], []>} : vector<2x256xf32>, vector<256x968xf32>, vector<2x968xf32> -> vector<2x968xf32>
    %c0_20 = arith.constant 0 : index
    %c0_21 = arith.constant 0 : index
    %21 = vector.load %arg9[%c0_20, %c0_21] : memref<1x968xf32, #tpu.memory_space<vmem>>, vector<1x968xf32>
    %22 = vector.broadcast %21 : vector<1x968xf32> to vector<2x968xf32>
    %23 = arith.addf %20, %22 : vector<2x968xf32>
    %cst_22 = arith.constant 0.000000e+00 : f32
    %24 = vector.broadcast %cst_22 : f32 to vector<2x968xf32>
    %25 = arith.maximumf %23, %24 : vector<2x968xf32>
    %c0_23 = arith.constant 0 : index
    %c0_24 = arith.constant 0 : index
    %26 = vector.load %arg10[%c0_23, %c0_24] : memref<968x625xf32, #tpu.memory_space<vmem>>, vector<968x625xf32>
    %cst_25 = arith.constant dense<0.000000e+00> : vector<2x625xf32>
    %27 = tpu.matmul %25, %26, %cst_25 {dimension_numbers = #tpu.dot_dimension_numbers<[1], [0], [0], [1], [0, 0, 1, 1], [], []>} : vector<2x968xf32>, vector<968x625xf32>, vector<2x625xf32> -> vector<2x625xf32>
    %c0_26 = arith.constant 0 : index
    %c0_27 = arith.constant 0 : index
    %28 = vector.load %arg11[%c0_26, %c0_27] : memref<1x625xf32, #tpu.memory_space<vmem>>, vector<1x625xf32>
    %29 = vector.broadcast %28 : vector<1x625xf32> to vector<2x625xf32>
    %30 = arith.addf %27, %29 : vector<2x625xf32>
    %cst_28 = arith.constant 0.000000e+00 : f32
    %31 = vector.broadcast %cst_28 : f32 to vector<2x625xf32>
    %32 = arith.maximumf %30, %31 : vector<2x625xf32>
    %c0_29 = arith.constant 0 : index
    %c0_30 = arith.constant 0 : index
    %33 = vector.load %arg12[%c0_29, %c0_30] : memref<625x784xf32, #tpu.memory_space<vmem>>, vector<625x784xf32>
    %cst_31 = arith.constant dense<0.000000e+00> : vector<2x784xf32>
    %34 = tpu.matmul %32, %33, %cst_31 {dimension_numbers = #tpu.dot_dimension_numbers<[1], [0], [0], [1], [0, 0, 1, 1], [], []>} : vector<2x625xf32>, vector<625x784xf32>, vector<2x784xf32> -> vector<2x784xf32>
    %c0_32 = arith.constant 0 : index
    %c0_33 = arith.constant 0 : index
    %35 = vector.load %arg13[%c0_32, %c0_33] : memref<1x784xf32, #tpu.memory_space<vmem>>, vector<1x784xf32>
    %36 = vector.broadcast %35 : vector<1x784xf32> to vector<2x784xf32>
    %37 = arith.addf %34, %36 : vector<2x784xf32>
    %38 = arith.negf %37 : vector<2x784xf32>
    %39 = math.exp %38 : vector<2x784xf32>
    %cst_34 = arith.constant 1.000000e+00 : f32
    %40 = vector.broadcast %cst_34 : f32 to vector<2x784xf32>
    %41 = arith.addf %40, %39 : vector<2x784xf32>
    %42 = arith.divf %40, %41 : vector<2x784xf32>
    %c0_35 = arith.constant 0 : index
    %c0_36 = arith.constant 0 : index
    %43 = vector.load %arg14[%c0_35, %c0_36] : memref<2x784xf32, #tpu.memory_space<vmem>>, vector<2x784xf32>
    tpu.vector_store %arg14[%c0_35, %c0_36], %42 {strides = array<i32>} : memref<2x784xf32, #tpu.memory_space<vmem>>, vector<2x784xf32>,
    return
  }
  func.func @transform_0(%arg0: i32) -> (i32, i32) {
    %c0_i32 = arith.constant 0 : i32
    %c0_i32_0 = arith.constant 0 : i32
    return %arg0, %c0_i32 : i32, i32
  }
  func.func @transform_1(%arg0: i32) -> (i32, i32) {
    %c0_i32 = arith.constant 0 : i32
    %c0_i32_0 = arith.constant 0 : i32
    return %arg0, %c0_i32 : i32, i32
  }
  func.func @transform_2(%arg0: i32) -> (i32, i32) {
    %c0_i32 = arith.constant 0 : i32
    %c0_i32_0 = arith.constant 0 : i32
    %c0_i32_1 = arith.constant 0 : i32
    return %c0_i32, %c0_i32_0 : i32, i32
  }
  func.func @transform_3(%arg0: i32) -> (i32, i32) {
    %c0_i32 = arith.constant 0 : i32
    %c0_i32_0 = arith.constant 0 : i32
    %c0_i32_1 = arith.constant 0 : i32
    return %c0_i32, %c0_i32_0 : i32, i32
  }
  func.func @transform_4(%arg0: i32) -> (i32, i32) {
    %c0_i32 = arith.constant 0 : i32
    %c0_i32_0 = arith.constant 0 : i32
    %c0_i32_1 = arith.constant 0 : i32
    return %c0_i32, %c0_i32_0 : i32, i32
  }
  func.func @transform_5(%arg0: i32) -> (i32, i32) {
    %c0_i32 = arith.constant 0 : i32
    %c0_i32_0 = arith.constant 0 : i32
    %c0_i32_1 = arith.constant 0 : i32
    return %c0_i32, %c0_i32_0 : i32, i32
  }
  func.func @transform_6(%arg0: i32) -> (i32, i32) {
    %c0_i32 = arith.constant 0 : i32
    %c0_i32_0 = arith.constant 0 : i32
    %c0_i32_1 = arith.constant 0 : i32
    return %c0_i32, %c0_i32_0 : i32, i32
  }
  func.func @transform_7(%arg0: i32) -> (i32, i32) {
    %c0_i32 = arith.constant 0 : i32
    %c0_i32_0 = arith.constant 0 : i32
    %c0_i32_1 = arith.constant 0 : i32
    return %c0_i32, %c0_i32_0 : i32, i32
  }
  func.func @transform_8(%arg0: i32) -> (i32, i32) {
    %c0_i32 = arith.constant 0 : i32
    %c0_i32_0 = arith.constant 0 : i32
    %c0_i32_1 = arith.constant 0 : i32
    return %c0_i32, %c0_i32_0 : i32, i32
  }
  func.func @transform_9(%arg0: i32) -> (i32, i32) {
    %c0_i32 = arith.constant 0 : i32
    %c0_i32_0 = arith.constant 0 : i32
    %c0_i32_1 = arith.constant 0 : i32
    return %c0_i32, %c0_i32_0 : i32, i32
  }
  func.func @transform_10(%arg0: i32) -> (i32, i32) {
    %c0_i32 = arith.constant 0 : i32
    %c0_i32_0 = arith.constant 0 : i32
    %c0_i32_1 = arith.constant 0 : i32
    return %c0_i32, %c0_i32_0 : i32, i32
  }
  func.func @transform_11(%arg0: i32) -> (i32, i32) {
    %c0_i32 = arith.constant 0 : i32
    %c0_i32_0 = arith.constant 0 : i32
    %c0_i32_1 = arith.constant 0 : i32
    return %c0_i32, %c0_i32_0 : i32, i32
  }
  func.func @transform_12(%arg0: i32) -> (i32, i32) {
    %c0_i32 = arith.constant 0 : i32
    %c0_i32_0 = arith.constant 0 : i32
    %c0_i32_1 = arith.constant 0 : i32
    return %c0_i32, %c0_i32_0 : i32, i32
  }
  func.func @transform_13(%arg0: i32) -> (i32, i32) {
    %c0_i32 = arith.constant 0 : i32
    %c0_i32_0 = arith.constant 0 : i32
    return %arg0, %c0_i32 : i32, i32
  }
}

</mosaic_0001>

<llo_original>
// kernel: conv_conditional_decoder.1
$region0: #{conv_conditional_decoder.1}
  #allocation0 [shape = 'u32[]', space=smem, size = 0x4, offset = 0x4, fixed_abs, tag = 'smem constant byte address 0x4 - core index']
  #allocation1 [shape = 'u32[72,128]{1,0:T(1,128)}', space=vmem, size = 0x9000, scoped, tag = 'internal scratch']
  %s0 = inlined_call_operand.vmem [shape: f32[2,8], index: 0, kind: input, shape index: {}]
  %s1 = inlined_call_operand.vmem [shape: f32[2,4], index: 1, kind: input, shape index: {}]
  %s2 = inlined_call_operand.vmem [shape: f32[8,64], index: 2, kind: input, shape index: {}]
  %s3 = inlined_call_operand.vmem [shape: f32[4,64], index: 3, kind: input, shape index: {}]
  %s4 = inlined_call_operand.vmem [shape: f32[1,64], index: 4, kind: input, shape index: {}]
  %s5 = inlined_call_operand.vmem [shape: f32[64,256], index: 5, kind: input, shape index: {}]
  %s6 = inlined_call_operand.vmem [shape: f32[1,256], index: 6, kind: input, shape index: {}]
  %s7 = inlined_call_operand.vmem [shape: f32[256,968], index: 7, kind: input, shape index: {}]
  %s8 = inlined_call_operand.vmem [shape: f32[1,968], index: 8, kind: input, shape index: {}]
  %s9 = inlined_call_operand.vmem [shape: f32[968,625], index: 9, kind: input, shape index: {}]
  %s10 = inlined_call_operand.vmem [shape: f32[1,625], index: 10, kind: input, shape index: {}]
  %s11 = inlined_call_operand.vmem [shape: f32[625,784], index: 11, kind: input, shape index: {}]
  %s12 = inlined_call_operand.vmem [shape: f32[1,784], index: 12, kind: input, shape index: {}]
  %s13 = inlined_call_operand.vmem [shape: f32[2,784], index: 13, kind: output, shape index: {}]
  %s14 = sld [smem:[#allocation0]]
  $region62: #{conv_conditional_decoder.1} parent=0
    _
  %s16 = ssub.s32 1, %s14
  %s17 = scalar_select 0, %s16, %s14
  // Predicated region
  $region2: #{conv_conditional_decoder.1} parent=0 // pred_check
    _
  $region3: #{conv_conditional_decoder.1} parent=0 // pred_check_branch
    %19 = sbr.rel (0) target = $region5
  $region4: #{conv_conditional_decoder.1} parent=0 // pred_region
    _
  $region5: #{conv_conditional_decoder.1} parent=0 // pred_fallthru
    _
  // Predicated region
  $region6: #{conv_conditional_decoder.1} parent=0 // pred_check
    _
  $region7: #{conv_conditional_decoder.1} parent=0 // pred_check_branch
    %21 = sbr.rel (0) target = $region9
  $region8: #{conv_conditional_decoder.1} parent=0 // pred_region
    _
  $region9: #{conv_conditional_decoder.1} parent=0 // pred_fallthru
    _
  // Predicated region
  $region10: #{conv_conditional_decoder.1} parent=0 // pred_check
    _
  $region11: #{conv_conditional_decoder.1} parent=0 // pred_check_branch
    %23 = sbr.rel (0) target = $region13
  $region12: #{conv_conditional_decoder.1} parent=0 // pred_region
    _
  $region13: #{conv_conditional_decoder.1} parent=0 // pred_fallthru
    _
  // Predicated region
  $region14: #{conv_conditional_decoder.1} parent=0 // pred_check
    _
  $region15: #{conv_conditional_decoder.1} parent=0 // pred_check_branch
    %25 = sbr.rel (0) target = $region17
  $region16: #{conv_conditional_decoder.1} parent=0 // pred_region
    _
  $region17: #{conv_conditional_decoder.1} parent=0 // pred_fallthru
    _
  // Predicated region
  $region18: #{conv_conditional_decoder.1} parent=0 // pred_check
    _
  $region19: #{conv_conditional_decoder.1} parent=0 // pred_check_branch
    %27 = sbr.rel (0) target = $region21
  $region20: #{conv_conditional_decoder.1} parent=0 // pred_region
    _
  $region21: #{conv_conditional_decoder.1} parent=0 // pred_fallthru
    _
  // Predicated region
  $region22: #{conv_conditional_decoder.1} parent=0 // pred_check
    _
  $region23: #{conv_conditional_decoder.1} parent=0 // pred_check_branch
    %29 = sbr.rel (0) target = $region25
  $region24: #{conv_conditional_decoder.1} parent=0 // pred_region
    _
  $region25: #{conv_conditional_decoder.1} parent=0 // pred_fallthru
    _
  // Predicated region
  $region26: #{conv_conditional_decoder.1} parent=0 // pred_check
    _
  $region27: #{conv_conditional_decoder.1} parent=0 // pred_check_branch
    %31 = sbr.rel (0) target = $region29
  $region28: #{conv_conditional_decoder.1} parent=0 // pred_region
    _
  $region29: #{conv_conditional_decoder.1} parent=0 // pred_fallthru
    _
  // Predicated region
  $region30: #{conv_conditional_decoder.1} parent=0 // pred_check
    _
  $region31: #{conv_conditional_decoder.1} parent=0 // pred_check_branch
    %33 = sbr.rel (0) target = $region33
  $region32: #{conv_conditional_decoder.1} parent=0 // pred_region
    _
  $region33: #{conv_conditional_decoder.1} parent=0 // pred_fallthru
    _
  // Predicated region
  $region34: #{conv_conditional_decoder.1} parent=0 // pred_check
    _
  $region35: #{conv_conditional_decoder.1} parent=0 // pred_check_branch
    %35 = sbr.rel (0) target = $region37
  $region36: #{conv_conditional_decoder.1} parent=0 // pred_region
    _
  $region37: #{conv_conditional_decoder.1} parent=0 // pred_fallthru
    _
  // Predicated region
  $region38: #{conv_conditional_decoder.1} parent=0 // pred_check
    _
  $region39: #{conv_conditional_decoder.1} parent=0 // pred_check_branch
    %37 = sbr.rel (0) target = $region41
  $region40: #{conv_conditional_decoder.1} parent=0 // pred_region
    _
  $region41: #{conv_conditional_decoder.1} parent=0 // pred_fallthru
    _
  // Predicated region
  $region42: #{conv_conditional_decoder.1} parent=0 // pred_check
    _
  $region43: #{conv_conditional_decoder.1} parent=0 // pred_check_branch
    %39 = sbr.rel (0) target = $region45
  $region44: #{conv_conditional_decoder.1} parent=0 // pred_region
    _
  $region45: #{conv_conditional_decoder.1} parent=0 // pred_fallthru
    _
  // Predicated region
  $region46: #{conv_conditional_decoder.1} parent=0 // pred_check
    _
  $region47: #{conv_conditional_decoder.1} parent=0 // pred_check_branch
    %41 = sbr.rel (0) target = $region49
  $region48: #{conv_conditional_decoder.1} parent=0 // pred_region
    _
  $region49: #{conv_conditional_decoder.1} parent=0 // pred_fallthru
    _
  // Predicated region
  $region50: #{conv_conditional_decoder.1} parent=0 // pred_check
    _
  $region51: #{conv_conditional_decoder.1} parent=0 // pred_check_branch
    %43 = sbr.rel (0) target = $region53
  $region52: #{conv_conditional_decoder.1} parent=0 // pred_region
    _
  $region53: #{conv_conditional_decoder.1} parent=0 // pred_fallthru
    _
  %v44 = vld [vmem:[%s0] sm:$0x3]
  %v45 = vld [vmem:[%s2] sm:$0xff]
  %v46 = vld [vmem:[%s1] sm:$0x3]
  %v47 = vld [vmem:[%s3] sm:$0xf]
  %vm48 = vcmask 31744
  %v50 = vsel %vm48, %v46, 0
  %vm52 = vcmask 1043456
  %v54 = vsel %vm52, %v47, 0
  %56 = vmatpush.msra.mxu0 0.0
  %57 = vmatpush.msra.mxu0 0.0
  %58 = vmatpush.msra.mxu0 0.0
  %59 = vmatpush.msra.mxu0 0.0
  %60 = vmatpush.msra.mxu0 0.0
  %61 = vmatpush.msra.mxu0 0.0
  %62 = vmatpush.msra.mxu0 0.0
  %63 = vmatpush.msra.mxu0 0.0
  %64 = vmatpush.msra.mxu0 0.0
  %65 = vmatpush.msra.mxu0 0.0
  %66 = vmatpush.msra.mxu0 0.0
  %67 = vmatpush.msra.mxu0 0.0
  %68 = vmatpush.msra.mxu0 0.0
  %69 = vmatpush.msra.mxu0 0.0
  %70 = vmatpush.msra.mxu0 0.0
  %71 = vmatpush.msra.mxu0 %v54
  %72 = vmatmul.f32.gmra.mxu0 %v50
  %v73 = vpop.f32.mrf.mxu0
  %v74 = vadd.f32 0.0, %v73
  %75 = vdwg.mxu0
  %vm76 = vcmask 64512
  %v78 = vsel %vm76, %v44, 0
  %80 = vmatpush.msra.mxu0 0.0
  %81 = vmatpush.msra.mxu0 0.0
  %82 = vmatpush.msra.mxu0 0.0
  %83 = vmatpush.msra.mxu0 0.0
  %84 = vmatpush.msra.mxu0 0.0
  %85 = vmatpush.msra.mxu0 0.0
  %86 = vmatpush.msra.mxu0 0.0
  %87 = vmatpush.msra.mxu0 0.0
  %88 = vmatpush.msra.mxu0 0.0
  %89 = vmatpush.msra.mxu0 0.0
  %90 = vmatpush.msra.mxu0 0.0
  %91 = vmatpush.msra.mxu0 0.0
  %92 = vmatpush.msra.mxu0 0.0
  %93 = vmatpush.msra.mxu0 0.0
  %94 = vmatpush.msra.mxu0 0.0
  %95 = vmatpush.msra.mxu0 %v45
  %96 = vmatmul.f32.gmra.mxu0 %v78
  %v97 = vpop.f32.mrf.mxu0
  %v98 = vadd.f32 %v74, %v97
  %99 = vdwg.mxu0
  %v100 = vld [vmem:[%s4] sm:$0x1]
  %v102 = vperm.slane %v100, 0
  %v104 = vadd.f32 %v98, %v102
  %v105 = vmax.f32 %v104, 0.0
  %v106 = vld [vmem:[%s5] sm:$0xff]
  %v107 = vld [vmem:[%s5 + $0x8] sm:$0xff]
  %v108 = vld [vmem:[%s5 + $0x10] sm:$0xff]
  %v109 = vld [vmem:[%s5 + $0x18] sm:$0xff]
  %v110 = vld [vmem:[%s5 + $0x20] sm:$0xff]
  %v111 = vld [vmem:[%s5 + $0x28] sm:$0xff]
  %v112 = vld [vmem:[%s5 + $0x30] sm:$0xff]
  %v113 = vld [vmem:[%s5 + $0x38] sm:$0xff]
  %v114 = vld [vmem:[%s5 + $0x40] sm:$0xff]
  %v115 = vld [vmem:[%s5 + $0x48] sm:$0xff]
  %v116 = vld [vmem:[%s5 + $0x50] sm:$0xff]
  %v117 = vld [vmem:[%s5 + $0x58] sm:$0xff]
  %v118 = vld [vmem:[%s5 + $0x60] sm:$0xff]
  %v119 = vld [vmem:[%s5 + $0x68] sm:$0xff]
  %v120 = vld [vmem:[%s5 + $0x70] sm:$0xff]
  %v121 = vld [vmem:[%s5 + $0x78] sm:$0xff]
  %v122 = vld [vmem:[%s6] sm:$0x3]
  %v124 = vperm.slane %v122, 0
  %v125 = vperm.slane %v122, 1
  %vm128 = vcmask 523264
  %v130 = vsel %vm128, %v105, 0
  %132 = vmatpush.msra.mxu0 0.0
  %133 = vmatpush.msra.mxu0 0.0
  %134 = vmatpush.msra.mxu0 0.0
  %135 = vmatpush.msra.mxu0 0.0
  %136 = vmatpush.msra.mxu0 0.0
  %137 = vmatpush.msra.mxu0 0.0
  %138 = vmatpush.msra.mxu0 0.0
  %139 = vmatpush.msra.mxu0 0.0
  %140 = vmatpush.msra.mxu0 %v120
  %141 = vmatpush.msra.mxu0 %v118
  %142 = vmatpush.msra.mxu0 %v116
  %143 = vmatpush.msra.mxu0 %v114
  %144 = vmatpush.msra.mxu0 %v112
  %145 = vmatpush.msra.mxu0 %v110
  %146 = vmatpush.msra.mxu0 %v108
  %147 = vmatpush.msra.mxu0 %v106
  %148 = vmatmul.f32.gmra.mxu0 %v130
  %v149 = vpop.f32.mrf.mxu0
  %v150 = vadd.f32 %v124, %v149
  %151 = vdwg.mxu0
  %152 = vmatpush.msra.mxu0 0.0
  %153 = vmatpush.msra.mxu0 0.0
  %154 = vmatpush.msra.mxu0 0.0
  %155 = vmatpush.msra.mxu0 0.0
  %156 = vmatpush.msra.mxu0 0.0
  %157 = vmatpush.msra.mxu0 0.0
  %158 = vmatpush.msra.mxu0 0.0
  %159 = vmatpush.msra.mxu0 0.0
  %160 = vmatpush.msra.mxu0 %v121
  %161 = vmatpush.msra.mxu0 %v119
  %162 = vmatpush.msra.mxu0 %v117
  %163 = vmatpush.msra.mxu0 %v115
  %164 = vmatpush.msra.mxu0 %v113
  %165 = vmatpush.msra.mxu0 %v111
  %166 = vmatpush.msra.mxu0 %v109
  %167 = vmatpush.msra.mxu0 %v107
  %168 = vmatmul.f32.gmra.mxu0 %v130
  %v169 = vpop.f32.mrf.mxu0
  %v170 = vadd.f32 %v125, %v169
  %171 = vdwg.mxu0
  %v172 = vmax.f32 %v150, 0.0
  %v173 = vmax.f32 %v170, 0.0
  %v174 = vld [vmem:[%s7] sm:$0xff]
  %v175 = vld [vmem:[%s7 + $0x8] sm:$0xff]
  %v176 = vld [vmem:[%s7 + $0x10] sm:$0xff]
  %v177 = vld [vmem:[%s7 + $0x18] sm:$0xff]
  %v178 = vld [vmem:[%s7 + $0x20] sm:$0xff]
  %v179 = vld [vmem:[%s7 + $0x28] sm:$0xff]
  %v180 = vld [vmem:[%s7 + $0x30] sm:$0xff]
  %v181 = vld [vmem:[%s7 + $0x38] sm:$0xff]
  %v182 = vld [vmem:[%s7 + $0x40] sm:$0xff]
  %v183 = vld [vmem:[%s7 + $0x48] sm:$0xff]
  %v184 = vld [vmem:[%s7 + $0x50] sm:$0xff]
  %v185 = vld [vmem:[%s7 + $0x58] sm:$0xff]
  %v186 = vld [vmem:[%s7 + $0x60] sm:$0xff]
  %v187 = vld [vmem:[%s7 + $0x68] sm:$0xff]
  %v188 = vld [vmem:[%s7 + $0x70] sm:$0xff]
  %v189 = vld [vmem:[%s7 + $0x78] sm:$0xff]
  %v190 = vld [vmem:[%s7 + $0x80] sm:$0xff]
  %v191 = vld [vmem:[%s7 + $0x88] sm:$0xff]
  %v192 = vld [vmem:[%s7 + $0x90] sm:$0xff]
  %v193 = vld [vmem:[%s7 + $0x98] sm:$0xff]
  %v194 = vld [vmem:[%s7 + $0xa0] sm:$0xff]
  %v195 = vld [vmem:[%s7 + $0xa8] sm:$0xff]
  %v196 = vld [vmem:[%s7 + $0xb0] sm:$0xff]
  %v197 = vld [vmem:[%s7 + $0xb8] sm:$0xff]
  %v198 = vld [vmem:[%s7 + $0xc0] sm:$0xff]
  %v199 = vld [vmem:[%s7 + $0xc8] sm:$0xff]
  %v200 = vld [vmem:[%s7 + $0xd0] sm:$0xff]
  %v201 = vld [vmem:[%s7 + $0xd8] sm:$0xff]
  %v202 = vld [vmem:[%s7 + $0xe0] sm:$0xff]
  %v203 = vld [vmem:[%s7 + $0xe8] sm:$0xff]
  %v204 = vld [vmem:[%s7 + $0xf0] sm:$0xff]
  %v205 = vld [vmem:[%s7 + $0xf8] sm:$0xff]
  %v206 = vld [vmem:[%s7 + $0x100] sm:$0xff]
  %v207 = vld [vmem:[%s7 + $0x108] sm:$0xff]
  %v208 = vld [vmem:[%s7 + $0x110] sm:$0xff]
  %v209 = vld [vmem:[%s7 + $0x118] sm:$0xff]
  %v210 = vld [vmem:[%s7 + $0x120] sm:$0xff]
  %v211 = vld [vmem:[%s7 + $0x128] sm:$0xff]
  %v212 = vld [vmem:[%s7 + $0x130] sm:$0xff]
  %v213 = vld [vmem:[%s7 + $0x138] sm:$0xff]
  %v214 = vld [vmem:[%s7 + $0x140] sm:$0xff]
  %v215 = vld [vmem:[%s7 + $0x148] sm:$0xff]
  %v216 = vld [vmem:[%s7 + $0x150] sm:$0xff]
  %v217 = vld [vmem:[%s7 + $0x158] sm:$0xff]
  %v218 = vld [vmem:[%s7 + $0x160] sm:$0xff]
  %v219 = vld [vmem:[%s7 + $0x168] sm:$0xff]
  %v220 = vld [vmem:[%s7 + $0x170] sm:$0xff]
  %v221 = vld [vmem:[%s7 + $0x178] sm:$0xff]
  %v222 = vld [vmem:[%s7 + $0x180] sm:$0xff]
  %v223 = vld [vmem:[%s7 + $0x188] sm:$0xff]
  %v224 = vld [vmem:[%s7 + $0x190] sm:$0xff]
  %v225 = vld [vmem:[%s7 + $0x198] sm:$0xff]
  %v226 = vld [vmem:[%s7 + $0x1a0] sm:$0xff]
  %v227 = vld [vmem:[%s7 + $0x1a8] sm:$0xff]
  %v228 = vld [vmem:[%s7 + $0x1b0] sm:$0xff]
  %v229 = vld [vmem:[%s7 + $0x1b8] sm:$0xff]
  %v230 = vld [vmem:[%s7 + $0x1c0] sm:$0xff]
  %v231 = vld [vmem:[%s7 + $0x1c8] sm:$0xff]
  %v232 = vld [vmem:[%s7 + $0x1d0] sm:$0xff]
  %v233 = vld [vmem:[%s7 + $0x1d8] sm:$0xff]
  %v234 = vld [vmem:[%s7 + $0x1e0] sm:$0xff]
  %v235 = vld [vmem:[%s7 + $0x1e8] sm:$0xff]
  %v236 = vld [vmem:[%s7 + $0x1f0] sm:$0xff]
  %v237 = vld [vmem:[%s7 + $0x1f8] sm:$0xff]
  %v238 = vld [vmem:[%s7 + $0x200] sm:$0xff]
  %v239 = vld [vmem:[%s7 + $0x208] sm:$0xff]
  %v240 = vld [vmem:[%s7 + $0x210] sm:$0xff]
  %v241 = vld [vmem:[%s7 + $0x218] sm:$0xff]
  %v242 = vld [vmem:[%s7 + $0x220] sm:$0xff]
  %v243 = vld [vmem:[%s7 + $0x228] sm:$0xff]
  %v244 = vld [vmem:[%s7 + $0x230] sm:$0xff]
  %v245 = vld [vmem:[%s7 + $0x238] sm:$0xff]
  %v246 = vld [vmem:[%s7 + $0x240] sm:$0xff]
  %v247 = vld [vmem:[%s7 + $0x248] sm:$0xff]
  %v248 = vld [vmem:[%s7 + $0x250] sm:$0xff]
  %v249 = vld [vmem:[%s7 + $0x258] sm:$0xff]
  %v250 = vld [vmem:[%s7 + $0x260] sm:$0xff]
  %v251 = vld [vmem:[%s7 + $0x268] sm:$0xff]
  %v252 = vld [vmem:[%s7 + $0x270] sm:$0xff]
  %v253 = vld [vmem:[%s7 + $0x278] sm:$0xff]
  %v254 = vld [vmem:[%s7 + $0x280] sm:$0xff]
  %v255 = vld [vmem:[%s7 + $0x288] sm:$0xff]
  %v256 = vld [vmem:[%s7 + $0x290] sm:$0xff]
  %v257 = vld [vmem:[%s7 + $0x298] sm:$0xff]
  %v258 = vld [vmem:[%s7 + $0x2a0] sm:$0xff]
  %v259 = vld [vmem:[%s7 + $0x2a8] sm:$0xff]
  %v260 = vld [vmem:[%s7 + $0x2b0] sm:$0xff]
  %v261 = vld [vmem:[%s7 + $0x2b8] sm:$0xff]
  %v262 = vld [vmem:[%s7 + $0x2c0] sm:$0xff]
  %v263 = vld [vmem:[%s7 + $0x2c8] sm:$0xff]
  %v264 = vld [vmem:[%s7 + $0x2d0] sm:$0xff]
  %v265 = vld [vmem:[%s7 + $0x2d8] sm:$0xff]
  %v266 = vld [vmem:[%s7 + $0x2e0] sm:$0xff]
  %v267 = vld [vmem:[%s7 + $0x2e8] sm:$0xff]
  %v268 = vld [vmem:[%s7 + $0x2f0] sm:$0xff]
  %v269 = vld [vmem:[%s7 + $0x2f8] sm:$0xff]
  %v270 = vld [vmem:[%s7 + $0x300] sm:$0xff]
  %v271 = vld [vmem:[%s7 + $0x308] sm:$0xff]
  %v272 = vld [vmem:[%s7 + $0x310] sm:$0xff]
  %v273 = vld [vmem:[%s7 + $0x318] sm:$0xff]
  %v274 = vld [vmem:[%s7 + $0x320] sm:$0xff]
  %v275 = vld [vmem:[%s7 + $0x328] sm:$0xff]
  %v276 = vld [vmem:[%s7 + $0x330] sm:$0xff]
  %v277 = vld [vmem:[%s7 + $0x338] sm:$0xff]
  %v278 = vld [vmem:[%s7 + $0x340] sm:$0xff]
  %v279 = vld [vmem:[%s7 + $0x348] sm:$0xff]
  %v280 = vld [vmem:[%s7 + $0x350] sm:$0xff]
  %v281 = vld [vmem:[%s7 + $0x358] sm:$0xff]
  %v282 = vld [vmem:[%s7 + $0x360] sm:$0xff]
  %v283 = vld [vmem:[%s7 + $0x368] sm:$0xff]
  %v284 = vld [vmem:[%s7 + $0x370] sm:$0xff]
  %v285 = vld [vmem:[%s7 + $0x378] sm:$0xff]
  %v286 = vld [vmem:[%s7 + $0x380] sm:$0xff]
  %v287 = vld [vmem:[%s7 + $0x388] sm:$0xff]
  %v288 = vld [vmem:[%s7 + $0x390] sm:$0xff]
  %v289 = vld [vmem:[%s7 + $0x398] sm:$0xff]
  %v290 = vld [vmem:[%s7 + $0x3a0] sm:$0xff]
  %v291 = vld [vmem:[%s7 + $0x3a8] sm:$0xff]
  %v292 = vld [vmem:[%s7 + $0x3b0] sm:$0xff]
  %v293 = vld [vmem:[%s7 + $0x3b8] sm:$0xff]
  %v294 = vld [vmem:[%s7 + $0x3c0] sm:$0xff]
  %v295 = vld [vmem:[%s7 + $0x3c8] sm:$0xff]
  %v296 = vld [vmem:[%s7 + $0x3d0] sm:$0xff]
  %v297 = vld [vmem:[%s7 + $0x3d8] sm:$0xff]
  %v298 = vld [vmem:[%s7 + $0x3e0] sm:$0xff]
  %v299 = vld [vmem:[%s7 + $0x3e8] sm:$0xff]
  %v300 = vld [vmem:[%s7 + $0x3f0] sm:$0xff]
  %v301 = vld [vmem:[%s7 + $0x3f8] sm:$0xff]
  %v302 = vld [vmem:[%s7 + $0x400] sm:$0xff]
  %v303 = vld [vmem:[%s7 + $0x408] sm:$0xff]
  %v304 = vld [vmem:[%s7 + $0x410] sm:$0xff]
  %v305 = vld [vmem:[%s7 + $0x418] sm:$0xff]
  %v306 = vld [vmem:[%s7 + $0x420] sm:$0xff]
  %v307 = vld [vmem:[%s7 + $0x428] sm:$0xff]
  %v308 = vld [vmem:[%s7 + $0x430] sm:$0xff]
  %v309 = vld [vmem:[%s7 + $0x438] sm:$0xff]
  %v310 = vld [vmem:[%s7 + $0x440] sm:$0xff]
  %v311 = vld [vmem:[%s7 + $0x448] sm:$0xff]
  %v312 = vld [vmem:[%s7 + $0x450] sm:$0xff]
  %v313 = vld [vmem:[%s7 + $0x458] sm:$0xff]
  %v314 = vld [vmem:[%s7 + $0x460] sm:$0xff]
  %v315 = vld [vmem:[%s7 + $0x468] sm:$0xff]
  %v316 = vld [vmem:[%s7 + $0x470] sm:$0xff]
  %v317 = vld [vmem:[%s7 + $0x478] sm:$0xff]
  %v318 = vld [vmem:[%s7 + $0x480] sm:$0xff]
  %v319 = vld [vmem:[%s7 + $0x488] sm:$0xff]
  %v320 = vld [vmem:[%s7 + $0x490] sm:$0xff]
  %v321 = vld [vmem:[%s7 + $0x498] sm:$0xff]
  %v322 = vld [vmem:[%s7 + $0x4a0] sm:$0xff]
  %v323 = vld [vmem:[%s7 + $0x4a8] sm:$0xff]
  %v324 = vld [vmem:[%s7 + $0x4b0] sm:$0xff]
  %v325 = vld [vmem:[%s7 + $0x4b8] sm:$0xff]
  %v326 = vld [vmem:[%s7 + $0x4c0] sm:$0xff]
  %v327 = vld [vmem:[%s7 + $0x4c8] sm:$0xff]
  %v328 = vld [vmem:[%s7 + $0x4d0] sm:$0xff]
  %v329 = vld [vmem:[%s7 + $0x4d8] sm:$0xff]
  %v330 = vld [vmem:[%s7 + $0x4e0] sm:$0xff]
  %v331 = vld [vmem:[%s7 + $0x4e8] sm:$0xff]
  %v332 = vld [vmem:[%s7 + $0x4f0] sm:$0xff]
  %v333 = vld [vmem:[%s7 + $0x4f8] sm:$0xff]
  %v334 = vld [vmem:[%s7 + $0x500] sm:$0xff]
  %v335 = vld [vmem:[%s7 + $0x508] sm:$0xff]
  %v336 = vld [vmem:[%s7 + $0x510] sm:$0xff]
  %v337 = vld [vmem:[%s7 + $0x518] sm:$0xff]
  %v338 = vld [vmem:[%s7 + $0x520] sm:$0xff]
  %v339 = vld [vmem:[%s7 + $0x528] sm:$0xff]
  %v340 = vld [vmem:[%s7 + $0x530] sm:$0xff]
  %v341 = vld [vmem:[%s7 + $0x538] sm:$0xff]
  %v342 = vld [vmem:[%s7 + $0x540] sm:$0xff]
  %v343 = vld [vmem:[%s7 + $0x548] sm:$0xff]
  %v344 = vld [vmem:[%s7 + $0x550] sm:$0xff]
  %v345 = vld [vmem:[%s7 + $0x558] sm:$0xff]
  %v346 = vld [vmem:[%s7 + $0x560] sm:$0xff]
  %v347 = vld [vmem:[%s7 + $0x568] sm:$0xff]
  %v348 = vld [vmem:[%s7 + $0x570] sm:$0xff]
  %v349 = vld [vmem:[%s7 + $0x578] sm:$0xff]
  %v350 = vld [vmem:[%s7 + $0x580] sm:$0xff]
  %v351 = vld [vmem:[%s7 + $0x588] sm:$0xff]
  %v352 = vld [vmem:[%s7 + $0x590] sm:$0xff]
  %v353 = vld [vmem:[%s7 + $0x598] sm:$0xff]
  %v354 = vld [vmem:[%s7 + $0x5a0] sm:$0xff]
  %v355 = vld [vmem:[%s7 + $0x5a8] sm:$0xff]
  %v356 = vld [vmem:[%s7 + $0x5b0] sm:$0xff]
  %v357 = vld [vmem:[%s7 + $0x5b8] sm:$0xff]
  %v358 = vld [vmem:[%s7 + $0x5c0] sm:$0xff]
  %v359 = vld [vmem:[%s7 + $0x5c8] sm:$0xff]
  %v360 = vld [vmem:[%s7 + $0x5d0] sm:$0xff]
  %v361 = vld [vmem:[%s7 + $0x5d8] sm:$0xff]
  %v362 = vld [vmem:[%s7 + $0x5e0] sm:$0xff]
  %v363 = vld [vmem:[%s7 + $0x5e8] sm:$0xff]
  %v364 = vld [vmem:[%s7 + $0x5f0] sm:$0xff]
  %v365 = vld [vmem:[%s7 + $0x5f8] sm:$0xff]
  %v366 = vld [vmem:[%s7 + $0x600] sm:$0xff]
  %v367 = vld [vmem:[%s7 + $0x608] sm:$0xff]
  %v368 = vld [vmem:[%s7 + $0x610] sm:$0xff]
  %v369 = vld [vmem:[%s7 + $0x618] sm:$0xff]
  %v370 = vld [vmem:[%s7 + $0x620] sm:$0xff]
  %v371 = vld [vmem:[%s7 + $0x628] sm:$0xff]
  %v372 = vld [vmem:[%s7 + $0x630] sm:$0xff]
  %v373 = vld [vmem:[%s7 + $0x638] sm:$0xff]
  %v374 = vld [vmem:[%s7 + $0x640] sm:$0xff]
  %v375 = vld [vmem:[%s7 + $0x648] sm:$0xff]
  %v376 = vld [vmem:[%s7 + $0x650] sm:$0xff]
  %v377 = vld [vmem:[%s7 + $0x658] sm:$0xff]
  %v378 = vld [vmem:[%s7 + $0x660] sm:$0xff]
  %v379 = vld [vmem:[%s7 + $0x668] sm:$0xff]
  %v380 = vld [vmem:[%s7 + $0x670] sm:$0xff]
  %v381 = vld [vmem:[%s7 + $0x678] sm:$0xff]
  %v382 = vld [vmem:[%s7 + $0x680] sm:$0xff]
  %v383 = vld [vmem:[%s7 + $0x688] sm:$0xff]
  %v384 = vld [vmem:[%s7 + $0x690] sm:$0xff]
  %v385 = vld [vmem:[%s7 + $0x698] sm:$0xff]
  %v386 = vld [vmem:[%s7 + $0x6a0] sm:$0xff]
  %v387 = vld [vmem:[%s7 + $0x6a8] sm:$0xff]
  %v388 = vld [vmem:[%s7 + $0x6b0] sm:$0xff]
  %v389 = vld [vmem:[%s7 + $0x6b8] sm:$0xff]
  %v390 = vld [vmem:[%s7 + $0x6c0] sm:$0xff]
  %v391 = vld [vmem:[%s7 + $0x6c8] sm:$0xff]
  %v392 = vld [vmem:[%s7 + $0x6d0] sm:$0xff]
  %v393 = vld [vmem:[%s7 + $0x6d8] sm:$0xff]
  %v394 = vld [vmem:[%s7 + $0x6e0] sm:$0xff]
  %v395 = vld [vmem:[%s7 + $0x6e8] sm:$0xff]
  %v396 = vld [vmem:[%s7 + $0x6f0] sm:$0xff]
  %v397 = vld [vmem:[%s7 + $0x6f8] sm:$0xff]
  %v398 = vld [vmem:[%s7 + $0x700] sm:$0xff]
  %v399 = vld [vmem:[%s7 + $0x708] sm:$0xff]
  %v400 = vld [vmem:[%s7 + $0x710] sm:$0xff]
  %v401 = vld [vmem:[%s7 + $0x718] sm:$0xff]
  %v402 = vld [vmem:[%s7 + $0x720] sm:$0xff]
  %v403 = vld [vmem:[%s7 + $0x728] sm:$0xff]
  %v404 = vld [vmem:[%s7 + $0x730] sm:$0xff]
  %v405 = vld [vmem:[%s7 + $0x738] sm:$0xff]
  %v406 = vld [vmem:[%s7 + $0x740] sm:$0xff]
  %v407 = vld [vmem:[%s7 + $0x748] sm:$0xff]
  %v408 = vld [vmem:[%s7 + $0x750] sm:$0xff]
  %v409 = vld [vmem:[%s7 + $0x758] sm:$0xff]
  %v410 = vld [vmem:[%s7 + $0x760] sm:$0xff]
  %v411 = vld [vmem:[%s7 + $0x768] sm:$0xff]
  %v412 = vld [vmem:[%s7 + $0x770] sm:$0xff]
  %v413 = vld [vmem:[%s7 + $0x778] sm:$0xff]
  %v414 = vld [vmem:[%s7 + $0x780] sm:$0xff]
  %v415 = vld [vmem:[%s7 + $0x788] sm:$0xff]
  %v416 = vld [vmem:[%s7 + $0x790] sm:$0xff]
  %v417 = vld [vmem:[%s7 + $0x798] sm:$0xff]
  %v418 = vld [vmem:[%s7 + $0x7a0] sm:$0xff]
  %v419 = vld [vmem:[%s7 + $0x7a8] sm:$0xff]
  %v420 = vld [vmem:[%s7 + $0x7b0] sm:$0xff]
  %v421 = vld [vmem:[%s7 + $0x7b8] sm:$0xff]
  %v422 = vld [vmem:[%s7 + $0x7c0] sm:$0xff]
  %v423 = vld [vmem:[%s7 + $0x7c8] sm:$0xff]
  %v424 = vld [vmem:[%s7 + $0x7d0] sm:$0xff]
  %v425 = vld [vmem:[%s7 + $0x7d8] sm:$0xff]
  %v426 = vld [vmem:[%s7 + $0x7e0] sm:$0xff]
  %v427 = vld [vmem:[%s7 + $0x7e8] sm:$0xff]
  %v428 = vld [vmem:[%s7 + $0x7f0] sm:$0xff]
  %v429 = vld [vmem:[%s7 + $0x7f8] sm:$0xff]
  %v430 = vld [vmem:[%s8] sm:$0xff]
  %v432 = vperm.slane %v430, 0
  %v433 = vperm.slane %v430, 1
  %v434 = vperm.slane %v430, 2
  %v435 = vperm.slane %v430, 3
  %v436 = vperm.slane %v430, 4
  %v437 = vperm.slane %v430, 5
  %v438 = vperm.slane %v430, 6
  %v439 = vperm.slane %v430, 7
  %448 = vmatpush.msra.mxu0 %v294
  %449 = vmatpush.msra.mxu0 %v286
  %450 = vmatpush.msra.mxu0 %v278
  %451 = vmatpush.msra.mxu0 %v270
  %452 = vmatpush.msra.mxu0 %v262
  %453 = vmatpush.msra.mxu0 %v254
  %454 = vmatpush.msra.mxu0 %v246
  %455 = vmatpush.msra.mxu0 %v238
  %456 = vmatpush.msra.mxu0 %v230
  %457 = vmatpush.msra.mxu0 %v222
  %458 = vmatpush.msra.mxu0 %v214
  %459 = vmatpush.msra.mxu0 %v206
  %460 = vmatpush.msra.mxu0 %v198
  %461 = vmatpush.msra.mxu0 %v190
  %462 = vmatpush.msra.mxu0 %v182
  %463 = vmatpush.msra.mxu0 %v174
  %464 = vmatmul.f32.gmra.mxu0 %v172
  %v465 = vpop.f32.mrf.mxu0
  %v466 = vadd.f32 %v432, %v465
  %467 = vdwg.mxu0
  %468 = vmatpush.msra.mxu0 %v422
  %469 = vmatpush.msra.mxu0 %v414
  %470 = vmatpush.msra.mxu0 %v406
  %471 = vmatpush.msra.mxu0 %v398
  %472 = vmatpush.msra.mxu0 %v390
  %473 = vmatpush.msra.mxu0 %v382
  %474 = vmatpush.msra.mxu0 %v374
  %475 = vmatpush.msra.mxu0 %v366
  %476 = vmatpush.msra.mxu0 %v358
  %477 = vmatpush.msra.mxu0 %v350
  %478 = vmatpush.msra.mxu0 %v342
  %479 = vmatpush.msra.mxu0 %v334
  %480 = vmatpush.msra.mxu0 %v326
  %481 = vmatpush.msra.mxu0 %v318
  %482 = vmatpush.msra.mxu0 %v310
  %483 = vmatpush.msra.mxu0 %v302
  %484 = vmatmul.f32.gmra.mxu0 %v173
  %v485 = vpop.f32.mrf.mxu0
  %v486 = vadd.f32 %v466, %v485
  %487 = vdwg.mxu0
  %488 = vmatpush.msra.mxu0 %v295
  %489 = vmatpush.msra.mxu0 %v287
  %490 = vmatpush.msra.mxu0 %v279
  %491 = vmatpush.msra.mxu0 %v271
  %492 = vmatpush.msra.mxu0 %v263
  %493 = vmatpush.msra.mxu0 %v255
  %494 = vmatpush.msra.mxu0 %v247
  %495 = vmatpush.msra.mxu0 %v239
  %496 = vmatpush.msra.mxu0 %v231
  %497 = vmatpush.msra.mxu0 %v223
  %498 = vmatpush.msra.mxu0 %v215
  %499 = vmatpush.msra.mxu0 %v207
  %500 = vmatpush.msra.mxu0 %v199
  %501 = vmatpush.msra.mxu0 %v191
  %502 = vmatpush.msra.mxu0 %v183
  %503 = vmatpush.msra.mxu0 %v175
  %504 = vmatmul.f32.gmra.mxu0 %v172
  %v505 = vpop.f32.mrf.mxu0
  %v506 = vadd.f32 %v433, %v505
  %507 = vdwg.mxu0
  %508 = vmatpush.msra.mxu0 %v423
  %509 = vmatpush.msra.mxu0 %v415
  %510 = vmatpush.msra.mxu0 %v407
  %511 = vmatpush.msra.mxu0 %v399
  %512 = vmatpush.msra.mxu0 %v391
  %513 = vmatpush.msra.mxu0 %v383
  %514 = vmatpush.msra.mxu0 %v375
  %515 = vmatpush.msra.mxu0 %v367
  %516 = vmatpush.msra.mxu0 %v359
  %517 = vmatpush.msra.mxu0 %v351
  %518 = vmatpush.msra.mxu0 %v343
  %519 = vmatpush.msra.mxu0 %v335
  %520 = vmatpush.msra.mxu0 %v327
  %521 = vmatpush.msra.mxu0 %v319
  %522 = vmatpush.msra.mxu0 %v311
  %523 = vmatpush.msra.mxu0 %v303
  %524 = vmatmul.f32.gmra.mxu0 %v173
  %v525 = vpop.f32.mrf.mxu0
  %v526 = vadd.f32 %v506, %v525
  %527 = vdwg.mxu0
  %528 = vmatpush.msra.mxu0 %v296
  %529 = vmatpush.msra.mxu0 %v288
  %530 = vmatpush.msra.mxu0 %v280
  %531 = vmatpush.msra.mxu0 %v272
  %532 = vmatpush.msra.mxu0 %v264
  %533 = vmatpush.msra.mxu0 %v256
  %534 = vmatpush.msra.mxu0 %v248
  %535 = vmatpush.msra.mxu0 %v240
  %536 = vmatpush.msra.mxu0 %v232
  %537 = vmatpush.msra.mxu0 %v224
  %538 = vmatpush.msra.mxu0 %v216
  %539 = vmatpush.msra.mxu0 %v208
  %540 = vmatpush.msra.mxu0 %v200
  %541 = vmatpush.msra.mxu0 %v192
  %542 = vmatpush.msra.mxu0 %v184
  %543 = vmatpush.msra.mxu0 %v176
  %544 = vmatmul.f32.gmra.mxu0 %v172
  %v545 = vpop.f32.mrf.mxu0
  %v546 = vadd.f32 %v434, %v545
  %547 = vdwg.mxu0
  %548 = vmatpush.msra.mxu0 %v424
  %549 = vmatpush.msra.mxu0 %v416
  %550 = vmatpush.msra.mxu0 %v408
  %551 = vmatpush.msra.mxu0 %v400
  %552 = vmatpush.msra.mxu0 %v392
  %553 = vmatpush.msra.mxu0 %v384
  %554 = vmatpush.msra.mxu0 %v376
  %555 = vmatpush.msra.mxu0 %v368
  %556 = vmatpush.msra.mxu0 %v360
  %557 = vmatpush.msra.mxu0 %v352
  %558 = vmatpush.msra.mxu0 %v344
  %559 = vmatpush.msra.mxu0 %v336
  %560 = vmatpush.msra.mxu0 %v328
  %561 = vmatpush.msra.mxu0 %v320
  %562 = vmatpush.msra.mxu0 %v312
  %563 = vmatpush.msra.mxu0 %v304
  %564 = vmatmul.f32.gmra.mxu0 %v173
  %v565 = vpop.f32.mrf.mxu0
  %v566 = vadd.f32 %v546, %v565
  %567 = vdwg.mxu0
  %568 = vmatpush.msra.mxu0 %v297
  %569 = vmatpush.msra.mxu0 %v289
  %570 = vmatpush.msra.mxu0 %v281
  %571 = vmatpush.msra.mxu0 %v273
  %572 = vmatpush.msra.mxu0 %v265
  %573 = vmatpush.msra.mxu0 %v257
  %574 = vmatpush.msra.mxu0 %v249
  %575 = vmatpush.msra.mxu0 %v241
  %576 = vmatpush.msra.mxu0 %v233
  %577 = vmatpush.msra.mxu0 %v225
  %578 = vmatpush.msra.mxu0 %v217
  %579 = vmatpush.msra.mxu0 %v209
  %580 = vmatpush.msra.mxu0 %v201
  %581 = vmatpush.msra.mxu0 %v193
  %582 = vmatpush.msra.mxu0 %v185
  %583 = vmatpush.msra.mxu0 %v177
  %584 = vmatmul.f32.gmra.mxu0 %v172
  %v585 = vpop.f32.mrf.mxu0
  %v586 = vadd.f32 %v435, %v585
  %587 = vdwg.mxu0
  %588 = vmatpush.msra.mxu0 %v425
  %589 = vmatpush.msra.mxu0 %v417
  %590 = vmatpush.msra.mxu0 %v409
  %591 = vmatpush.msra.mxu0 %v401
  %592 = vmatpush.msra.mxu0 %v393
  %593 = vmatpush.msra.mxu0 %v385
  %594 = vmatpush.msra.mxu0 %v377
  %595 = vmatpush.msra.mxu0 %v369
  %596 = vmatpush.msra.mxu0 %v361
  %597 = vmatpush.msra.mxu0 %v353
  %598 = vmatpush.msra.mxu0 %v345
  %599 = vmatpush.msra.mxu0 %v337
  %600 = vmatpush.msra.mxu0 %v329
  %601 = vmatpush.msra.mxu0 %v321
  %602 = vmatpush.msra.mxu0 %v313
  %603 = vmatpush.msra.mxu0 %v305
  %604 = vmatmul.f32.gmra.mxu0 %v173
  %v605 = vpop.f32.mrf.mxu0
  %v606 = vadd.f32 %v586, %v605
  %607 = vdwg.mxu0
  %608 = vmatpush.msra.mxu0 %v298
  %609 = vmatpush.msra.mxu0 %v290
  %610 = vmatpush.msra.mxu0 %v282
  %611 = vmatpush.msra.mxu0 %v274
  %612 = vmatpush.msra.mxu0 %v266
  %613 = vmatpush.msra.mxu0 %v258
  %614 = vmatpush.msra.mxu0 %v250
  %615 = vmatpush.msra.mxu0 %v242
  %616 = vmatpush.msra.mxu0 %v234
  %617 = vmatpush.msra.mxu0 %v226
  %618 = vmatpush.msra.mxu0 %v218
  %619 = vmatpush.msra.mxu0 %v210
  %620 = vmatpush.msra.mxu0 %v202
  %621 = vmatpush.msra.mxu0 %v194
  %622 = vmatpush.msra.mxu0 %v186
  %623 = vmatpush.msra.mxu0 %v178
  %624 = vmatmul.f32.gmra.mxu0 %v172
  %v625 = vpop.f32.mrf.mxu0
  %v626 = vadd.f32 %v436, %v625
  %627 = vdwg.mxu0
  %628 = vmatpush.msra.mxu0 %v426
  %629 = vmatpush.msra.mxu0 %v418
  %630 = vmatpush.msra.mxu0 %v410
  %631 = vmatpush.msra.mxu0 %v402
  %632 = vmatpush.msra.mxu0 %v394
  %633 = vmatpush.msra.mxu0 %v386
  %634 = vmatpush.msra.mxu0 %v378
  %635 = vmatpush.msra.mxu0 %v370
  %636 = vmatpush.msra.mxu0 %v362
  %637 = vmatpush.msra.mxu0 %v354
  %638 = vmatpush.msra.mxu0 %v346
  %639 = vmatpush.msra.mxu0 %v338
  %640 = vmatpush.msra.mxu0 %v330
  %641 = vmatpush.msra.mxu0 %v322
  %642 = vmatpush.msra.mxu0 %v314
  %643 = vmatpush.msra.mxu0 %v306
  %644 = vmatmul.f32.gmra.mxu0 %v173
  %v645 = vpop.f32.mrf.mxu0
  %v646 = vadd.f32 %v626, %v645
  %647 = vdwg.mxu0
  %648 = vmatpush.msra.mxu0 %v299
  %649 = vmatpush.msra.mxu0 %v291
  %650 = vmatpush.msra.mxu0 %v283
  %651 = vmatpush.msra.mxu0 %v275
  %652 = vmatpush.msra.mxu0 %v267
  %653 = vmatpush.msra.mxu0 %v259
  %654 = vmatpush.msra.mxu0 %v251
  %655 = vmatpush.msra.mxu0 %v243
  %656 = vmatpush.msra.mxu0 %v235
  %657 = vmatpush.msra.mxu0 %v227
  %658 = vmatpush.msra.mxu0 %v219
  %659 = vmatpush.msra.mxu0 %v211
  %660 = vmatpush.msra.mxu0 %v203
  %661 = vmatpush.msra.mxu0 %v195
  %662 = vmatpush.msra.mxu0 %v187
  %663 = vmatpush.msra.mxu0 %v179
  %664 = vmatmul.f32.gmra.mxu0 %v172
  %v665 = vpop.f32.mrf.mxu0
  %v666 = vadd.f32 %v437, %v665
  %667 = vdwg.mxu0
  %668 = vmatpush.msra.mxu0 %v427
  %669 = vmatpush.msra.mxu0 %v419
  %670 = vmatpush.msra.mxu0 %v411
  %671 = vmatpush.msra.mxu0 %v403
  %672 = vmatpush.msra.mxu0 %v395
  %673 = vmatpush.msra.mxu0 %v387
  %674 = vmatpush.msra.mxu0 %v379
  %675 = vmatpush.msra.mxu0 %v371
  %676 = vmatpush.msra.mxu0 %v363
  %677 = vmatpush.msra.mxu0 %v355
  %678 = vmatpush.msra.mxu0 %v347
  %679 = vmatpush.msra.mxu0 %v339
  %680 = vmatpush.msra.mxu0 %v331
  %681 = vmatpush.msra.mxu0 %v323
  %682 = vmatpush.msra.mxu0 %v315
  %683 = vmatpush.msra.mxu0 %v307
  %684 = vmatmul.f32.gmra.mxu0 %v173
  %v685 = vpop.f32.mrf.mxu0
  %v686 = vadd.f32 %v666, %v685
  %687 = vdwg.mxu0
  %688 = vmatpush.msra.mxu0 %v300
  %689 = vmatpush.msra.mxu0 %v292
  %690 = vmatpush.msra.mxu0 %v284
  %691 = vmatpush.msra.mxu0 %v276
  %692 = vmatpush.msra.mxu0 %v268
  %693 = vmatpush.msra.mxu0 %v260
  %694 = vmatpush.msra.mxu0 %v252
  %695 = vmatpush.msra.mxu0 %v244
  %696 = vmatpush.msra.mxu0 %v236
  %697 = vmatpush.msra.mxu0 %v228
  %698 = vmatpush.msra.mxu0 %v220
  %699 = vmatpush.msra.mxu0 %v212
  %700 = vmatpush.msra.mxu0 %v204
  %701 = vmatpush.msra.mxu0 %v196
  %702 = vmatpush.msra.mxu0 %v188
  %703 = vmatpush.msra.mxu0 %v180
  %704 = vmatmul.f32.gmra.mxu0 %v172
  %v705 = vpop.f32.mrf.mxu0
  %v706 = vadd.f32 %v438, %v705
  %707 = vdwg.mxu0
  %708 = vmatpush.msra.mxu0 %v428
  %709 = vmatpush.msra.mxu0 %v420
  %710 = vmatpush.msra.mxu0 %v412
  %711 = vmatpush.msra.mxu0 %v404
  %712 = vmatpush.msra.mxu0 %v396
  %713 = vmatpush.msra.mxu0 %v388
  %714 = vmatpush.msra.mxu0 %v380
  %715 = vmatpush.msra.mxu0 %v372
  %716 = vmatpush.msra.mxu0 %v364
  %717 = vmatpush.msra.mxu0 %v356
  %718 = vmatpush.msra.mxu0 %v348
  %719 = vmatpush.msra.mxu0 %v340
  %720 = vmatpush.msra.mxu0 %v332
  %721 = vmatpush.msra.mxu0 %v324
  %722 = vmatpush.msra.mxu0 %v316
  %723 = vmatpush.msra.mxu0 %v308
  %724 = vmatmul.f32.gmra.mxu0 %v173
  %v725 = vpop.f32.mrf.mxu0
  %v726 = vadd.f32 %v706, %v725
  %727 = vdwg.mxu0
  %728 = vmatpush.msra.mxu0 %v301
  %729 = vmatpush.msra.mxu0 %v293
  %730 = vmatpush.msra.mxu0 %v285
  %731 = vmatpush.msra.mxu0 %v277
  %732 = vmatpush.msra.mxu0 %v269
  %733 = vmatpush.msra.mxu0 %v261
  %734 = vmatpush.msra.mxu0 %v253
  %735 = vmatpush.msra.mxu0 %v245
  %736 = vmatpush.msra.mxu0 %v237
  %737 = vmatpush.msra.mxu0 %v229
  %738 = vmatpush.msra.mxu0 %v221
  %739 = vmatpush.msra.mxu0 %v213
  %740 = vmatpush.msra.mxu0 %v205
  %741 = vmatpush.msra.mxu0 %v197
  %742 = vmatpush.msra.mxu0 %v189
  %743 = vmatpush.msra.mxu0 %v181
  %744 = vmatmul.f32.gmra.mxu0 %v172
  %v745 = vpop.f32.mrf.mxu0
  %v746 = vadd.f32 %v439, %v745
  %747 = vdwg.mxu0
  %748 = vmatpush.msra.mxu0 %v429
  %749 = vmatpush.msra.mxu0 %v421
  %750 = vmatpush.msra.mxu0 %v413
  %751 = vmatpush.msra.mxu0 %v405
  %752 = vmatpush.msra.mxu0 %v397
  %753 = vmatpush.msra.mxu0 %v389
  %754 = vmatpush.msra.mxu0 %v381
  %755 = vmatpush.msra.mxu0 %v373
  %756 = vmatpush.msra.mxu0 %v365
  %757 = vmatpush.msra.mxu0 %v357
  %758 = vmatpush.msra.mxu0 %v349
  %759 = vmatpush.msra.mxu0 %v341
  %760 = vmatpush.msra.mxu0 %v333
  %761 = vmatpush.msra.mxu0 %v325
  %762 = vmatpush.msra.mxu0 %v317
  %763 = vmatpush.msra.mxu0 %v309
  %764 = vmatmul.f32.gmra.mxu0 %v173
  %v765 = vpop.f32.mrf.mxu0
  %v766 = vadd.f32 %v746, %v765
  %767 = vdwg.mxu0
  %v768 = vmax.f32 %v486, 0.0
  %v769 = vmax.f32 %v526, 0.0
  %v770 = vmax.f32 %v566, 0.0
  %v771 = vmax.f32 %v606, 0.0
  %v772 = vmax.f32 %v646, 0.0
  %v773 = vmax.f32 %v686, 0.0
  %v774 = vmax.f32 %v726, 0.0
  %v775 = vmax.f32 %v766, 0.0
  %v776 = vld [vmem:[%s9] sm:$0xff]
  %v777 = vld [vmem:[%s9 + $0x8] sm:$0xff]
  %v778 = vld [vmem:[%s9 + $0x10] sm:$0xff]
  %v779 = vld [vmem:[%s9 + $0x18] sm:$0xff]
  %v780 = vld [vmem:[%s9 + $0x20] sm:$0xff]
  %v781 = vld [vmem:[%s9 + $0x28] sm:$0xff]
  %v782 = vld [vmem:[%s9 + $0x30] sm:$0xff]
  %v783 = vld [vmem:[%s9 + $0x38] sm:$0xff]
  %v784 = vld [vmem:[%s9 + $0x40] sm:$0xff]
  %v785 = vld [vmem:[%s9 + $0x48] sm:$0xff]
  %v786 = vld [vmem:[%s9 + $0x50] sm:$0xff]
  %v787 = vld [vmem:[%s9 + $0x58] sm:$0xff]
  %v788 = vld [vmem:[%s9 + $0x60] sm:$0xff]
  %v789 = vld [vmem:[%s9 + $0x68] sm:$0xff]
  %v790 = vld [vmem:[%s9 + $0x70] sm:$0xff]
  %v791 = vld [vmem:[%s9 + $0x78] sm:$0xff]
  %v792 = vld [vmem:[%s9 + $0x80] sm:$0xff]
  %v793 = vld [vmem:[%s9 + $0x88] sm:$0xff]
  %v794 = vld [vmem:[%s9 + $0x90] sm:$0xff]
  %v795 = vld [vmem:[%s9 + $0x98] sm:$0xff]
  %v796 = vld [vmem:[%s9 + $0xa0] sm:$0xff]
  %v797 = vld [vmem:[%s9 + $0xa8] sm:$0xff]
  %v798 = vld [vmem:[%s9 + $0xb0] sm:$0xff]
  %v799 = vld [vmem:[%s9 + $0xb8] sm:$0xff]
  %v800 = vld [vmem:[%s9 + $0xc0] sm:$0xff]
  %v801 = vld [vmem:[%s9 + $0xc8] sm:$0xff]
  %v802 = vld [vmem:[%s9 + $0xd0] sm:$0xff]
  %v803 = vld [vmem:[%s9 + $0xd8] sm:$0xff]
  %v804 = vld [vmem:[%s9 + $0xe0] sm:$0xff]
  %v805 = vld [vmem:[%s9 + $0xe8] sm:$0xff]
  %v806 = vld [vmem:[%s9 + $0xf0] sm:$0xff]
  %v807 = vld [vmem:[%s9 + $0xf8] sm:$0xff]
  %v808 = vld [vmem:[%s9 + $0x100] sm:$0xff]
  %v809 = vld [vmem:[%s9 + $0x108] sm:$0xff]
  %v810 = vld [vmem:[%s9 + $0x110] sm:$0xff]
  %v811 = vld [vmem:[%s9 + $0x118] sm:$0xff]
  %v812 = vld [vmem:[%s9 + $0x120] sm:$0xff]
  %v813 = vld [vmem:[%s9 + $0x128] sm:$0xff]
  %v814 = vld [vmem:[%s9 + $0x130] sm:$0xff]
  %v815 = vld [vmem:[%s9 + $0x138] sm:$0xff]
  %v816 = vld [vmem:[%s9 + $0x140] sm:$0xff]
  %v817 = vld [vmem:[%s9 + $0x148] sm:$0xff]
  %v818 = vld [vmem:[%s9 + $0x150] sm:$0xff]
  %v819 = vld [vmem:[%s9 + $0x158] sm:$0xff]
  %v820 = vld [vmem:[%s9 + $0x160] sm:$0xff]
  %v821 = vld [vmem:[%s9 + $0x168] sm:$0xff]
  %v822 = vld [vmem:[%s9 + $0x170] sm:$0xff]
  %v823 = vld [vmem:[%s9 + $0x178] sm:$0xff]
  %v824 = vld [vmem:[%s9 + $0x180] sm:$0xff]
  %v825 = vld [vmem:[%s9 + $0x188] sm:$0xff]
  %v826 = vld [vmem:[%s9 + $0x190] sm:$0xff]
  %v827 = vld [vmem:[%s9 + $0x198] sm:$0xff]
  %v828 = vld [vmem:[%s9 + $0x1a0] sm:$0xff]
  %v829 = vld [vmem:[%s9 + $0x1a8] sm:$0xff]
  %v830 = vld [vmem:[%s9 + $0x1b0] sm:$0xff]
  %v831 = vld [vmem:[%s9 + $0x1b8] sm:$0xff]
  %v832 = vld [vmem:[%s9 + $0x1c0] sm:$0xff]
  %v833 = vld [vmem:[%s9 + $0x1c8] sm:$0xff]
  %v834 = vld [vmem:[%s9 + $0x1d0] sm:$0xff]
  %v835 = vld [vmem:[%s9 + $0x1d8] sm:$0xff]
  %v836 = vld [vmem:[%s9 + $0x1e0] sm:$0xff]
  %v837 = vld [vmem:[%s9 + $0x1e8] sm:$0xff]
  %v838 = vld [vmem:[%s9 + $0x1f0] sm:$0xff]
  %v839 = vld [vmem:[%s9 + $0x1f8] sm:$0xff]
  %v840 = vld [vmem:[%s9 + $0x200] sm:$0xff]
  %v841 = vld [vmem:[%s9 + $0x208] sm:$0xff]
  %v842 = vld [vmem:[%s9 + $0x210] sm:$0xff]
  %v843 = vld [vmem:[%s9 + $0x218] sm:$0xff]
  %v844 = vld [vmem:[%s9 + $0x220] sm:$0xff]
  %v845 = vld [vmem:[%s9 + $0x228] sm:$0xff]
  %v846 = vld [vmem:[%s9 + $0x230] sm:$0xff]
  %v847 = vld [vmem:[%s9 + $0x238] sm:$0xff]
  %v848 = vld [vmem:[%s9 + $0x240] sm:$0xff]
  %v849 = vld [vmem:[%s9 + $0x248] sm:$0xff]
  %v850 = vld [vmem:[%s9 + $0x250] sm:$0xff]
  %v851 = vld [vmem:[%s9 + $0x258] sm:$0xff]
  %v852 = vld [vmem:[%s9 + $0x260] sm:$0xff]
  %v853 = vld [vmem:[%s9 + $0x268] sm:$0xff]
  %v854 = vld [vmem:[%s9 + $0x270] sm:$0xff]
  %v855 = vld [vmem:[%s9 + $0x278] sm:$0xff]
  %v856 = vld [vmem:[%s9 + $0x280] sm:$0xff]
  %v857 = vld [vmem:[%s9 + $0x288] sm:$0xff]
  %v858 = vld [vmem:[%s9 + $0x290] sm:$0xff]
  %v859 = vld [vmem:[%s9 + $0x298] sm:$0xff]
  %v860 = vld [vmem:[%s9 + $0x2a0] sm:$0xff]
  %v861 = vld [vmem:[%s9 + $0x2a8] sm:$0xff]
  %v862 = vld [vmem:[%s9 + $0x2b0] sm:$0xff]
  %v863 = vld [vmem:[%s9 + $0x2b8] sm:$0xff]
  %v864 = vld [vmem:[%s9 + $0x2c0] sm:$0xff]
  %v865 = vld [vmem:[%s9 + $0x2c8] sm:$0xff]
  %v866 = vld [vmem:[%s9 + $0x2d0] sm:$0xff]
  %v867 = vld [vmem:[%s9 + $0x2d8] sm:$0xff]
  %v868 = vld [vmem:[%s9 + $0x2e0] sm:$0xff]
  %v869 = vld [vmem:[%s9 + $0x2e8] sm:$0xff]
  %v870 = vld [vmem:[%s9 + $0x2f0] sm:$0xff]
  %v871 = vld [vmem:[%s9 + $0x2f8] sm:$0xff]
  %v872 = vld [vmem:[%s9 + $0x300] sm:$0xff]
  %v873 = vld [vmem:[%s9 + $0x308] sm:$0xff]
  %v874 = vld [vmem:[%s9 + $0x310] sm:$0xff]
  %v875 = vld [vmem:[%s9 + $0x318] sm:$0xff]
  %v876 = vld [vmem:[%s9 + $0x320] sm:$0xff]
  %v877 = vld [vmem:[%s9 + $0x328] sm:$0xff]
  %v878 = vld [vmem:[%s9 + $0x330] sm:$0xff]
  %v879 = vld [vmem:[%s9 + $0x338] sm:$0xff]
  %v880 = vld [vmem:[%s9 + $0x340] sm:$0xff]
  %v881 = vld [vmem:[%s9 + $0x348] sm:$0xff]
  %v882 = vld [vmem:[%s9 + $0x350] sm:$0xff]
  %v883 = vld [vmem:[%s9 + $0x358] sm:$0xff]
  %v884 = vld [vmem:[%s9 + $0x360] sm:$0xff]
  %v885 = vld [vmem:[%s9 + $0x368] sm:$0xff]
  %v886 = vld [vmem:[%s9 + $0x370] sm:$0xff]
  %v887 = vld [vmem:[%s9 + $0x378] sm:$0xff]
  %v888 = vld [vmem:[%s9 + $0x380] sm:$0xff]
  %v889 = vld [vmem:[%s9 + $0x388] sm:$0xff]
  %v890 = vld [vmem:[%s9 + $0x390] sm:$0xff]
  %v891 = vld [vmem:[%s9 + $0x398] sm:$0xff]
  %v892 = vld [vmem:[%s9 + $0x3a0] sm:$0xff]
  %v893 = vld [vmem:[%s9 + $0x3a8] sm:$0xff]
  %v894 = vld [vmem:[%s9 + $0x3b0] sm:$0xff]
  %v895 = vld [vmem:[%s9 + $0x3b8] sm:$0xff]
  %v896 = vld [vmem:[%s9 + $0x3c0] sm:$0xff]
  %v897 = vld [vmem:[%s9 + $0x3c8] sm:$0xff]
  %v898 = vld [vmem:[%s9 + $0x3d0] sm:$0xff]
  %v899 = vld [vmem:[%s9 + $0x3d8] sm:$0xff]
  %v900 = vld [vmem:[%s9 + $0x3e0] sm:$0xff]
  %v901 = vld [vmem:[%s9 + $0x3e8] sm:$0xff]
  %v902 = vld [vmem:[%s9 + $0x3f0] sm:$0xff]
  %v903 = vld [vmem:[%s9 + $0x3f8] sm:$0xff]
  %v904 = vld [vmem:[%s9 + $0x400] sm:$0xff]
  %v905 = vld [vmem:[%s9 + $0x408] sm:$0xff]
  %v906 = vld [vmem:[%s9 + $0x410] sm:$0xff]
  %v907 = vld [vmem:[%s9 + $0x418] sm:$0xff]
  %v908 = vld [vmem:[%s9 + $0x420] sm:$0xff]
  %v909 = vld [vmem:[%s9 + $0x428] sm:$0xff]
  %v910 = vld [vmem:[%s9 + $0x430] sm:$0xff]
  %v911 = vld [vmem:[%s9 + $0x438] sm:$0xff]
  %v912 = vld [vmem:[%s9 + $0x440] sm:$0xff]
  %v913 = vld [vmem:[%s9 + $0x448] sm:$0xff]
  %v914 = vld [vmem:[%s9 + $0x450] sm:$0xff]
  %v915 = vld [vmem:[%s9 + $0x458] sm:$0xff]
  %v916 = vld [vmem:[%s9 + $0x460] sm:$0xff]
  %v917 = vld [vmem:[%s9 + $0x468] sm:$0xff]
  %v918 = vld [vmem:[%s9 + $0x470] sm:$0xff]
  %v919 = vld [vmem:[%s9 + $0x478] sm:$0xff]
  %v920 = vld [vmem:[%s9 + $0x480] sm:$0xff]
  %v921 = vld [vmem:[%s9 + $0x488] sm:$0xff]
  %v922 = vld [vmem:[%s9 + $0x490] sm:$0xff]
  %v923 = vld [vmem:[%s9 + $0x498] sm:$0xff]
  %v924 = vld [vmem:[%s9 + $0x4a0] sm:$0xff]
  %v925 = vld [vmem:[%s9 + $0x4a8] sm:$0xff]
  %v926 = vld [vmem:[%s9 + $0x4b0] sm:$0xff]
  %v927 = vld [vmem:[%s9 + $0x4b8] sm:$0xff]
  %v928 = vld [vmem:[%s9 + $0x4c0] sm:$0xff]
  %v929 = vld [vmem:[%s9 + $0x4c8] sm:$0xff]
  %v930 = vld [vmem:[%s9 + $0x4d0] sm:$0xff]
  %v931 = vld [vmem:[%s9 + $0x4d8] sm:$0xff]
  %v932 = vld [vmem:[%s9 + $0x4e0] sm:$0xff]
  %v933 = vld [vmem:[%s9 + $0x4e8] sm:$0xff]
  %v934 = vld [vmem:[%s9 + $0x4f0] sm:$0xff]
  %v935 = vld [vmem:[%s9 + $0x4f8] sm:$0xff]
  %v936 = vld [vmem:[%s9 + $0x500] sm:$0xff]
  %v937 = vld [vmem:[%s9 + $0x508] sm:$0xff]
  %v938 = vld [vmem:[%s9 + $0x510] sm:$0xff]
  %v939 = vld [vmem:[%s9 + $0x518] sm:$0xff]
  %v940 = vld [vmem:[%s9 + $0x520] sm:$0xff]
  %v941 = vld [vmem:[%s9 + $0x528] sm:$0xff]
  %v942 = vld [vmem:[%s9 + $0x530] sm:$0xff]
  %v943 = vld [vmem:[%s9 + $0x538] sm:$0xff]
  %v944 = vld [vmem:[%s9 + $0x540] sm:$0xff]
  %v945 = vld [vmem:[%s9 + $0x548] sm:$0xff]
  %v946 = vld [vmem:[%s9 + $0x550] sm:$0xff]
  %v947 = vld [vmem:[%s9 + $0x558] sm:$0xff]
  %v948 = vld [vmem:[%s9 + $0x560] sm:$0xff]
  %v949 = vld [vmem:[%s9 + $0x568] sm:$0xff]
  %v950 = vld [vmem:[%s9 + $0x570] sm:$0xff]
  %v951 = vld [vmem:[%s9 + $0x578] sm:$0xff]
  %v952 = vld [vmem:[%s9 + $0x580] sm:$0xff]
  %v953 = vld [vmem:[%s9 + $0x588] sm:$0xff]
  %v954 = vld [vmem:[%s9 + $0x590] sm:$0xff]
  %v955 = vld [vmem:[%s9 + $0x598] sm:$0xff]
  %v956 = vld [vmem:[%s9 + $0x5a0] sm:$0xff]
  %v957 = vld [vmem:[%s9 + $0x5a8] sm:$0xff]
  %v958 = vld [vmem:[%s9 + $0x5b0] sm:$0xff]
  %v959 = vld [vmem:[%s9 + $0x5b8] sm:$0xff]
  %v960 = vld [vmem:[%s9 + $0x5c0] sm:$0xff]
  %v961 = vld [vmem:[%s9 + $0x5c8] sm:$0xff]
  %v962 = vld [vmem:[%s9 + $0x5d0] sm:$0xff]
  %v963 = vld [vmem:[%s9 + $0x5d8] sm:$0xff]
  %v964 = vld [vmem:[%s9 + $0x5e0] sm:$0xff]
  %v965 = vld [vmem:[%s9 + $0x5e8] sm:$0xff]
  %v966 = vld [vmem:[%s9 + $0x5f0] sm:$0xff]
  %v967 = vld [vmem:[%s9 + $0x5f8] sm:$0xff]
  %v968 = vld [vmem:[%s9 + $0x600] sm:$0xff]
  %v969 = vld [vmem:[%s9 + $0x608] sm:$0xff]
  %v970 = vld [vmem:[%s9 + $0x610] sm:$0xff]
  %v971 = vld [vmem:[%s9 + $0x618] sm:$0xff]
  %v972 = vld [vmem:[%s9 + $0x620] sm:$0xff]
  %v973 = vld [vmem:[%s9 + $0x628] sm:$0xff]
  %v974 = vld [vmem:[%s9 + $0x630] sm:$0xff]
  %v975 = vld [vmem:[%s9 + $0x638] sm:$0xff]
  %v976 = vld [vmem:[%s9 + $0x640] sm:$0xff]
  %v977 = vld [vmem:[%s9 + $0x648] sm:$0xff]
  %v978 = vld [vmem:[%s9 + $0x650] sm:$0xff]
  %v979 = vld [vmem:[%s9 + $0x658] sm:$0xff]
  %v980 = vld [vmem:[%s9 + $0x660] sm:$0xff]
  %v981 = vld [vmem:[%s9 + $0x668] sm:$0xff]
  %v982 = vld [vmem:[%s9 + $0x670] sm:$0xff]
  %v983 = vld [vmem:[%s9 + $0x678] sm:$0xff]
  %v984 = vld [vmem:[%s9 + $0x680] sm:$0xff]
  %v985 = vld [vmem:[%s9 + $0x688] sm:$0xff]
  %v986 = vld [vmem:[%s9 + $0x690] sm:$0xff]
  %v987 = vld [vmem:[%s9 + $0x698] sm:$0xff]
  %v988 = vld [vmem:[%s9 + $0x6a0] sm:$0xff]
  %v989 = vld [vmem:[%s9 + $0x6a8] sm:$0xff]
  %v990 = vld [vmem:[%s9 + $0x6b0] sm:$0xff]
  %v991 = vld [vmem:[%s9 + $0x6b8] sm:$0xff]
  %v992 = vld [vmem:[%s9 + $0x6c0] sm:$0xff]
  %v993 = vld [vmem:[%s9 + $0x6c8] sm:$0xff]
  %v994 = vld [vmem:[%s9 + $0x6d0] sm:$0xff]
  %v995 = vld [vmem:[%s9 + $0x6d8] sm:$0xff]
  %v996 = vld [vmem:[%s9 + $0x6e0] sm:$0xff]
  %v997 = vld [vmem:[%s9 + $0x6e8] sm:$0xff]
  %v998 = vld [vmem:[%s9 + $0x6f0] sm:$0xff]
  %v999 = vld [vmem:[%s9 + $0x6f8] sm:$0xff]
  %v1000 = vld [vmem:[%s9 + $0x700] sm:$0xff]
  %v1001 = vld [vmem:[%s9 + $0x708] sm:$0xff]
  %v1002 = vld [vmem:[%s9 + $0x710] sm:$0xff]
  %v1003 = vld [vmem:[%s9 + $0x718] sm:$0xff]
  %v1004 = vld [vmem:[%s9 + $0x720] sm:$0xff]
  %v1005 = vld [vmem:[%s9 + $0x728] sm:$0xff]
  %v1006 = vld [vmem:[%s9 + $0x730] sm:$0xff]
  %v1007 = vld [vmem:[%s9 + $0x738] sm:$0xff]
  %v1008 = vld [vmem:[%s9 + $0x740] sm:$0xff]
  %v1009 = vld [vmem:[%s9 + $0x748] sm:$0xff]
  %v1010 = vld [vmem:[%s9 + $0x750] sm:$0xff]
  %v1011 = vld [vmem:[%s9 + $0x758] sm:$0xff]
  %v1012 = vld [vmem:[%s9 + $0x760] sm:$0xff]
  %v1013 = vld [vmem:[%s9 + $0x768] sm:$0xff]
  %v1014 = vld [vmem:[%s9 + $0x770] sm:$0xff]
  %v1015 = vld [vmem:[%s9 + $0x778] sm:$0xff]
  %v1016 = vld [vmem:[%s9 + $0x780] sm:$0xff]
  %v1017 = vld [vmem:[%s9 + $0x788] sm:$0xff]
  %v1018 = vld [vmem:[%s9 + $0x790] sm:$0xff]
  %v1019 = vld [vmem:[%s9 + $0x798] sm:$0xff]
  %v1020 = vld [vmem:[%s9 + $0x7a0] sm:$0xff]
  %v1021 = vld [vmem:[%s9 + $0x7a8] sm:$0xff]
  %v1022 = vld [vmem:[%s9 + $0x7b0] sm:$0xff]
  %v1023 = vld [vmem:[%s9 + $0x7b8] sm:$0xff]
  %v1024 = vld [vmem:[%s9 + $0x7c0] sm:$0xff]
  %v1025 = vld [vmem:[%s9 + $0x7c8] sm:$0xff]
  %v1026 = vld [vmem:[%s9 + $0x7d0] sm:$0xff]
  %v1027 = vld [vmem:[%s9 + $0x7d8] sm:$0xff]
  %v1028 = vld [vmem:[%s9 + $0x7e0] sm:$0xff]
  %v1029 = vld [vmem:[%s9 + $0x7e8] sm:$0xff]
  %v1030 = vld [vmem:[%s9 + $0x7f0] sm:$0xff]
  %v1031 = vld [vmem:[%s9 + $0x7f8] sm:$0xff]
  %v1032 = vld [vmem:[%s9 + $0x800] sm:$0xff]
  %v1033 = vld [vmem:[%s9 + $0x808] sm:$0xff]
  %v1034 = vld [vmem:[%s9 + $0x810] sm:$0xff]
  %v1035 = vld [vmem:[%s9 + $0x818] sm:$0xff]
  %v1036 = vld [vmem:[%s9 + $0x820] sm:$0xff]
  %v1037 = vld [vmem:[%s9 + $0x828] sm:$0xff]
  %v1038 = vld [vmem:[%s9 + $0x830] sm:$0xff]
  %v1039 = vld [vmem:[%s9 + $0x838] sm:$0xff]
  %v1040 = vld [vmem:[%s9 + $0x840] sm:$0xff]
  %v1041 = vld [vmem:[%s9 + $0x848] sm:$0xff]
  %v1042 = vld [vmem:[%s9 + $0x850] sm:$0xff]
  %v1043 = vld [vmem:[%s9 + $0x858] sm:$0xff]
  %v1044 = vld [vmem:[%s9 + $0x860] sm:$0xff]
  %v1045 = vld [vmem:[%s9 + $0x868] sm:$0xff]
  %v1046 = vld [vmem:[%s9 + $0x870] sm:$0xff]
  %v1047 = vld [vmem:[%s9 + $0x878] sm:$0xff]
  %v1048 = vld [vmem:[%s9 + $0x880] sm:$0xff]
  %v1049 = vld [vmem:[%s9 + $0x888] sm:$0xff]
  %v1050 = vld [vmem:[%s9 + $0x890] sm:$0xff]
  %v1051 = vld [vmem:[%s9 + $0x898] sm:$0xff]
  %v1052 = vld [vmem:[%s9 + $0x8a0] sm:$0xff]
  %v1053 = vld [vmem:[%s9 + $0x8a8] sm:$0xff]
  %v1054 = vld [vmem:[%s9 + $0x8b0] sm:$0xff]
  %v1055 = vld [vmem:[%s9 + $0x8b8] sm:$0xff]
  %v1056 = vld [vmem:[%s9 + $0x8c0] sm:$0xff]
  %v1057 = vld [vmem:[%s9 + $0x8c8] sm:$0xff]
  %v1058 = vld [vmem:[%s9 + $0x8d0] sm:$0xff]
  %v1059 = vld [vmem:[%s9 + $0x8d8] sm:$0xff]
  %v1060 = vld [vmem:[%s9 + $0x8e0] sm:$0xff]
  %v1061 = vld [vmem:[%s9 + $0x8e8] sm:$0xff]
  %v1062 = vld [vmem:[%s9 + $0x8f0] sm:$0xff]
  %v1063 = vld [vmem:[%s9 + $0x8f8] sm:$0xff]
  %v1064 = vld [vmem:[%s9 + $0x900] sm:$0xff]
  %v1065 = vld [vmem:[%s9 + $0x908] sm:$0xff]
  %v1066 = vld [vmem:[%s9 + $0x910] sm:$0xff]
  %v1067 = vld [vmem:[%s9 + $0x918] sm:$0xff]
  %v1068 = vld [vmem:[%s9 + $0x920] sm:$0xff]
  %v1069 = vld [vmem:[%s9 + $0x928] sm:$0xff]
  %v1070 = vld [vmem:[%s9 + $0x930] sm:$0xff]
  %v1071 = vld [vmem:[%s9 + $0x938] sm:$0xff]
  %v1072 = vld [vmem:[%s9 + $0x940] sm:$0xff]
  %v1073 = vld [vmem:[%s9 + $0x948] sm:$0xff]
  %v1074 = vld [vmem:[%s9 + $0x950] sm:$0xff]
  %v1075 = vld [vmem:[%s9 + $0x958] sm:$0xff]
  %v1076 = vld [vmem:[%s9 + $0x960] sm:$0xff]
  %v1077 = vld [vmem:[%s9 + $0x968] sm:$0xff]
  %v1078 = vld [vmem:[%s9 + $0x970] sm:$0xff]
  %v1079 = vld [vmem:[%s9 + $0x978] sm:$0xff]
  %v1080 = vld [vmem:[%s9 + $0x980] sm:$0xff]
  %v1081 = vld [vmem:[%s9 + $0x988] sm:$0xff]
  %v1082 = vld [vmem:[%s9 + $0x990] sm:$0xff]
  %v1083 = vld [vmem:[%s9 + $0x998] sm:$0xff]
  %v1084 = vld [vmem:[%s9 + $0x9a0] sm:$0xff]
  %v1085 = vld [vmem:[%s9 + $0x9a8] sm:$0xff]
  %v1086 = vld [vmem:[%s9 + $0x9b0] sm:$0xff]
  %v1087 = vld [vmem:[%s9 + $0x9b8] sm:$0xff]
  %v1088 = vld [vmem:[%s9 + $0x9c0] sm:$0xff]
  %v1089 = vld [vmem:[%s9 + $0x9c8] sm:$0xff]
  %v1090 = vld [vmem:[%s9 + $0x9d0] sm:$0xff]
  %v1091 = vld [vmem:[%s9 + $0x9d8] sm:$0xff]
  %v1092 = vld [vmem:[%s9 + $0x9e0] sm:$0xff]
  %v1093 = vld [vmem:[%s9 + $0x9e8] sm:$0xff]
  %v1094 = vld [vmem:[%s9 + $0x9f0] sm:$0xff]
  %v1095 = vld [vmem:[%s9 + $0x9f8] sm:$0xff]
  %v1096 = vld [vmem:[%s9 + $0xa00] sm:$0xff]
  %v1097 = vld [vmem:[%s9 + $0xa08] sm:$0xff]
  %v1098 = vld [vmem:[%s9 + $0xa10] sm:$0xff]
  %v1099 = vld [vmem:[%s9 + $0xa18] sm:$0xff]
  %v1100 = vld [vmem:[%s9 + $0xa20] sm:$0xff]
  %v1101 = vld [vmem:[%s9 + $0xa28] sm:$0xff]
  %v1102 = vld [vmem:[%s9 + $0xa30] sm:$0xff]
  %v1103 = vld [vmem:[%s9 + $0xa38] sm:$0xff]
  %v1104 = vld [vmem:[%s9 + $0xa40] sm:$0xff]
  %v1105 = vld [vmem:[%s9 + $0xa48] sm:$0xff]
  %v1106 = vld [vmem:[%s9 + $0xa50] sm:$0xff]
  %v1107 = vld [vmem:[%s9 + $0xa58] sm:$0xff]
  %v1108 = vld [vmem:[%s9 + $0xa60] sm:$0xff]
  %v1109 = vld [vmem:[%s9 + $0xa68] sm:$0xff]
  %v1110 = vld [vmem:[%s9 + $0xa70] sm:$0xff]
  %v1111 = vld [vmem:[%s9 + $0xa78] sm:$0xff]
  %v1112 = vld [vmem:[%s9 + $0xa80] sm:$0xff]
  %v1113 = vld [vmem:[%s9 + $0xa88] sm:$0xff]
  %v1114 = vld [vmem:[%s9 + $0xa90] sm:$0xff]
  %v1115 = vld [vmem:[%s9 + $0xa98] sm:$0xff]
  %v1116 = vld [vmem:[%s9 + $0xaa0] sm:$0xff]
  %v1117 = vld [vmem:[%s9 + $0xaa8] sm:$0xff]
  %v1118 = vld [vmem:[%s9 + $0xab0] sm:$0xff]
  %v1119 = vld [vmem:[%s9 + $0xab8] sm:$0xff]
  %v1120 = vld [vmem:[%s9 + $0xac0] sm:$0xff]
  %v1121 = vld [vmem:[%s9 + $0xac8] sm:$0xff]
  %v1122 = vld [vmem:[%s9 + $0xad0] sm:$0xff]
  %v1123 = vld [vmem:[%s9 + $0xad8] sm:$0xff]
  %v1124 = vld [vmem:[%s9 + $0xae0] sm:$0xff]
  %v1125 = vld [vmem:[%s9 + $0xae8] sm:$0xff]
  %v1126 = vld [vmem:[%s9 + $0xaf0] sm:$0xff]
  %v1127 = vld [vmem:[%s9 + $0xaf8] sm:$0xff]
  %v1128 = vld [vmem:[%s9 + $0xb00] sm:$0xff]
  %v1129 = vld [vmem:[%s9 + $0xb08] sm:$0xff]
  %v1130 = vld [vmem:[%s9 + $0xb10] sm:$0xff]
  %v1131 = vld [vmem:[%s9 + $0xb18] sm:$0xff]
  %v1132 = vld [vmem:[%s9 + $0xb20] sm:$0xff]
  %v1133 = vld [vmem:[%s9 + $0xb28] sm:$0xff]
  %v1134 = vld [vmem:[%s9 + $0xb30] sm:$0xff]
  %v1135 = vld [vmem:[%s9 + $0xb38] sm:$0xff]
  %v1136 = vld [vmem:[%s9 + $0xb40] sm:$0xff]
  %v1137 = vld [vmem:[%s9 + $0xb48] sm:$0xff]
  %v1138 = vld [vmem:[%s9 + $0xb50] sm:$0xff]
  %v1139 = vld [vmem:[%s9 + $0xb58] sm:$0xff]
  %v1140 = vld [vmem:[%s9 + $0xb60] sm:$0xff]
  %v1141 = vld [vmem:[%s9 + $0xb68] sm:$0xff]
  %v1142 = vld [vmem:[%s9 + $0xb70] sm:$0xff]
  %v1143 = vld [vmem:[%s9 + $0xb78] sm:$0xff]
  %v1144 = vld [vmem:[%s9 + $0xb80] sm:$0xff]
  %v1145 = vld [vmem:[%s9 + $0xb88] sm:$0xff]
  %v1146 = vld [vmem:[%s9 + $0xb90] sm:$0xff]
  %v1147 = vld [vmem:[%s9 + $0xb98] sm:$0xff]
  %v1148 = vld [vmem:[%s9 + $0xba0] sm:$0xff]
  %v1149 = vld [vmem:[%s9 + $0xba8] sm:$0xff]
  %v1150 = vld [vmem:[%s9 + $0xbb0] sm:$0xff]
  %v1151 = vld [vmem:[%s9 + $0xbb8] sm:$0xff]
  %v1152 = vld [vmem:[%s9 + $0xbc0] sm:$0xff]
  %v1153 = vld [vmem:[%s9 + $0xbc8] sm:$0xff]
  %v1154 = vld [vmem:[%s9 + $0xbd0] sm:$0xff]
  %v1155 = vld [vmem:[%s9 + $0xbd8] sm:$0xff]
  %v1156 = vld [vmem:[%s9 + $0xbe0] sm:$0xff]
  %v1157 = vld [vmem:[%s9 + $0xbe8] sm:$0xff]
  %v1158 = vld [vmem:[%s9 + $0xbf0] sm:$0xff]
  %v1159 = vld [vmem:[%s9 + $0xbf8] sm:$0xff]
  %v1160 = vld [vmem:[%s9 + $0xc00] sm:$0xff]
  %v1161 = vld [vmem:[%s9 + $0xc08] sm:$0xff]
  %v1162 = vld [vmem:[%s9 + $0xc10] sm:$0xff]
  %v1163 = vld [vmem:[%s9 + $0xc18] sm:$0xff]
  %v1164 = vld [vmem:[%s9 + $0xc20] sm:$0xff]
  %v1165 = vld [vmem:[%s9 + $0xc28] sm:$0xff]
  %v1166 = vld [vmem:[%s9 + $0xc30] sm:$0xff]
  %v1167 = vld [vmem:[%s9 + $0xc38] sm:$0xff]
  %v1168 = vld [vmem:[%s9 + $0xc40] sm:$0xff]
  %v1169 = vld [vmem:[%s9 + $0xc48] sm:$0xff]
  %v1170 = vld [vmem:[%s9 + $0xc50] sm:$0xff]
  %v1171 = vld [vmem:[%s9 + $0xc58] sm:$0xff]
  %v1172 = vld [vmem:[%s9 + $0xc60] sm:$0xff]
  %v1173 = vld [vmem:[%s9 + $0xc68] sm:$0xff]
  %v1174 = vld [vmem:[%s9 + $0xc70] sm:$0xff]
  %v1175 = vld [vmem:[%s9 + $0xc78] sm:$0xff]
  %v1176 = vld [vmem:[%s9 + $0xc80] sm:$0xff]
  %v1177 = vld [vmem:[%s9 + $0xc88] sm:$0xff]
  %v1178 = vld [vmem:[%s9 + $0xc90] sm:$0xff]
  %v1179 = vld [vmem:[%s9 + $0xc98] sm:$0xff]
  %v1180 = vld [vmem:[%s9 + $0xca0] sm:$0xff]
  %v1181 = vld [vmem:[%s9 + $0xca8] sm:$0xff]
  %v1182 = vld [vmem:[%s9 + $0xcb0] sm:$0xff]
  %v1183 = vld [vmem:[%s9 + $0xcb8] sm:$0xff]
  %v1184 = vld [vmem:[%s9 + $0xcc0] sm:$0xff]
  %v1185 = vld [vmem:[%s9 + $0xcc8] sm:$0xff]
  %v1186 = vld [vmem:[%s9 + $0xcd0] sm:$0xff]
  %v1187 = vld [vmem:[%s9 + $0xcd8] sm:$0xff]
  %v1188 = vld [vmem:[%s9 + $0xce0] sm:$0xff]
  %v1189 = vld [vmem:[%s9 + $0xce8] sm:$0xff]
  %v1190 = vld [vmem:[%s9 + $0xcf0] sm:$0xff]
  %v1191 = vld [vmem:[%s9 + $0xcf8] sm:$0xff]
  %v1192 = vld [vmem:[%s9 + $0xd00] sm:$0xff]
  %v1193 = vld [vmem:[%s9 + $0xd08] sm:$0xff]
  %v1194 = vld [vmem:[%s9 + $0xd10] sm:$0xff]
  %v1195 = vld [vmem:[%s9 + $0xd18] sm:$0xff]
  %v1196 = vld [vmem:[%s9 + $0xd20] sm:$0xff]
  %v1197 = vld [vmem:[%s9 + $0xd28] sm:$0xff]
  %v1198 = vld [vmem:[%s9 + $0xd30] sm:$0xff]
  %v1199 = vld [vmem:[%s9 + $0xd38] sm:$0xff]
  %v1200 = vld [vmem:[%s9 + $0xd40] sm:$0xff]
  %v1201 = vld [vmem:[%s9 + $0xd48] sm:$0xff]
  %v1202 = vld [vmem:[%s9 + $0xd50] sm:$0xff]
  %v1203 = vld [vmem:[%s9 + $0xd58] sm:$0xff]
  %v1204 = vld [vmem:[%s9 + $0xd60] sm:$0xff]
  %v1205 = vld [vmem:[%s9 + $0xd68] sm:$0xff]
  %v1206 = vld [vmem:[%s9 + $0xd70] sm:$0xff]
  %v1207 = vld [vmem:[%s9 + $0xd78] sm:$0xff]
  %v1208 = vld [vmem:[%s9 + $0xd80] sm:$0xff]
  %v1209 = vld [vmem:[%s9 + $0xd88] sm:$0xff]
  %v1210 = vld [vmem:[%s9 + $0xd90] sm:$0xff]
  %v1211 = vld [vmem:[%s9 + $0xd98] sm:$0xff]
  %v1212 = vld [vmem:[%s9 + $0xda0] sm:$0xff]
  %v1213 = vld [vmem:[%s9 + $0xda8] sm:$0xff]
  %v1214 = vld [vmem:[%s9 + $0xdb0] sm:$0xff]
  %v1215 = vld [vmem:[%s9 + $0xdb8] sm:$0xff]
  %v1216 = vld [vmem:[%s9 + $0xdc0] sm:$0xff]
  %v1217 = vld [vmem:[%s9 + $0xdc8] sm:$0xff]
  %v1218 = vld [vmem:[%s9 + $0xdd0] sm:$0xff]
  %v1219 = vld [vmem:[%s9 + $0xdd8] sm:$0xff]
  %v1220 = vld [vmem:[%s9 + $0xde0] sm:$0xff]
  %v1221 = vld [vmem:[%s9 + $0xde8] sm:$0xff]
  %v1222 = vld [vmem:[%s9 + $0xdf0] sm:$0xff]
  %v1223 = vld [vmem:[%s9 + $0xdf8] sm:$0xff]
  %v1224 = vld [vmem:[%s9 + $0xe00] sm:$0xff]
  %v1225 = vld [vmem:[%s9 + $0xe08] sm:$0xff]
  %v1226 = vld [vmem:[%s9 + $0xe10] sm:$0xff]
  %v1227 = vld [vmem:[%s9 + $0xe18] sm:$0xff]
  %v1228 = vld [vmem:[%s9 + $0xe20] sm:$0xff]
  %v1229 = vld [vmem:[%s9 + $0xe28] sm:$0xff]
  %v1230 = vld [vmem:[%s9 + $0xe30] sm:$0xff]
  %v1231 = vld [vmem:[%s9 + $0xe38] sm:$0xff]
  %v1232 = vld [vmem:[%s9 + $0xe40] sm:$0xff]
  %v1233 = vld [vmem:[%s9 + $0xe48] sm:$0xff]
  %v1234 = vld [vmem:[%s9 + $0xe50] sm:$0xff]
  %v1235 = vld [vmem:[%s9 + $0xe58] sm:$0xff]
  %v1236 = vld [vmem:[%s9 + $0xe60] sm:$0xff]
  %v1237 = vld [vmem:[%s9 + $0xe68] sm:$0xff]
  %v1238 = vld [vmem:[%s9 + $0xe70] sm:$0xff]
  %v1239 = vld [vmem:[%s9 + $0xe78] sm:$0xff]
  %v1240 = vld [vmem:[%s9 + $0xe80] sm:$0xff]
  %v1241 = vld [vmem:[%s9 + $0xe88] sm:$0xff]
  %v1242 = vld [vmem:[%s9 + $0xe90] sm:$0xff]
  %v1243 = vld [vmem:[%s9 + $0xe98] sm:$0xff]
  %v1244 = vld [vmem:[%s9 + $0xea0] sm:$0xff]
  %v1245 = vld [vmem:[%s9 + $0xea8] sm:$0xff]
  %v1246 = vld [vmem:[%s9 + $0xeb0] sm:$0xff]
  %v1247 = vld [vmem:[%s9 + $0xeb8] sm:$0xff]
  %v1248 = vld [vmem:[%s9 + $0xec0] sm:$0xff]
  %v1249 = vld [vmem:[%s9 + $0xec8] sm:$0xff]
  %v1250 = vld [vmem:[%s9 + $0xed0] sm:$0xff]
  %v1251 = vld [vmem:[%s9 + $0xed8] sm:$0xff]
  %v1252 = vld [vmem:[%s9 + $0xee0] sm:$0xff]
  %v1253 = vld [vmem:[%s9 + $0xee8] sm:$0xff]
  %v1254 = vld [vmem:[%s9 + $0xef0] sm:$0xff]
  %v1255 = vld [vmem:[%s9 + $0xef8] sm:$0xff]
  %v1256 = vld [vmem:[%s9 + $0xf00] sm:$0xff]
  %v1257 = vld [vmem:[%s9 + $0xf08] sm:$0xff]
  %v1258 = vld [vmem:[%s9 + $0xf10] sm:$0xff]
  %v1259 = vld [vmem:[%s9 + $0xf18] sm:$0xff]
  %v1260 = vld [vmem:[%s9 + $0xf20] sm:$0xff]
  %v1261 = vld [vmem:[%s9 + $0xf28] sm:$0xff]
  %v1262 = vld [vmem:[%s9 + $0xf30] sm:$0xff]
  %v1263 = vld [vmem:[%s9 + $0xf38] sm:$0xff]
  %v1264 = vld [vmem:[%s9 + $0xf40] sm:$0xff]
  %v1265 = vld [vmem:[%s9 + $0xf48] sm:$0xff]
  %v1266 = vld [vmem:[%s9 + $0xf50] sm:$0xff]
  %v1267 = vld [vmem:[%s9 + $0xf58] sm:$0xff]
  %v1268 = vld [vmem:[%s9 + $0xf60] sm:$0xff]
  %v1269 = vld [vmem:[%s9 + $0xf68] sm:$0xff]
  %v1270 = vld [vmem:[%s9 + $0xf70] sm:$0xff]
  %v1271 = vld [vmem:[%s9 + $0xf78] sm:$0xff]
  %v1272 = vld [vmem:[%s9 + $0xf80] sm:$0xff]
  %v1273 = vld [vmem:[%s9 + $0xf88] sm:$0xff]
  %v1274 = vld [vmem:[%s9 + $0xf90] sm:$0xff]
  %v1275 = vld [vmem:[%s9 + $0xf98] sm:$0xff]
  %v1276 = vld [vmem:[%s9 + $0xfa0] sm:$0xff]
  %v1277 = vld [vmem:[%s9 + $0xfa8] sm:$0xff]
  %v1278 = vld [vmem:[%s9 + $0xfb0] sm:$0xff]
  %v1279 = vld [vmem:[%s9 + $0xfb8] sm:$0xff]
  %v1280 = vld [vmem:[%s9 + $0xfc0] sm:$0xff]
  %v1281 = vld [vmem:[%s9 + $0xfc8] sm:$0xff]
  %v1282 = vld [vmem:[%s9 + $0xfd0] sm:$0xff]
  %v1283 = vld [vmem:[%s9 + $0xfd8] sm:$0xff]
  %v1284 = vld [vmem:[%s9 + $0xfe0] sm:$0xff]
  %v1285 = vld [vmem:[%s9 + $0xfe8] sm:$0xff]
  %v1286 = vld [vmem:[%s9 + $0xff0] sm:$0xff]
  %v1287 = vld [vmem:[%s9 + $0xff8] sm:$0xff]
  %v1288 = vld [vmem:[%s9 + $0x1000] sm:$0xff]
  %v1289 = vld [vmem:[%s9 + $0x1008] sm:$0xff]
  %v1290 = vld [vmem:[%s9 + $0x1010] sm:$0xff]
  %v1291 = vld [vmem:[%s9 + $0x1018] sm:$0xff]
  %v1292 = vld [vmem:[%s9 + $0x1020] sm:$0xff]
  %v1293 = vld [vmem:[%s9 + $0x1028] sm:$0xff]
  %v1294 = vld [vmem:[%s9 + $0x1030] sm:$0xff]
  %v1295 = vld [vmem:[%s9 + $0x1038] sm:$0xff]
  %v1296 = vld [vmem:[%s9 + $0x1040] sm:$0xff]
  %v1297 = vld [vmem:[%s9 + $0x1048] sm:$0xff]
  %v1298 = vld [vmem:[%s9 + $0x1050] sm:$0xff]
  %v1299 = vld [vmem:[%s9 + $0x1058] sm:$0xff]
  %v1300 = vld [vmem:[%s9 + $0x1060] sm:$0xff]
  %v1301 = vld [vmem:[%s9 + $0x1068] sm:$0xff]
  %v1302 = vld [vmem:[%s9 + $0x1070] sm:$0xff]
  %v1303 = vld [vmem:[%s9 + $0x1078] sm:$0xff]
  %v1304 = vld [vmem:[%s9 + $0x1080] sm:$0xff]
  %v1305 = vld [vmem:[%s9 + $0x1088] sm:$0xff]
  %v1306 = vld [vmem:[%s9 + $0x1090] sm:$0xff]
  %v1307 = vld [vmem:[%s9 + $0x1098] sm:$0xff]
  %v1308 = vld [vmem:[%s9 + $0x10a0] sm:$0xff]
  %v1309 = vld [vmem:[%s9 + $0x10a8] sm:$0xff]
  %v1310 = vld [vmem:[%s9 + $0x10b0] sm:$0xff]
  %v1311 = vld [vmem:[%s9 + $0x10b8] sm:$0xff]
  %v1312 = vld [vmem:[%s9 + $0x10c0] sm:$0xff]
  %v1313 = vld [vmem:[%s9 + $0x10c8] sm:$0xff]
  %v1314 = vld [vmem:[%s9 + $0x10d0] sm:$0xff]
  %v1315 = vld [vmem:[%s9 + $0x10d8] sm:$0xff]
  %v1316 = vld [vmem:[%s9 + $0x10e0] sm:$0xff]
  %v1317 = vld [vmem:[%s9 + $0x10e8] sm:$0xff]
  %v1318 = vld [vmem:[%s9 + $0x10f0] sm:$0xff]
  %v1319 = vld [vmem:[%s9 + $0x10f8] sm:$0xff]
  %v1320 = vld [vmem:[%s9 + $0x1100] sm:$0xff]
  %v1321 = vld [vmem:[%s9 + $0x1108] sm:$0xff]
  %v1322 = vld [vmem:[%s9 + $0x1110] sm:$0xff]
  %v1323 = vld [vmem:[%s9 + $0x1118] sm:$0xff]
  %v1324 = vld [vmem:[%s9 + $0x1120] sm:$0xff]
  %v1325 = vld [vmem:[%s9 + $0x1128] sm:$0xff]
  %v1326 = vld [vmem:[%s9 + $0x1130] sm:$0xff]
  %v1327 = vld [vmem:[%s9 + $0x1138] sm:$0xff]
  %v1328 = vld [vmem:[%s9 + $0x1140] sm:$0xff]
  %v1329 = vld [vmem:[%s9 + $0x1148] sm:$0xff]
  %v1330 = vld [vmem:[%s9 + $0x1150] sm:$0xff]
  %v1331 = vld [vmem:[%s9 + $0x1158] sm:$0xff]
  %v1332 = vld [vmem:[%s9 + $0x1160] sm:$0xff]
  %v1333 = vld [vmem:[%s9 + $0x1168] sm:$0xff]
  %v1334 = vld [vmem:[%s9 + $0x1170] sm:$0xff]
  %v1335 = vld [vmem:[%s9 + $0x1178] sm:$0xff]
  %v1336 = vld [vmem:[%s9 + $0x1180] sm:$0xff]
  %v1337 = vld [vmem:[%s9 + $0x1188] sm:$0xff]
  %v1338 = vld [vmem:[%s9 + $0x1190] sm:$0xff]
  %v1339 = vld [vmem:[%s9 + $0x1198] sm:$0xff]
  %v1340 = vld [vmem:[%s9 + $0x11a0] sm:$0xff]
  %v1341 = vld [vmem:[%s9 + $0x11a8] sm:$0xff]
  %v1342 = vld [vmem:[%s9 + $0x11b0] sm:$0xff]
  %v1343 = vld [vmem:[%s9 + $0x11b8] sm:$0xff]
  %v1344 = vld [vmem:[%s9 + $0x11c0] sm:$0xff]
  %v1345 = vld [vmem:[%s9 + $0x11c8] sm:$0xff]
  %v1346 = vld [vmem:[%s9 + $0x11d0] sm:$0xff]
  %v1347 = vld [vmem:[%s9 + $0x11d8] sm:$0xff]
  %v1348 = vld [vmem:[%s9 + $0x11e0] sm:$0xff]
  %v1349 = vld [vmem:[%s9 + $0x11e8] sm:$0xff]
  %v1350 = vld [vmem:[%s9 + $0x11f0] sm:$0xff]
  %v1351 = vld [vmem:[%s9 + $0x11f8] sm:$0xff]
  %v1352 = vld [vmem:[%s9 + $0x1200] sm:$0xff]
  %v1353 = vld [vmem:[%s9 + $0x1208] sm:$0xff]
  %v1354 = vld [vmem:[%s9 + $0x1210] sm:$0xff]
  %v1355 = vld [vmem:[%s9 + $0x1218] sm:$0xff]
  %v1356 = vld [vmem:[%s9 + $0x1220] sm:$0xff]
  %v1357 = vld [vmem:[%s9 + $0x1228] sm:$0xff]
  %v1358 = vld [vmem:[%s9 + $0x1230] sm:$0xff]
  %v1359 = vld [vmem:[%s9 + $0x1238] sm:$0xff]
  %v1360 = vld [vmem:[%s9 + $0x1240] sm:$0xff]
  %v1361 = vld [vmem:[%s9 + $0x1248] sm:$0xff]
  %v1362 = vld [vmem:[%s9 + $0x1250] sm:$0xff]
  %v1363 = vld [vmem:[%s9 + $0x1258] sm:$0xff]
  %v1364 = vld [vmem:[%s9 + $0x1260] sm:$0xff]
  %v1365 = vld [vmem:[%s9 + $0x1268] sm:$0xff]
  %v1366 = vld [vmem:[%s9 + $0x1270] sm:$0xff]
  %v1367 = vld [vmem:[%s9 + $0x1278] sm:$0xff]
  %v1368 = vld [vmem:[%s9 + $0x1280] sm:$0xff]
  %v1369 = vld [vmem:[%s9 + $0x1288] sm:$0xff]
  %v1370 = vld [vmem:[%s9 + $0x1290] sm:$0xff]
  %v1371 = vld [vmem:[%s9 + $0x1298] sm:$0xff]
  %v1372 = vld [vmem:[%s9 + $0x12a0] sm:$0xff]
  %v1373 = vld [vmem:[%s9 + $0x12a8] sm:$0xff]
  %v1374 = vld [vmem:[%s9 + $0x12b0] sm:$0xff]
  %v1375 = vld [vmem:[%s9 + $0x12b8] sm:$0xff]
  %v1376 = vld [vmem:[%s9 + $0x12c0] sm:$0xff]
  %v1377 = vld [vmem:[%s9 + $0x12c8] sm:$0xff]
  %v1378 = vld [vmem:[%s9 + $0x12d0] sm:$0xff]
  %v1379 = vld [vmem:[%s9 + $0x12d8] sm:$0xff]
  %v1380 = vld [vmem:[%s9 + $0x12e0] sm:$0xff]
  %v1381 = vld [vmem:[%s10] sm:$0x1f]
  %v1383 = vperm.slane %v1381, 0
  %v1384 = vperm.slane %v1381, 1
  %v1385 = vperm.slane %v1381, 2
  %v1386 = vperm.slane %v1381, 3
  %v1387 = vperm.slane %v1381, 4
  %vm1393 = vcmask 588800
  %v1395 = vsel %vm1393, %v775, 0
  %1397 = vmatpush.msra.mxu0 %v851
  %1398 = vmatpush.msra.mxu0 %v846
  %1399 = vmatpush.msra.mxu0 %v841
  %1400 = vmatpush.msra.mxu0 %v836
  %1401 = vmatpush.msra.mxu0 %v831
  %1402 = vmatpush.msra.mxu0 %v826
  %1403 = vmatpush.msra.mxu0 %v821
  %1404 = vmatpush.msra.mxu0 %v816
  %1405 = vmatpush.msra.mxu0 %v811
  %1406 = vmatpush.msra.mxu0 %v806
  %1407 = vmatpush.msra.mxu0 %v801
  %1408 = vmatpush.msra.mxu0 %v796
  %1409 = vmatpush.msra.mxu0 %v791
  %1410 = vmatpush.msra.mxu0 %v786
  %1411 = vmatpush.msra.mxu0 %v781
  %1412 = vmatpush.msra.mxu0 %v776
  %1413 = vmatmul.f32.gmra.mxu0 %v768
  %v1414 = vpop.f32.mrf.mxu0
  %v1415 = vadd.f32 %v1383, %v1414
  %1416 = vdwg.mxu0
  %1417 = vmatpush.msra.mxu0 %v931
  %1418 = vmatpush.msra.mxu0 %v926
  %1419 = vmatpush.msra.mxu0 %v921
  %1420 = vmatpush.msra.mxu0 %v916
  %1421 = vmatpush.msra.mxu0 %v911
  %1422 = vmatpush.msra.mxu0 %v906
  %1423 = vmatpush.msra.mxu0 %v901
  %1424 = vmatpush.msra.mxu0 %v896
  %1425 = vmatpush.msra.mxu0 %v891
  %1426 = vmatpush.msra.mxu0 %v886
  %1427 = vmatpush.msra.mxu0 %v881
  %1428 = vmatpush.msra.mxu0 %v876
  %1429 = vmatpush.msra.mxu0 %v871
  %1430 = vmatpush.msra.mxu0 %v866
  %1431 = vmatpush.msra.mxu0 %v861
  %1432 = vmatpush.msra.mxu0 %v856
  %1433 = vmatmul.f32.gmra.mxu0 %v769
  %v1434 = vpop.f32.mrf.mxu0
  %v1435 = vadd.f32 %v1415, %v1434
  %1436 = vdwg.mxu0
  %1437 = vmatpush.msra.mxu0 %v1011
  %1438 = vmatpush.msra.mxu0 %v1006
  %1439 = vmatpush.msra.mxu0 %v1001
  %1440 = vmatpush.msra.mxu0 %v996
  %1441 = vmatpush.msra.mxu0 %v991
  %1442 = vmatpush.msra.mxu0 %v986
  %1443 = vmatpush.msra.mxu0 %v981
  %1444 = vmatpush.msra.mxu0 %v976
  %1445 = vmatpush.msra.mxu0 %v971
  %1446 = vmatpush.msra.mxu0 %v966
  %1447 = vmatpush.msra.mxu0 %v961
  %1448 = vmatpush.msra.mxu0 %v956
  %1449 = vmatpush.msra.mxu0 %v951
  %1450 = vmatpush.msra.mxu0 %v946
  %1451 = vmatpush.msra.mxu0 %v941
  %1452 = vmatpush.msra.mxu0 %v936
  %1453 = vmatmul.f32.gmra.mxu0 %v770
  %v1454 = vpop.f32.mrf.mxu0
  %v1455 = vadd.f32 %v1435, %v1454
  %1456 = vdwg.mxu0
  %1457 = vmatpush.msra.mxu0 %v1091
  %1458 = vmatpush.msra.mxu0 %v1086
  %1459 = vmatpush.msra.mxu0 %v1081
  %1460 = vmatpush.msra.mxu0 %v1076
  %1461 = vmatpush.msra.mxu0 %v1071
  %1462 = vmatpush.msra.mxu0 %v1066
  %1463 = vmatpush.msra.mxu0 %v1061
  %1464 = vmatpush.msra.mxu0 %v1056
  %1465 = vmatpush.msra.mxu0 %v1051
  %1466 = vmatpush.msra.mxu0 %v1046
  %1467 = vmatpush.msra.mxu0 %v1041
  %1468 = vmatpush.msra.mxu0 %v1036
  %1469 = vmatpush.msra.mxu0 %v1031
  %1470 = vmatpush.msra.mxu0 %v1026
  %1471 = vmatpush.msra.mxu0 %v1021
  %1472 = vmatpush.msra.mxu0 %v1016
  %1473 = vmatmul.f32.gmra.mxu0 %v771
  %v1474 = vpop.f32.mrf.mxu0
  %v1475 = vadd.f32 %v1455, %v1474
  %1476 = vdwg.mxu0
  %1477 = vmatpush.msra.mxu0 %v1171
  %1478 = vmatpush.msra.mxu0 %v1166
  %1479 = vmatpush.msra.mxu0 %v1161
  %1480 = vmatpush.msra.mxu0 %v1156
  %1481 = vmatpush.msra.mxu0 %v1151
  %1482 = vmatpush.msra.mxu0 %v1146
  %1483 = vmatpush.msra.mxu0 %v1141
  %1484 = vmatpush.msra.mxu0 %v1136
  %1485 = vmatpush.msra.mxu0 %v1131
  %1486 = vmatpush.msra.mxu0 %v1126
  %1487 = vmatpush.msra.mxu0 %v1121
  %1488 = vmatpush.msra.mxu0 %v1116
  %1489 = vmatpush.msra.mxu0 %v1111
  %1490 = vmatpush.msra.mxu0 %v1106
  %1491 = vmatpush.msra.mxu0 %v1101
  %1492 = vmatpush.msra.mxu0 %v1096
  %1493 = vmatmul.f32.gmra.mxu0 %v772
  %v1494 = vpop.f32.mrf.mxu0
  %v1495 = vadd.f32 %v1475, %v1494
  %1496 = vdwg.mxu0
  %1497 = vmatpush.msra.mxu0 %v1251
  %1498 = vmatpush.msra.mxu0 %v1246
  %1499 = vmatpush.msra.mxu0 %v1241
  %1500 = vmatpush.msra.mxu0 %v1236
  %1501 = vmatpush.msra.mxu0 %v1231
  %1502 = vmatpush.msra.mxu0 %v1226
  %1503 = vmatpush.msra.mxu0 %v1221
  %1504 = vmatpush.msra.mxu0 %v1216
  %1505 = vmatpush.msra.mxu0 %v1211
  %1506 = vmatpush.msra.mxu0 %v1206
  %1507 = vmatpush.msra.mxu0 %v1201
  %1508 = vmatpush.msra.mxu0 %v1196
  %1509 = vmatpush.msra.mxu0 %v1191
  %1510 = vmatpush.msra.mxu0 %v1186
  %1511 = vmatpush.msra.mxu0 %v1181
  %1512 = vmatpush.msra.mxu0 %v1176
  %1513 = vmatmul.f32.gmra.mxu0 %v773
  %v1514 = vpop.f32.mrf.mxu0
  %v1515 = vadd.f32 %v1495, %v1514
  %1516 = vdwg.mxu0
  %1517 = vmatpush.msra.mxu0 %v1331
  %1518 = vmatpush.msra.mxu0 %v1326
  %1519 = vmatpush.msra.mxu0 %v1321
  %1520 = vmatpush.msra.mxu0 %v1316
  %1521 = vmatpush.msra.mxu0 %v1311
  %1522 = vmatpush.msra.mxu0 %v1306
  %1523 = vmatpush.msra.mxu0 %v1301
  %1524 = vmatpush.msra.mxu0 %v1296
  %1525 = vmatpush.msra.mxu0 %v1291
  %1526 = vmatpush.msra.mxu0 %v1286
  %1527 = vmatpush.msra.mxu0 %v1281
  %1528 = vmatpush.msra.mxu0 %v1276
  %1529 = vmatpush.msra.mxu0 %v1271
  %1530 = vmatpush.msra.mxu0 %v1266
  %1531 = vmatpush.msra.mxu0 %v1261
  %1532 = vmatpush.msra.mxu0 %v1256
  %1533 = vmatmul.f32.gmra.mxu0 %v774
  %v1534 = vpop.f32.mrf.mxu0
  %v1535 = vadd.f32 %v1515, %v1534
  %1536 = vdwg.mxu0
  %1537 = vmatpush.msra.mxu0 0.0
  %1538 = vmatpush.msra.mxu0 0.0
  %1539 = vmatpush.msra.mxu0 0.0
  %1540 = vmatpush.msra.mxu0 0.0
  %1541 = vmatpush.msra.mxu0 0.0
  %1542 = vmatpush.msra.mxu0 0.0
  %1543 = vmatpush.msra.mxu0 0.0
  %1544 = vmatpush.msra.mxu0 %v1376
  %1545 = vmatpush.msra.mxu0 %v1371
  %1546 = vmatpush.msra.mxu0 %v1366
  %1547 = vmatpush.msra.mxu0 %v1361
  %1548 = vmatpush.msra.mxu0 %v1356
  %1549 = vmatpush.msra.mxu0 %v1351
  %1550 = vmatpush.msra.mxu0 %v1346
  %1551 = vmatpush.msra.mxu0 %v1341
  %1552 = vmatpush.msra.mxu0 %v1336
  %1553 = vmatmul.f32.gmra.mxu0 %v1395
  %v1554 = vpop.f32.mrf.mxu0
  %v1555 = vadd.f32 %v1535, %v1554
  %1556 = vdwg.mxu0
  %1557 = vmatpush.msra.mxu0 %v852
  %1558 = vmatpush.msra.mxu0 %v847
  %1559 = vmatpush.msra.mxu0 %v842
  %1560 = vmatpush.msra.mxu0 %v837
  %1561 = vmatpush.msra.mxu0 %v832
  %1562 = vmatpush.msra.mxu0 %v827
  %1563 = vmatpush.msra.mxu0 %v822
  %1564 = vmatpush.msra.mxu0 %v817
  %1565 = vmatpush.msra.mxu0 %v812
  %1566 = vmatpush.msra.mxu0 %v807
  %1567 = vmatpush.msra.mxu0 %v802
  %1568 = vmatpush.msra.mxu0 %v797
  %1569 = vmatpush.msra.mxu0 %v792
  %1570 = vmatpush.msra.mxu0 %v787
  %1571 = vmatpush.msra.mxu0 %v782
  %1572 = vmatpush.msra.mxu0 %v777
  %1573 = vmatmul.f32.gmra.mxu0 %v768
  %v1574 = vpop.f32.mrf.mxu0
  %v1575 = vadd.f32 %v1384, %v1574
  %1576 = vdwg.mxu0
  %1577 = vmatpush.msra.mxu0 %v932
  %1578 = vmatpush.msra.mxu0 %v927
  %1579 = vmatpush.msra.mxu0 %v922
  %1580 = vmatpush.msra.mxu0 %v917
  %1581 = vmatpush.msra.mxu0 %v912
  %1582 = vmatpush.msra.mxu0 %v907
  %1583 = vmatpush.msra.mxu0 %v902
  %1584 = vmatpush.msra.mxu0 %v897
  %1585 = vmatpush.msra.mxu0 %v892
  %1586 = vmatpush.msra.mxu0 %v887
  %1587 = vmatpush.msra.mxu0 %v882
  %1588 = vmatpush.msra.mxu0 %v877
  %1589 = vmatpush.msra.mxu0 %v872
  %1590 = vmatpush.msra.mxu0 %v867
  %1591 = vmatpush.msra.mxu0 %v862
  %1592 = vmatpush.msra.mxu0 %v857
  %1593 = vmatmul.f32.gmra.mxu0 %v769
  %v1594 = vpop.f32.mrf.mxu0
  %v1595 = vadd.f32 %v1575, %v1594
  %1596 = vdwg.mxu0
  %1597 = vmatpush.msra.mxu0 %v1012
  %1598 = vmatpush.msra.mxu0 %v1007
  %1599 = vmatpush.msra.mxu0 %v1002
  %1600 = vmatpush.msra.mxu0 %v997
  %1601 = vmatpush.msra.mxu0 %v992
  %1602 = vmatpush.msra.mxu0 %v987
  %1603 = vmatpush.msra.mxu0 %v982
  %1604 = vmatpush.msra.mxu0 %v977
  %1605 = vmatpush.msra.mxu0 %v972
  %1606 = vmatpush.msra.mxu0 %v967
  %1607 = vmatpush.msra.mxu0 %v962
  %1608 = vmatpush.msra.mxu0 %v957
  %1609 = vmatpush.msra.mxu0 %v952
  %1610 = vmatpush.msra.mxu0 %v947
  %1611 = vmatpush.msra.mxu0 %v942
  %1612 = vmatpush.msra.mxu0 %v937
  %1613 = vmatmul.f32.gmra.mxu0 %v770
  %v1614 = vpop.f32.mrf.mxu0
  %v1615 = vadd.f32 %v1595, %v1614
  %1616 = vdwg.mxu0
  %1617 = vmatpush.msra.mxu0 %v1092
  %1618 = vmatpush.msra.mxu0 %v1087
  %1619 = vmatpush.msra.mxu0 %v1082
  %1620 = vmatpush.msra.mxu0 %v1077
  %1621 = vmatpush.msra.mxu0 %v1072
  %1622 = vmatpush.msra.mxu0 %v1067
  %1623 = vmatpush.msra.mxu0 %v1062
  %1624 = vmatpush.msra.mxu0 %v1057
  %1625 = vmatpush.msra.mxu0 %v1052
  %1626 = vmatpush.msra.mxu0 %v1047
  %1627 = vmatpush.msra.mxu0 %v1042
  %1628 = vmatpush.msra.mxu0 %v1037
  %1629 = vmatpush.msra.mxu0 %v1032
  %1630 = vmatpush.msra.mxu0 %v1027
  %1631 = vmatpush.msra.mxu0 %v1022
  %1632 = vmatpush.msra.mxu0 %v1017
  %1633 = vmatmul.f32.gmra.mxu0 %v771
  %v1634 = vpop.f32.mrf.mxu0
  %v1635 = vadd.f32 %v1615, %v1634
  %1636 = vdwg.mxu0
  %1637 = vmatpush.msra.mxu0 %v1172
  %1638 = vmatpush.msra.mxu0 %v1167
  %1639 = vmatpush.msra.mxu0 %v1162
  %1640 = vmatpush.msra.mxu0 %v1157
  %1641 = vmatpush.msra.mxu0 %v1152
  %1642 = vmatpush.msra.mxu0 %v1147
  %1643 = vmatpush.msra.mxu0 %v1142
  %1644 = vmatpush.msra.mxu0 %v1137
  %1645 = vmatpush.msra.mxu0 %v1132
  %1646 = vmatpush.msra.mxu0 %v1127
  %1647 = vmatpush.msra.mxu0 %v1122
  %1648 = vmatpush.msra.mxu0 %v1117
  %1649 = vmatpush.msra.mxu0 %v1112
  %1650 = vmatpush.msra.mxu0 %v1107
  %1651 = vmatpush.msra.mxu0 %v1102
  %1652 = vmatpush.msra.mxu0 %v1097
  %1653 = vmatmul.f32.gmra.mxu0 %v772
  %v1654 = vpop.f32.mrf.mxu0
  %v1655 = vadd.f32 %v1635, %v1654
  %1656 = vdwg.mxu0
  %1657 = vmatpush.msra.mxu0 %v1252
  %1658 = vmatpush.msra.mxu0 %v1247
  %1659 = vmatpush.msra.mxu0 %v1242
  %1660 = vmatpush.msra.mxu0 %v1237
  %1661 = vmatpush.msra.mxu0 %v1232
  %1662 = vmatpush.msra.mxu0 %v1227
  %1663 = vmatpush.msra.mxu0 %v1222
  %1664 = vmatpush.msra.mxu0 %v1217
  %1665 = vmatpush.msra.mxu0 %v1212
  %1666 = vmatpush.msra.mxu0 %v1207
  %1667 = vmatpush.msra.mxu0 %v1202
  %1668 = vmatpush.msra.mxu0 %v1197
  %1669 = vmatpush.msra.mxu0 %v1192
  %1670 = vmatpush.msra.mxu0 %v1187
  %1671 = vmatpush.msra.mxu0 %v1182
  %1672 = vmatpush.msra.mxu0 %v1177
  %1673 = vmatmul.f32.gmra.mxu0 %v773
  %v1674 = vpop.f32.mrf.mxu0
  %v1675 = vadd.f32 %v1655, %v1674
  %1676 = vdwg.mxu0
  %1677 = vmatpush.msra.mxu0 %v1332
  %1678 = vmatpush.msra.mxu0 %v1327
  %1679 = vmatpush.msra.mxu0 %v1322
  %1680 = vmatpush.msra.mxu0 %v1317
  %1681 = vmatpush.msra.mxu0 %v1312
  %1682 = vmatpush.msra.mxu0 %v1307
  %1683 = vmatpush.msra.mxu0 %v1302
  %1684 = vmatpush.msra.mxu0 %v1297
  %1685 = vmatpush.msra.mxu0 %v1292
  %1686 = vmatpush.msra.mxu0 %v1287
  %1687 = vmatpush.msra.mxu0 %v1282
  %1688 = vmatpush.msra.mxu0 %v1277
  %1689 = vmatpush.msra.mxu0 %v1272
  %1690 = vmatpush.msra.mxu0 %v1267
  %1691 = vmatpush.msra.mxu0 %v1262
  %1692 = vmatpush.msra.mxu0 %v1257
  %1693 = vmatmul.f32.gmra.mxu0 %v774
  %v1694 = vpop.f32.mrf.mxu0
  %v1695 = vadd.f32 %v1675, %v1694
  %1696 = vdwg.mxu0
  %1697 = vmatpush.msra.mxu0 0.0
  %1698 = vmatpush.msra.mxu0 0.0
  %1699 = vmatpush.msra.mxu0 0.0
  %1700 = vmatpush.msra.mxu0 0.0
  %1701 = vmatpush.msra.mxu0 0.0
  %1702 = vmatpush.msra.mxu0 0.0
  %1703 = vmatpush.msra.mxu0 0.0
  %1704 = vmatpush.msra.mxu0 %v1377
  %1705 = vmatpush.msra.mxu0 %v1372
  %1706 = vmatpush.msra.mxu0 %v1367
  %1707 = vmatpush.msra.mxu0 %v1362
  %1708 = vmatpush.msra.mxu0 %v1357
  %1709 = vmatpush.msra.mxu0 %v1352
  %1710 = vmatpush.msra.mxu0 %v1347
  %1711 = vmatpush.msra.mxu0 %v1342
  %1712 = vmatpush.msra.mxu0 %v1337
  %1713 = vmatmul.f32.gmra.mxu0 %v1395
  %v1714 = vpop.f32.mrf.mxu0
  %v1715 = vadd.f32 %v1695, %v1714
  %1716 = vdwg.mxu0
  %1717 = vmatpush.msra.mxu0 %v853
  %1718 = vmatpush.msra.mxu0 %v848
  %1719 = vmatpush.msra.mxu0 %v843
  %1720 = vmatpush.msra.mxu0 %v838
  %1721 = vmatpush.msra.mxu0 %v833
  %1722 = vmatpush.msra.mxu0 %v828
  %1723 = vmatpush.msra.mxu0 %v823
  %1724 = vmatpush.msra.mxu0 %v818
  %1725 = vmatpush.msra.mxu0 %v813
  %1726 = vmatpush.msra.mxu0 %v808
  %1727 = vmatpush.msra.mxu0 %v803
  %1728 = vmatpush.msra.mxu0 %v798
  %1729 = vmatpush.msra.mxu0 %v793
  %1730 = vmatpush.msra.mxu0 %v788
  %1731 = vmatpush.msra.mxu0 %v783
  %1732 = vmatpush.msra.mxu0 %v778
  %1733 = vmatmul.f32.gmra.mxu0 %v768
  %v1734 = vpop.f32.mrf.mxu0
  %v1735 = vadd.f32 %v1385, %v1734
  %1736 = vdwg.mxu0
  %1737 = vmatpush.msra.mxu0 %v933
  %1738 = vmatpush.msra.mxu0 %v928
  %1739 = vmatpush.msra.mxu0 %v923
  %1740 = vmatpush.msra.mxu0 %v918
  %1741 = vmatpush.msra.mxu0 %v913
  %1742 = vmatpush.msra.mxu0 %v908
  %1743 = vmatpush.msra.mxu0 %v903
  %1744 = vmatpush.msra.mxu0 %v898
  %1745 = vmatpush.msra.mxu0 %v893
  %1746 = vmatpush.msra.mxu0 %v888
  %1747 = vmatpush.msra.mxu0 %v883
  %1748 = vmatpush.msra.mxu0 %v878
  %1749 = vmatpush.msra.mxu0 %v873
  %1750 = vmatpush.msra.mxu0 %v868
  %1751 = vmatpush.msra.mxu0 %v863
  %1752 = vmatpush.msra.mxu0 %v858
  %1753 = vmatmul.f32.gmra.mxu0 %v769
  %v1754 = vpop.f32.mrf.mxu0
  %v1755 = vadd.f32 %v1735, %v1754
  %1756 = vdwg.mxu0
  %1757 = vmatpush.msra.mxu0 %v1013
  %1758 = vmatpush.msra.mxu0 %v1008
  %1759 = vmatpush.msra.mxu0 %v1003
  %1760 = vmatpush.msra.mxu0 %v998
  %1761 = vmatpush.msra.mxu0 %v993
  %1762 = vmatpush.msra.mxu0 %v988
  %1763 = vmatpush.msra.mxu0 %v983
  %1764 = vmatpush.msra.mxu0 %v978
  %1765 = vmatpush.msra.mxu0 %v973
  %1766 = vmatpush.msra.mxu0 %v968
  %1767 = vmatpush.msra.mxu0 %v963
  %1768 = vmatpush.msra.mxu0 %v958
  %1769 = vmatpush.msra.mxu0 %v953
  %1770 = vmatpush.msra.mxu0 %v948
  %1771 = vmatpush.msra.mxu0 %v943
  %1772 = vmatpush.msra.mxu0 %v938
  %1773 = vmatmul.f32.gmra.mxu0 %v770
  %v1774 = vpop.f32.mrf.mxu0
  %v1775 = vadd.f32 %v1755, %v1774
  %1776 = vdwg.mxu0
  %1777 = vmatpush.msra.mxu0 %v1093
  %1778 = vmatpush.msra.mxu0 %v1088
  %1779 = vmatpush.msra.mxu0 %v1083
  %1780 = vmatpush.msra.mxu0 %v1078
  %1781 = vmatpush.msra.mxu0 %v1073
  %1782 = vmatpush.msra.mxu0 %v1068
  %1783 = vmatpush.msra.mxu0 %v1063
  %1784 = vmatpush.msra.mxu0 %v1058
  %1785 = vmatpush.msra.mxu0 %v1053
  %1786 = vmatpush.msra.mxu0 %v1048
  %1787 = vmatpush.msra.mxu0 %v1043
  %1788 = vmatpush.msra.mxu0 %v1038
  %1789 = vmatpush.msra.mxu0 %v1033
  %1790 = vmatpush.msra.mxu0 %v1028
  %1791 = vmatpush.msra.mxu0 %v1023
  %1792 = vmatpush.msra.mxu0 %v1018
  %1793 = vmatmul.f32.gmra.mxu0 %v771
  %v1794 = vpop.f32.mrf.mxu0
  %v1795 = vadd.f32 %v1775, %v1794
  %1796 = vdwg.mxu0
  %1797 = vmatpush.msra.mxu0 %v1173
  %1798 = vmatpush.msra.mxu0 %v1168
  %1799 = vmatpush.msra.mxu0 %v1163
  %1800 = vmatpush.msra.mxu0 %v1158
  %1801 = vmatpush.msra.mxu0 %v1153
  %1802 = vmatpush.msra.mxu0 %v1148
  %1803 = vmatpush.msra.mxu0 %v1143
  %1804 = vmatpush.msra.mxu0 %v1138
  %1805 = vmatpush.msra.mxu0 %v1133
  %1806 = vmatpush.msra.mxu0 %v1128
  %1807 = vmatpush.msra.mxu0 %v1123
  %1808 = vmatpush.msra.mxu0 %v1118
  %1809 = vmatpush.msra.mxu0 %v1113
  %1810 = vmatpush.msra.mxu0 %v1108
  %1811 = vmatpush.msra.mxu0 %v1103
  %1812 = vmatpush.msra.mxu0 %v1098
  %1813 = vmatmul.f32.gmra.mxu0 %v772
  %v1814 = vpop.f32.mrf.mxu0
  %v1815 = vadd.f32 %v1795, %v1814
  %1816 = vdwg.mxu0
  %1817 = vmatpush.msra.mxu0 %v1253
  %1818 = vmatpush.msra.mxu0 %v1248
  %1819 = vmatpush.msra.mxu0 %v1243
  %1820 = vmatpush.msra.mxu0 %v1238
  %1821 = vmatpush.msra.mxu0 %v1233
  %1822 = vmatpush.msra.mxu0 %v1228
  %1823 = vmatpush.msra.mxu0 %v1223
  %1824 = vmatpush.msra.mxu0 %v1218
  %1825 = vmatpush.msra.mxu0 %v1213
  %1826 = vmatpush.msra.mxu0 %v1208
  %1827 = vmatpush.msra.mxu0 %v1203
  %1828 = vmatpush.msra.mxu0 %v1198
  %1829 = vmatpush.msra.mxu0 %v1193
  %1830 = vmatpush.msra.mxu0 %v1188
  %1831 = vmatpush.msra.mxu0 %v1183
  %1832 = vmatpush.msra.mxu0 %v1178
  %1833 = vmatmul.f32.gmra.mxu0 %v773
  %v1834 = vpop.f32.mrf.mxu0
  %v1835 = vadd.f32 %v1815, %v1834
  %1836 = vdwg.mxu0
  %1837 = vmatpush.msra.mxu0 %v1333
  %1838 = vmatpush.msra.mxu0 %v1328
  %1839 = vmatpush.msra.mxu0 %v1323
  %1840 = vmatpush.msra.mxu0 %v1318
  %1841 = vmatpush.msra.mxu0 %v1313
  %1842 = vmatpush.msra.mxu0 %v1308
  %1843 = vmatpush.msra.mxu0 %v1303
  %1844 = vmatpush.msra.mxu0 %v1298
  %1845 = vmatpush.msra.mxu0 %v1293
  %1846 = vmatpush.msra.mxu0 %v1288
  %1847 = vmatpush.msra.mxu0 %v1283
  %1848 = vmatpush.msra.mxu0 %v1278
  %1849 = vmatpush.msra.mxu0 %v1273
  %1850 = vmatpush.msra.mxu0 %v1268
  %1851 = vmatpush.msra.mxu0 %v1263
  %1852 = vmatpush.msra.mxu0 %v1258
  %1853 = vmatmul.f32.gmra.mxu0 %v774
  %v1854 = vpop.f32.mrf.mxu0
  %v1855 = vadd.f32 %v1835, %v1854
  %1856 = vdwg.mxu0
  %1857 = vmatpush.msra.mxu0 0.0
  %1858 = vmatpush.msra.mxu0 0.0
  %1859 = vmatpush.msra.mxu0 0.0
  %1860 = vmatpush.msra.mxu0 0.0
  %1861 = vmatpush.msra.mxu0 0.0
  %1862 = vmatpush.msra.mxu0 0.0
  %1863 = vmatpush.msra.mxu0 0.0
  %1864 = vmatpush.msra.mxu0 %v1378
  %1865 = vmatpush.msra.mxu0 %v1373
  %1866 = vmatpush.msra.mxu0 %v1368
  %1867 = vmatpush.msra.mxu0 %v1363
  %1868 = vmatpush.msra.mxu0 %v1358
  %1869 = vmatpush.msra.mxu0 %v1353
  %1870 = vmatpush.msra.mxu0 %v1348
  %1871 = vmatpush.msra.mxu0 %v1343
  %1872 = vmatpush.msra.mxu0 %v1338
  %1873 = vmatmul.f32.gmra.mxu0 %v1395
  %v1874 = vpop.f32.mrf.mxu0
  %v1875 = vadd.f32 %v1855, %v1874
  %1876 = vdwg.mxu0
  %1877 = vmatpush.msra.mxu0 %v854
  %1878 = vmatpush.msra.mxu0 %v849
  %1879 = vmatpush.msra.mxu0 %v844
  %1880 = vmatpush.msra.mxu0 %v839
  %1881 = vmatpush.msra.mxu0 %v834
  %1882 = vmatpush.msra.mxu0 %v829
  %1883 = vmatpush.msra.mxu0 %v824
  %1884 = vmatpush.msra.mxu0 %v819
  %1885 = vmatpush.msra.mxu0 %v814
  %1886 = vmatpush.msra.mxu0 %v809
  %1887 = vmatpush.msra.mxu0 %v804
  %1888 = vmatpush.msra.mxu0 %v799
  %1889 = vmatpush.msra.mxu0 %v794
  %1890 = vmatpush.msra.mxu0 %v789
  %1891 = vmatpush.msra.mxu0 %v784
  %1892 = vmatpush.msra.mxu0 %v779
  %1893 = vmatmul.f32.gmra.mxu0 %v768
  %v1894 = vpop.f32.mrf.mxu0
  %v1895 = vadd.f32 %v1386, %v1894
  %1896 = vdwg.mxu0
  %1897 = vmatpush.msra.mxu0 %v934
  %1898 = vmatpush.msra.mxu0 %v929
  %1899 = vmatpush.msra.mxu0 %v924
  %1900 = vmatpush.msra.mxu0 %v919
  %1901 = vmatpush.msra.mxu0 %v914
  %1902 = vmatpush.msra.mxu0 %v909
  %1903 = vmatpush.msra.mxu0 %v904
  %1904 = vmatpush.msra.mxu0 %v899
  %1905 = vmatpush.msra.mxu0 %v894
  %1906 = vmatpush.msra.mxu0 %v889
  %1907 = vmatpush.msra.mxu0 %v884
  %1908 = vmatpush.msra.mxu0 %v879
  %1909 = vmatpush.msra.mxu0 %v874
  %1910 = vmatpush.msra.mxu0 %v869
  %1911 = vmatpush.msra.mxu0 %v864
  %1912 = vmatpush.msra.mxu0 %v859
  %1913 = vmatmul.f32.gmra.mxu0 %v769
  %v1914 = vpop.f32.mrf.mxu0
  %v1915 = vadd.f32 %v1895, %v1914
  %1916 = vdwg.mxu0
  %1917 = vmatpush.msra.mxu0 %v1014
  %1918 = vmatpush.msra.mxu0 %v1009
  %1919 = vmatpush.msra.mxu0 %v1004
  %1920 = vmatpush.msra.mxu0 %v999
  %1921 = vmatpush.msra.mxu0 %v994
  %1922 = vmatpush.msra.mxu0 %v989
  %1923 = vmatpush.msra.mxu0 %v984
  %1924 = vmatpush.msra.mxu0 %v979
  %1925 = vmatpush.msra.mxu0 %v974
  %1926 = vmatpush.msra.mxu0 %v969
  %1927 = vmatpush.msra.mxu0 %v964
  %1928 = vmatpush.msra.mxu0 %v959
  %1929 = vmatpush.msra.mxu0 %v954
  %1930 = vmatpush.msra.mxu0 %v949
  %1931 = vmatpush.msra.mxu0 %v944
  %1932 = vmatpush.msra.mxu0 %v939
  %1933 = vmatmul.f32.gmra.mxu0 %v770
  %v1934 = vpop.f32.mrf.mxu0
  %v1935 = vadd.f32 %v1915, %v1934
  %1936 = vdwg.mxu0
  %1937 = vmatpush.msra.mxu0 %v1094
  %1938 = vmatpush.msra.mxu0 %v1089
  %1939 = vmatpush.msra.mxu0 %v1084
  %1940 = vmatpush.msra.mxu0 %v1079
  %1941 = vmatpush.msra.mxu0 %v1074
  %1942 = vmatpush.msra.mxu0 %v1069
  %1943 = vmatpush.msra.mxu0 %v1064
  %1944 = vmatpush.msra.mxu0 %v1059
  %1945 = vmatpush.msra.mxu0 %v1054
  %1946 = vmatpush.msra.mxu0 %v1049
  %1947 = vmatpush.msra.mxu0 %v1044
  %1948 = vmatpush.msra.mxu0 %v1039
  %1949 = vmatpush.msra.mxu0 %v1034
  %1950 = vmatpush.msra.mxu0 %v1029
  %1951 = vmatpush.msra.mxu0 %v1024
  %1952 = vmatpush.msra.mxu0 %v1019
  %1953 = vmatmul.f32.gmra.mxu0 %v771
  %v1954 = vpop.f32.mrf.mxu0
  %v1955 = vadd.f32 %v1935, %v1954
  %1956 = vdwg.mxu0
  %1957 = vmatpush.msra.mxu0 %v1174
  %1958 = vmatpush.msra.mxu0 %v1169
  %1959 = vmatpush.msra.mxu0 %v1164
  %1960 = vmatpush.msra.mxu0 %v1159
  %1961 = vmatpush.msra.mxu0 %v1154
  %1962 = vmatpush.msra.mxu0 %v1149
  %1963 = vmatpush.msra.mxu0 %v1144
  %1964 = vmatpush.msra.mxu0 %v1139
  %1965 = vmatpush.msra.mxu0 %v1134
  %1966 = vmatpush.msra.mxu0 %v1129
  %1967 = vmatpush.msra.mxu0 %v1124
  %1968 = vmatpush.msra.mxu0 %v1119
  %1969 = vmatpush.msra.mxu0 %v1114
  %1970 = vmatpush.msra.mxu0 %v1109
  %1971 = vmatpush.msra.mxu0 %v1104
  %1972 = vmatpush.msra.mxu0 %v1099
  %1973 = vmatmul.f32.gmra.mxu0 %v772
  %v1974 = vpop.f32.mrf.mxu0
  %v1975 = vadd.f32 %v1955, %v1974
  %1976 = vdwg.mxu0
  %1977 = vmatpush.msra.mxu0 %v1254
  %1978 = vmatpush.msra.mxu0 %v1249
  %1979 = vmatpush.msra.mxu0 %v1244
  %1980 = vmatpush.msra.mxu0 %v1239
  %1981 = vmatpush.msra.mxu0 %v1234
  %1982 = vmatpush.msra.mxu0 %v1229
  %1983 = vmatpush.msra.mxu0 %v1224
  %1984 = vmatpush.msra.mxu0 %v1219
  %1985 = vmatpush.msra.mxu0 %v1214
  %1986 = vmatpush.msra.mxu0 %v1209
  %1987 = vmatpush.msra.mxu0 %v1204
  %1988 = vmatpush.msra.mxu0 %v1199
  %1989 = vmatpush.msra.mxu0 %v1194
  %1990 = vmatpush.msra.mxu0 %v1189
  %1991 = vmatpush.msra.mxu0 %v1184
  %1992 = vmatpush.msra.mxu0 %v1179
  %1993 = vmatmul.f32.gmra.mxu0 %v773
  %v1994 = vpop.f32.mrf.mxu0
  %v1995 = vadd.f32 %v1975, %v1994
  %1996 = vdwg.mxu0
  %1997 = vmatpush.msra.mxu0 %v1334
  %1998 = vmatpush.msra.mxu0 %v1329
  %1999 = vmatpush.msra.mxu0 %v1324
  %2000 = vmatpush.msra.mxu0 %v1319
  %2001 = vmatpush.msra.mxu0 %v1314
  %2002 = vmatpush.msra.mxu0 %v1309
  %2003 = vmatpush.msra.mxu0 %v1304
  %2004 = vmatpush.msra.mxu0 %v1299
  %2005 = vmatpush.msra.mxu0 %v1294
  %2006 = vmatpush.msra.mxu0 %v1289
  %2007 = vmatpush.msra.mxu0 %v1284
  %2008 = vmatpush.msra.mxu0 %v1279
  %2009 = vmatpush.msra.mxu0 %v1274
  %2010 = vmatpush.msra.mxu0 %v1269
  %2011 = vmatpush.msra.mxu0 %v1264
  %2012 = vmatpush.msra.mxu0 %v1259
  %2013 = vmatmul.f32.gmra.mxu0 %v774
  %v2014 = vpop.f32.mrf.mxu0
  %v2015 = vadd.f32 %v1995, %v2014
  %2016 = vdwg.mxu0
  %2017 = vmatpush.msra.mxu0 0.0
  %2018 = vmatpush.msra.mxu0 0.0
  %2019 = vmatpush.msra.mxu0 0.0
  %2020 = vmatpush.msra.mxu0 0.0
  %2021 = vmatpush.msra.mxu0 0.0
  %2022 = vmatpush.msra.mxu0 0.0
  %2023 = vmatpush.msra.mxu0 0.0
  %2024 = vmatpush.msra.mxu0 %v1379
  %2025 = vmatpush.msra.mxu0 %v1374
  %2026 = vmatpush.msra.mxu0 %v1369
  %2027 = vmatpush.msra.mxu0 %v1364
  %2028 = vmatpush.msra.mxu0 %v1359
  %2029 = vmatpush.msra.mxu0 %v1354
  %2030 = vmatpush.msra.mxu0 %v1349
  %2031 = vmatpush.msra.mxu0 %v1344
  %2032 = vmatpush.msra.mxu0 %v1339
  %2033 = vmatmul.f32.gmra.mxu0 %v1395
  %v2034 = vpop.f32.mrf.mxu0
  %v2035 = vadd.f32 %v2015, %v2034
  %2036 = vdwg.mxu0
  %2037 = vmatpush.msra.mxu0 %v855
  %2038 = vmatpush.msra.mxu0 %v850
  %2039 = vmatpush.msra.mxu0 %v845
  %2040 = vmatpush.msra.mxu0 %v840
  %2041 = vmatpush.msra.mxu0 %v835
  %2042 = vmatpush.msra.mxu0 %v830
  %2043 = vmatpush.msra.mxu0 %v825
  %2044 = vmatpush.msra.mxu0 %v820
  %2045 = vmatpush.msra.mxu0 %v815
  %2046 = vmatpush.msra.mxu0 %v810
  %2047 = vmatpush.msra.mxu0 %v805
  %2048 = vmatpush.msra.mxu0 %v800
  %2049 = vmatpush.msra.mxu0 %v795
  %2050 = vmatpush.msra.mxu0 %v790
  %2051 = vmatpush.msra.mxu0 %v785
  %2052 = vmatpush.msra.mxu0 %v780
  %2053 = vmatmul.f32.gmra.mxu0 %v768
  %v2054 = vpop.f32.mrf.mxu0
  %v2055 = vadd.f32 %v1387, %v2054
  %2056 = vdwg.mxu0
  %2057 = vmatpush.msra.mxu0 %v935
  %2058 = vmatpush.msra.mxu0 %v930
  %2059 = vmatpush.msra.mxu0 %v925
  %2060 = vmatpush.msra.mxu0 %v920
  %2061 = vmatpush.msra.mxu0 %v915
  %2062 = vmatpush.msra.mxu0 %v910
  %2063 = vmatpush.msra.mxu0 %v905
  %2064 = vmatpush.msra.mxu0 %v900
  %2065 = vmatpush.msra.mxu0 %v895
  %2066 = vmatpush.msra.mxu0 %v890
  %2067 = vmatpush.msra.mxu0 %v885
  %2068 = vmatpush.msra.mxu0 %v880
  %2069 = vmatpush.msra.mxu0 %v875
  %2070 = vmatpush.msra.mxu0 %v870
  %2071 = vmatpush.msra.mxu0 %v865
  %2072 = vmatpush.msra.mxu0 %v860
  %2073 = vmatmul.f32.gmra.mxu0 %v769
  %v2074 = vpop.f32.mrf.mxu0
  %v2075 = vadd.f32 %v2055, %v2074
  %2076 = vdwg.mxu0
  %2077 = vmatpush.msra.mxu0 %v1015
  %2078 = vmatpush.msra.mxu0 %v1010
  %2079 = vmatpush.msra.mxu0 %v1005
  %2080 = vmatpush.msra.mxu0 %v1000
  %2081 = vmatpush.msra.mxu0 %v995
  %2082 = vmatpush.msra.mxu0 %v990
  %2083 = vmatpush.msra.mxu0 %v985
  %2084 = vmatpush.msra.mxu0 %v980
  %2085 = vmatpush.msra.mxu0 %v975
  %2086 = vmatpush.msra.mxu0 %v970
  %2087 = vmatpush.msra.mxu0 %v965
  %2088 = vmatpush.msra.mxu0 %v960
  %2089 = vmatpush.msra.mxu0 %v955
  %2090 = vmatpush.msra.mxu0 %v950
  %2091 = vmatpush.msra.mxu0 %v945
  %2092 = vmatpush.msra.mxu0 %v940
  %2093 = vmatmul.f32.gmra.mxu0 %v770
  %v2094 = vpop.f32.mrf.mxu0
  %v2095 = vadd.f32 %v2075, %v2094
  %2096 = vdwg.mxu0
  %2097 = vmatpush.msra.mxu0 %v1095
  %2098 = vmatpush.msra.mxu0 %v1090
  %2099 = vmatpush.msra.mxu0 %v1085
  %2100 = vmatpush.msra.mxu0 %v1080
  %2101 = vmatpush.msra.mxu0 %v1075
  %2102 = vmatpush.msra.mxu0 %v1070
  %2103 = vmatpush.msra.mxu0 %v1065
  %2104 = vmatpush.msra.mxu0 %v1060
  %2105 = vmatpush.msra.mxu0 %v1055
  %2106 = vmatpush.msra.mxu0 %v1050
  %2107 = vmatpush.msra.mxu0 %v1045
  %2108 = vmatpush.msra.mxu0 %v1040
  %2109 = vmatpush.msra.mxu0 %v1035
  %2110 = vmatpush.msra.mxu0 %v1030
  %2111 = vmatpush.msra.mxu0 %v1025
  %2112 = vmatpush.msra.mxu0 %v1020
  %2113 = vmatmul.f32.gmra.mxu0 %v771
  %v2114 = vpop.f32.mrf.mxu0
  %v2115 = vadd.f32 %v2095, %v2114
  %2116 = vdwg.mxu0
  %2117 = vmatpush.msra.mxu0 %v1175
  %2118 = vmatpush.msra.mxu0 %v1170
  %2119 = vmatpush.msra.mxu0 %v1165
  %2120 = vmatpush.msra.mxu0 %v1160
  %2121 = vmatpush.msra.mxu0 %v1155
  %2122 = vmatpush.msra.mxu0 %v1150
  %2123 = vmatpush.msra.mxu0 %v1145
  %2124 = vmatpush.msra.mxu0 %v1140
  %2125 = vmatpush.msra.mxu0 %v1135
  %2126 = vmatpush.msra.mxu0 %v1130
  %2127 = vmatpush.msra.mxu0 %v1125
  %2128 = vmatpush.msra.mxu0 %v1120
  %2129 = vmatpush.msra.mxu0 %v1115
  %2130 = vmatpush.msra.mxu0 %v1110
  %2131 = vmatpush.msra.mxu0 %v1105
  %2132 = vmatpush.msra.mxu0 %v1100
  %2133 = vmatmul.f32.gmra.mxu0 %v772
  %v2134 = vpop.f32.mrf.mxu0
  %v2135 = vadd.f32 %v2115, %v2134
  %2136 = vdwg.mxu0
  %2137 = vmatpush.msra.mxu0 %v1255
  %2138 = vmatpush.msra.mxu0 %v1250
  %2139 = vmatpush.msra.mxu0 %v1245
  %2140 = vmatpush.msra.mxu0 %v1240
  %2141 = vmatpush.msra.mxu0 %v1235
  %2142 = vmatpush.msra.mxu0 %v1230
  %2143 = vmatpush.msra.mxu0 %v1225
  %2144 = vmatpush.msra.mxu0 %v1220
  %2145 = vmatpush.msra.mxu0 %v1215
  %2146 = vmatpush.msra.mxu0 %v1210
  %2147 = vmatpush.msra.mxu0 %v1205
  %2148 = vmatpush.msra.mxu0 %v1200
  %2149 = vmatpush.msra.mxu0 %v1195
  %2150 = vmatpush.msra.mxu0 %v1190
  %2151 = vmatpush.msra.mxu0 %v1185
  %2152 = vmatpush.msra.mxu0 %v1180
  %2153 = vmatmul.f32.gmra.mxu0 %v773
  %v2154 = vpop.f32.mrf.mxu0
  %v2155 = vadd.f32 %v2135, %v2154
  %2156 = vdwg.mxu0
  %2157 = vmatpush.msra.mxu0 %v1335
  %2158 = vmatpush.msra.mxu0 %v1330
  %2159 = vmatpush.msra.mxu0 %v1325
  %2160 = vmatpush.msra.mxu0 %v1320
  %2161 = vmatpush.msra.mxu0 %v1315
  %2162 = vmatpush.msra.mxu0 %v1310
  %2163 = vmatpush.msra.mxu0 %v1305
  %2164 = vmatpush.msra.mxu0 %v1300
  %2165 = vmatpush.msra.mxu0 %v1295
  %2166 = vmatpush.msra.mxu0 %v1290
  %2167 = vmatpush.msra.mxu0 %v1285
  %2168 = vmatpush.msra.mxu0 %v1280
  %2169 = vmatpush.msra.mxu0 %v1275
  %2170 = vmatpush.msra.mxu0 %v1270
  %2171 = vmatpush.msra.mxu0 %v1265
  %2172 = vmatpush.msra.mxu0 %v1260
  %2173 = vmatmul.f32.gmra.mxu0 %v774
  %v2174 = vpop.f32.mrf.mxu0
  %v2175 = vadd.f32 %v2155, %v2174
  %2176 = vdwg.mxu0
  %2177 = vmatpush.msra.mxu0 0.0
  %2178 = vmatpush.msra.mxu0 0.0
  %2179 = vmatpush.msra.mxu0 0.0
  %2180 = vmatpush.msra.mxu0 0.0
  %2181 = vmatpush.msra.mxu0 0.0
  %2182 = vmatpush.msra.mxu0 0.0
  %2183 = vmatpush.msra.mxu0 0.0
  %2184 = vmatpush.msra.mxu0 %v1380
  %2185 = vmatpush.msra.mxu0 %v1375
  %2186 = vmatpush.msra.mxu0 %v1370
  %2187 = vmatpush.msra.mxu0 %v1365
  %2188 = vmatpush.msra.mxu0 %v1360
  %2189 = vmatpush.msra.mxu0 %v1355
  %2190 = vmatpush.msra.mxu0 %v1350
  %2191 = vmatpush.msra.mxu0 %v1345
  %2192 = vmatpush.msra.mxu0 %v1340
  %2193 = vmatmul.f32.gmra.mxu0 %v1395
  %v2194 = vpop.f32.mrf.mxu0
  %v2195 = vadd.f32 %v2175, %v2194
  %2196 = vdwg.mxu0
  %v2197 = vmax.f32 %v1555, 0.0
  %v2198 = vmax.f32 %v1715, 0.0
  %v2199 = vmax.f32 %v1875, 0.0
  %v2200 = vmax.f32 %v2035, 0.0
  %v2201 = vmax.f32 %v2195, 0.0
  %v2202 = vld [vmem:[%s11] sm:$0xff]
  %v2203 = vld [vmem:[%s11 + $0x8] sm:$0xff]
  %v2204 = vld [vmem:[%s11 + $0x10] sm:$0xff]
  %v2205 = vld [vmem:[%s11 + $0x18] sm:$0xff]
  %v2206 = vld [vmem:[%s11 + $0x20] sm:$0xff]
  %v2207 = vld [vmem:[%s11 + $0x28] sm:$0xff]
  %v2208 = vld [vmem:[%s11 + $0x30] sm:$0xff]
  %v2209 = vld [vmem:[%s11 + $0x38] sm:$0xff]
  %v2210 = vld [vmem:[%s11 + $0x40] sm:$0xff]
  %v2211 = vld [vmem:[%s11 + $0x48] sm:$0xff]
  %v2212 = vld [vmem:[%s11 + $0x50] sm:$0xff]
  %v2213 = vld [vmem:[%s11 + $0x58] sm:$0xff]
  %v2214 = vld [vmem:[%s11 + $0x60] sm:$0xff]
  %v2215 = vld [vmem:[%s11 + $0x68] sm:$0xff]
  %v2216 = vld [vmem:[%s11 + $0x70] sm:$0xff]
  %v2217 = vld [vmem:[%s11 + $0x78] sm:$0xff]
  %v2218 = vld [vmem:[%s11 + $0x80] sm:$0xff]
  %v2219 = vld [vmem:[%s11 + $0x88] sm:$0xff]
  %v2220 = vld [vmem:[%s11 + $0x90] sm:$0xff]
  %v2221 = vld [vmem:[%s11 + $0x98] sm:$0xff]
  %v2222 = vld [vmem:[%s11 + $0xa0] sm:$0xff]
  %v2223 = vld [vmem:[%s11 + $0xa8] sm:$0xff]
  %v2224 = vld [vmem:[%s11 + $0xb0] sm:$0xff]
  %v2225 = vld [vmem:[%s11 + $0xb8] sm:$0xff]
  %v2226 = vld [vmem:[%s11 + $0xc0] sm:$0xff]
  %v2227 = vld [vmem:[%s11 + $0xc8] sm:$0xff]
  %v2228 = vld [vmem:[%s11 + $0xd0] sm:$0xff]
  %v2229 = vld [vmem:[%s11 + $0xd8] sm:$0xff]
  %v2230 = vld [vmem:[%s11 + $0xe0] sm:$0xff]
  %v2231 = vld [vmem:[%s11 + $0xe8] sm:$0xff]
  %v2232 = vld [vmem:[%s11 + $0xf0] sm:$0xff]
  %v2233 = vld [vmem:[%s11 + $0xf8] sm:$0xff]
  %v2234 = vld [vmem:[%s11 + $0x100] sm:$0xff]
  %v2235 = vld [vmem:[%s11 + $0x108] sm:$0xff]
  %v2236 = vld [vmem:[%s11 + $0x110] sm:$0xff]
  %v2237 = vld [vmem:[%s11 + $0x118] sm:$0xff]
  %v2238 = vld [vmem:[%s11 + $0x120] sm:$0xff]
  %v2239 = vld [vmem:[%s11 + $0x128] sm:$0xff]
  %v2240 = vld [vmem:[%s11 + $0x130] sm:$0xff]
  %v2241 = vld [vmem:[%s11 + $0x138] sm:$0xff]
  %v2242 = vld [vmem:[%s11 + $0x140] sm:$0xff]
  %v2243 = vld [vmem:[%s11 + $0x148] sm:$0xff]
  %v2244 = vld [vmem:[%s11 + $0x150] sm:$0xff]
  %v2245 = vld [vmem:[%s11 + $0x158] sm:$0xff]
  %v2246 = vld [vmem:[%s11 + $0x160] sm:$0xff]
  %v2247 = vld [vmem:[%s11 + $0x168] sm:$0xff]
  %v2248 = vld [vmem:[%s11 + $0x170] sm:$0xff]
  %v2249 = vld [vmem:[%s11 + $0x178] sm:$0xff]
  %v2250 = vld [vmem:[%s11 + $0x180] sm:$0xff]
  %v2251 = vld [vmem:[%s11 + $0x188] sm:$0xff]
  %v2252 = vld [vmem:[%s11 + $0x190] sm:$0xff]
  %v2253 = vld [vmem:[%s11 + $0x198] sm:$0xff]
  %v2254 = vld [vmem:[%s11 + $0x1a0] sm:$0xff]
  %v2255 = vld [vmem:[%s11 + $0x1a8] sm:$0xff]
  %v2256 = vld [vmem:[%s11 + $0x1b0] sm:$0xff]
  %v2257 = vld [vmem:[%s11 + $0x1b8] sm:$0xff]
  %v2258 = vld [vmem:[%s11 + $0x1c0] sm:$0xff]
  %v2259 = vld [vmem:[%s11 + $0x1c8] sm:$0xff]
  %v2260 = vld [vmem:[%s11 + $0x1d0] sm:$0xff]
  %v2261 = vld [vmem:[%s11 + $0x1d8] sm:$0xff]
  %v2262 = vld [vmem:[%s11 + $0x1e0] sm:$0xff]
  %v2263 = vld [vmem:[%s11 + $0x1e8] sm:$0xff]
  %v2264 = vld [vmem:[%s11 + $0x1f0] sm:$0xff]
  %v2265 = vld [vmem:[%s11 + $0x1f8] sm:$0xff]
  %v2266 = vld [vmem:[%s11 + $0x200] sm:$0xff]
  %v2267 = vld [vmem:[%s11 + $0x208] sm:$0xff]
  %v2268 = vld [vmem:[%s11 + $0x210] sm:$0xff]
  %v2269 = vld [vmem:[%s11 + $0x218] sm:$0xff]
  %v2270 = vld [vmem:[%s11 + $0x220] sm:$0xff]
  %v2271 = vld [vmem:[%s11 + $0x228] sm:$0xff]
  %v2272 = vld [vmem:[%s11 + $0x230] sm:$0xff]
  %v2273 = vld [vmem:[%s11 + $0x238] sm:$0xff]
  %v2274 = vld [vmem:[%s11 + $0x240] sm:$0xff]
  %v2275 = vld [vmem:[%s11 + $0x248] sm:$0xff]
  %v2276 = vld [vmem:[%s11 + $0x250] sm:$0xff]
  %v2277 = vld [vmem:[%s11 + $0x258] sm:$0xff]
  %v2278 = vld [vmem:[%s11 + $0x260] sm:$0xff]
  %v2279 = vld [vmem:[%s11 + $0x268] sm:$0xff]
  %v2280 = vld [vmem:[%s11 + $0x270] sm:$0xff]
  %v2281 = vld [vmem:[%s11 + $0x278] sm:$0xff]
  %v2282 = vld [vmem:[%s11 + $0x280] sm:$0xff]
  %v2283 = vld [vmem:[%s11 + $0x288] sm:$0xff]
  %v2284 = vld [vmem:[%s11 + $0x290] sm:$0xff]
  %v2285 = vld [vmem:[%s11 + $0x298] sm:$0xff]
  %v2286 = vld [vmem:[%s11 + $0x2a0] sm:$0xff]
  %v2287 = vld [vmem:[%s11 + $0x2a8] sm:$0xff]
  %v2288 = vld [vmem:[%s11 + $0x2b0] sm:$0xff]
  %v2289 = vld [vmem:[%s11 + $0x2b8] sm:$0xff]
  %v2290 = vld [vmem:[%s11 + $0x2c0] sm:$0xff]
  %v2291 = vld [vmem:[%s11 + $0x2c8] sm:$0xff]
  %v2292 = vld [vmem:[%s11 + $0x2d0] sm:$0xff]
  %v2293 = vld [vmem:[%s11 + $0x2d8] sm:$0xff]
  %v2294 = vld [vmem:[%s11 + $0x2e0] sm:$0xff]
  %v2295 = vld [vmem:[%s11 + $0x2e8] sm:$0xff]
  %v2296 = vld [vmem:[%s11 + $0x2f0] sm:$0xff]
  %v2297 = vld [vmem:[%s11 + $0x2f8] sm:$0xff]
  %v2298 = vld [vmem:[%s11 + $0x300] sm:$0xff]
  %v2299 = vld [vmem:[%s11 + $0x308] sm:$0xff]
  %v2300 = vld [vmem:[%s11 + $0x310] sm:$0xff]
  %v2301 = vld [vmem:[%s11 + $0x318] sm:$0xff]
  %v2302 = vld [vmem:[%s11 + $0x320] sm:$0xff]
  %v2303 = vld [vmem:[%s11 + $0x328] sm:$0xff]
  %v2304 = vld [vmem:[%s11 + $0x330] sm:$0xff]
  %v2305 = vld [vmem:[%s11 + $0x338] sm:$0xff]
  %v2306 = vld [vmem:[%s11 + $0x340] sm:$0xff]
  %v2307 = vld [vmem:[%s11 + $0x348] sm:$0xff]
  %v2308 = vld [vmem:[%s11 + $0x350] sm:$0xff]
  %v2309 = vld [vmem:[%s11 + $0x358] sm:$0xff]
  %v2310 = vld [vmem:[%s11 + $0x360] sm:$0xff]
  %v2311 = vld [vmem:[%s11 + $0x368] sm:$0xff]
  %v2312 = vld [vmem:[%s11 + $0x370] sm:$0xff]
  %v2313 = vld [vmem:[%s11 + $0x378] sm:$0xff]
  %v2314 = vld [vmem:[%s11 + $0x380] sm:$0xff]
  %v2315 = vld [vmem:[%s11 + $0x388] sm:$0xff]
  %v2316 = vld [vmem:[%s11 + $0x390] sm:$0xff]
  %v2317 = vld [vmem:[%s11 + $0x398] sm:$0xff]
  %v2318 = vld [vmem:[%s11 + $0x3a0] sm:$0xff]
  %v2319 = vld [vmem:[%s11 + $0x3a8] sm:$0xff]
  %v2320 = vld [vmem:[%s11 + $0x3b0] sm:$0xff]
  %v2321 = vld [vmem:[%s11 + $0x3b8] sm:$0xff]
  %v2322 = vld [vmem:[%s11 + $0x3c0] sm:$0xff]
  %v2323 = vld [vmem:[%s11 + $0x3c8] sm:$0xff]
  %v2324 = vld [vmem:[%s11 + $0x3d0] sm:$0xff]
  %v2325 = vld [vmem:[%s11 + $0x3d8] sm:$0xff]
  %v2326 = vld [vmem:[%s11 + $0x3e0] sm:$0xff]
  %v2327 = vld [vmem:[%s11 + $0x3e8] sm:$0xff]
  %v2328 = vld [vmem:[%s11 + $0x3f0] sm:$0xff]
  %v2329 = vld [vmem:[%s11 + $0x3f8] sm:$0xff]
  %v2330 = vld [vmem:[%s11 + $0x400] sm:$0xff]
  %v2331 = vld [vmem:[%s11 + $0x408] sm:$0xff]
  %v2332 = vld [vmem:[%s11 + $0x410] sm:$0xff]
  %v2333 = vld [vmem:[%s11 + $0x418] sm:$0xff]
  %v2334 = vld [vmem:[%s11 + $0x420] sm:$0xff]
  %v2335 = vld [vmem:[%s11 + $0x428] sm:$0xff]
  %v2336 = vld [vmem:[%s11 + $0x430] sm:$0xff]
  %v2337 = vld [vmem:[%s11 + $0x438] sm:$0xff]
  %v2338 = vld [vmem:[%s11 + $0x440] sm:$0xff]
  %v2339 = vld [vmem:[%s11 + $0x448] sm:$0xff]
  %v2340 = vld [vmem:[%s11 + $0x450] sm:$0xff]
  %v2341 = vld [vmem:[%s11 + $0x458] sm:$0xff]
  %v2342 = vld [vmem:[%s11 + $0x460] sm:$0xff]
  %v2343 = vld [vmem:[%s11 + $0x468] sm:$0xff]
  %v2344 = vld [vmem:[%s11 + $0x470] sm:$0xff]
  %v2345 = vld [vmem:[%s11 + $0x478] sm:$0xff]
  %v2346 = vld [vmem:[%s11 + $0x480] sm:$0xff]
  %v2347 = vld [vmem:[%s11 + $0x488] sm:$0xff]
  %v2348 = vld [vmem:[%s11 + $0x490] sm:$0xff]
  %v2349 = vld [vmem:[%s11 + $0x498] sm:$0xff]
  %v2350 = vld [vmem:[%s11 + $0x4a0] sm:$0xff]
  %v2351 = vld [vmem:[%s11 + $0x4a8] sm:$0xff]
  %v2352 = vld [vmem:[%s11 + $0x4b0] sm:$0xff]
  %v2353 = vld [vmem:[%s11 + $0x4b8] sm:$0xff]
  %v2354 = vld [vmem:[%s11 + $0x4c0] sm:$0xff]
  %v2355 = vld [vmem:[%s11 + $0x4c8] sm:$0xff]
  %v2356 = vld [vmem:[%s11 + $0x4d0] sm:$0xff]
  %v2357 = vld [vmem:[%s11 + $0x4d8] sm:$0xff]
  %v2358 = vld [vmem:[%s11 + $0x4e0] sm:$0xff]
  %v2359 = vld [vmem:[%s11 + $0x4e8] sm:$0xff]
  %v2360 = vld [vmem:[%s11 + $0x4f0] sm:$0xff]
  %v2361 = vld [vmem:[%s11 + $0x4f8] sm:$0xff]
  %v2362 = vld [vmem:[%s11 + $0x500] sm:$0xff]
  %v2363 = vld [vmem:[%s11 + $0x508] sm:$0xff]
  %v2364 = vld [vmem:[%s11 + $0x510] sm:$0xff]
  %v2365 = vld [vmem:[%s11 + $0x518] sm:$0xff]
  %v2366 = vld [vmem:[%s11 + $0x520] sm:$0xff]
  %v2367 = vld [vmem:[%s11 + $0x528] sm:$0xff]
  %v2368 = vld [vmem:[%s11 + $0x530] sm:$0xff]
  %v2369 = vld [vmem:[%s11 + $0x538] sm:$0xff]
  %v2370 = vld [vmem:[%s11 + $0x540] sm:$0xff]
  %v2371 = vld [vmem:[%s11 + $0x548] sm:$0xff]
  %v2372 = vld [vmem:[%s11 + $0x550] sm:$0xff]
  %v2373 = vld [vmem:[%s11 + $0x558] sm:$0xff]
  %v2374 = vld [vmem:[%s11 + $0x560] sm:$0xff]
  %v2375 = vld [vmem:[%s11 + $0x568] sm:$0xff]
  %v2376 = vld [vmem:[%s11 + $0x570] sm:$0xff]
  %v2377 = vld [vmem:[%s11 + $0x578] sm:$0xff]
  %v2378 = vld [vmem:[%s11 + $0x580] sm:$0xff]
  %v2379 = vld [vmem:[%s11 + $0x588] sm:$0xff]
  %v2380 = vld [vmem:[%s11 + $0x590] sm:$0xff]
  %v2381 = vld [vmem:[%s11 + $0x598] sm:$0xff]
  %v2382 = vld [vmem:[%s11 + $0x5a0] sm:$0xff]
  %v2383 = vld [vmem:[%s11 + $0x5a8] sm:$0xff]
  %v2384 = vld [vmem:[%s11 + $0x5b0] sm:$0xff]
  %v2385 = vld [vmem:[%s11 + $0x5b8] sm:$0xff]
  %v2386 = vld [vmem:[%s11 + $0x5c0] sm:$0xff]
  %v2387 = vld [vmem:[%s11 + $0x5c8] sm:$0xff]
  %v2388 = vld [vmem:[%s11 + $0x5d0] sm:$0xff]
  %v2389 = vld [vmem:[%s11 + $0x5d8] sm:$0xff]
  %v2390 = vld [vmem:[%s11 + $0x5e0] sm:$0xff]
  %v2391 = vld [vmem:[%s11 + $0x5e8] sm:$0xff]
  %v2392 = vld [vmem:[%s11 + $0x5f0] sm:$0xff]
  %v2393 = vld [vmem:[%s11 + $0x5f8] sm:$0xff]
  %v2394 = vld [vmem:[%s11 + $0x600] sm:$0xff]
  %v2395 = vld [vmem:[%s11 + $0x608] sm:$0xff]
  %v2396 = vld [vmem:[%s11 + $0x610] sm:$0xff]
  %v2397 = vld [vmem:[%s11 + $0x618] sm:$0xff]
  %v2398 = vld [vmem:[%s11 + $0x620] sm:$0xff]
  %v2399 = vld [vmem:[%s11 + $0x628] sm:$0xff]
  %v2400 = vld [vmem:[%s11 + $0x630] sm:$0xff]
  %v2401 = vld [vmem:[%s11 + $0x638] sm:$0xff]
  %v2402 = vld [vmem:[%s11 + $0x640] sm:$0xff]
  %v2403 = vld [vmem:[%s11 + $0x648] sm:$0xff]
  %v2404 = vld [vmem:[%s11 + $0x650] sm:$0xff]
  %v2405 = vld [vmem:[%s11 + $0x658] sm:$0xff]
  %v2406 = vld [vmem:[%s11 + $0x660] sm:$0xff]
  %v2407 = vld [vmem:[%s11 + $0x668] sm:$0xff]
  %v2408 = vld [vmem:[%s11 + $0x670] sm:$0xff]
  %v2409 = vld [vmem:[%s11 + $0x678] sm:$0xff]
  %v2410 = vld [vmem:[%s11 + $0x680] sm:$0xff]
  %v2411 = vld [vmem:[%s11 + $0x688] sm:$0xff]
  %v2412 = vld [vmem:[%s11 + $0x690] sm:$0xff]
  %v2413 = vld [vmem:[%s11 + $0x698] sm:$0xff]
  %v2414 = vld [vmem:[%s11 + $0x6a0] sm:$0xff]
  %v2415 = vld [vmem:[%s11 + $0x6a8] sm:$0xff]
  %v2416 = vld [vmem:[%s11 + $0x6b0] sm:$0xff]
  %v2417 = vld [vmem:[%s11 + $0x6b8] sm:$0xff]
  %v2418 = vld [vmem:[%s11 + $0x6c0] sm:$0xff]
  %v2419 = vld [vmem:[%s11 + $0x6c8] sm:$0xff]
  %v2420 = vld [vmem:[%s11 + $0x6d0] sm:$0xff]
  %v2421 = vld [vmem:[%s11 + $0x6d8] sm:$0xff]
  %v2422 = vld [vmem:[%s11 + $0x6e0] sm:$0xff]
  %v2423 = vld [vmem:[%s11 + $0x6e8] sm:$0xff]
  %v2424 = vld [vmem:[%s11 + $0x6f0] sm:$0xff]
  %v2425 = vld [vmem:[%s11 + $0x6f8] sm:$0xff]
  %v2426 = vld [vmem:[%s11 + $0x700] sm:$0xff]
  %v2427 = vld [vmem:[%s11 + $0x708] sm:$0xff]
  %v2428 = vld [vmem:[%s11 + $0x710] sm:$0xff]
  %v2429 = vld [vmem:[%s11 + $0x718] sm:$0xff]
  %v2430 = vld [vmem:[%s11 + $0x720] sm:$0xff]
  %v2431 = vld [vmem:[%s11 + $0x728] sm:$0xff]
  %v2432 = vld [vmem:[%s11 + $0x730] sm:$0xff]
  %v2433 = vld [vmem:[%s11 + $0x738] sm:$0xff]
  %v2434 = vld [vmem:[%s11 + $0x740] sm:$0xff]
  %v2435 = vld [vmem:[%s11 + $0x748] sm:$0xff]
  %v2436 = vld [vmem:[%s11 + $0x750] sm:$0xff]
  %v2437 = vld [vmem:[%s11 + $0x758] sm:$0xff]
  %v2438 = vld [vmem:[%s11 + $0x760] sm:$0xff]
  %v2439 = vld [vmem:[%s11 + $0x768] sm:$0xff]
  %v2440 = vld [vmem:[%s11 + $0x770] sm:$0xff]
  %v2441 = vld [vmem:[%s11 + $0x778] sm:$0xff]
  %v2442 = vld [vmem:[%s11 + $0x780] sm:$0xff]
  %v2443 = vld [vmem:[%s11 + $0x788] sm:$0xff]
  %v2444 = vld [vmem:[%s11 + $0x790] sm:$0xff]
  %v2445 = vld [vmem:[%s11 + $0x798] sm:$0xff]
  %v2446 = vld [vmem:[%s11 + $0x7a0] sm:$0xff]
  %v2447 = vld [vmem:[%s11 + $0x7a8] sm:$0xff]
  %v2448 = vld [vmem:[%s11 + $0x7b0] sm:$0xff]
  %v2449 = vld [vmem:[%s11 + $0x7b8] sm:$0xff]
  %v2450 = vld [vmem:[%s11 + $0x7c0] sm:$0xff]
  %v2451 = vld [vmem:[%s11 + $0x7c8] sm:$0xff]
  %v2452 = vld [vmem:[%s11 + $0x7d0] sm:$0xff]
  %v2453 = vld [vmem:[%s11 + $0x7d8] sm:$0xff]
  %v2454 = vld [vmem:[%s11 + $0x7e0] sm:$0xff]
  %v2455 = vld [vmem:[%s11 + $0x7e8] sm:$0xff]
  %v2456 = vld [vmem:[%s11 + $0x7f0] sm:$0xff]
  %v2457 = vld [vmem:[%s11 + $0x7f8] sm:$0xff]
  %v2458 = vld [vmem:[%s11 + $0x800] sm:$0xff]
  %v2459 = vld [vmem:[%s11 + $0x808] sm:$0xff]
  %v2460 = vld [vmem:[%s11 + $0x810] sm:$0xff]
  %v2461 = vld [vmem:[%s11 + $0x818] sm:$0xff]
  %v2462 = vld [vmem:[%s11 + $0x820] sm:$0xff]
  %v2463 = vld [vmem:[%s11 + $0x828] sm:$0xff]
  %v2464 = vld [vmem:[%s11 + $0x830] sm:$0xff]
  %v2465 = vld [vmem:[%s11 + $0x838] sm:$0xff]
  %v2466 = vld [vmem:[%s11 + $0x840] sm:$0xff]
  %v2467 = vld [vmem:[%s11 + $0x848] sm:$0xff]
  %v2468 = vld [vmem:[%s11 + $0x850] sm:$0xff]
  %v2469 = vld [vmem:[%s11 + $0x858] sm:$0xff]
  %v2470 = vld [vmem:[%s11 + $0x860] sm:$0xff]
  %v2471 = vld [vmem:[%s11 + $0x868] sm:$0xff]
  %v2472 = vld [vmem:[%s11 + $0x870] sm:$0xff]
  %v2473 = vld [vmem:[%s11 + $0x878] sm:$0xff]
  %v2474 = vld [vmem:[%s11 + $0x880] sm:$0xff]
  %v2475 = vld [vmem:[%s11 + $0x888] sm:$0xff]
  %v2476 = vld [vmem:[%s11 + $0x890] sm:$0xff]
  %v2477 = vld [vmem:[%s11 + $0x898] sm:$0xff]
  %v2478 = vld [vmem:[%s11 + $0x8a0] sm:$0xff]
  %v2479 = vld [vmem:[%s11 + $0x8a8] sm:$0xff]
  %v2480 = vld [vmem:[%s11 + $0x8b0] sm:$0xff]
  %v2481 = vld [vmem:[%s11 + $0x8b8] sm:$0xff]
  %v2482 = vld [vmem:[%s11 + $0x8c0] sm:$0xff]
  %v2483 = vld [vmem:[%s11 + $0x8c8] sm:$0xff]
  %v2484 = vld [vmem:[%s11 + $0x8d0] sm:$0xff]
  %v2485 = vld [vmem:[%s11 + $0x8d8] sm:$0xff]
  %v2486 = vld [vmem:[%s11 + $0x8e0] sm:$0xff]
  %v2487 = vld [vmem:[%s11 + $0x8e8] sm:$0xff]
  %v2488 = vld [vmem:[%s11 + $0x8f0] sm:$0xff]
  %v2489 = vld [vmem:[%s11 + $0x8f8] sm:$0xff]
  %v2490 = vld [vmem:[%s11 + $0x900] sm:$0xff]
  %v2491 = vld [vmem:[%s11 + $0x908] sm:$0xff]
  %v2492 = vld [vmem:[%s11 + $0x910] sm:$0xff]
  %v2493 = vld [vmem:[%s11 + $0x918] sm:$0xff]
  %v2494 = vld [vmem:[%s11 + $0x920] sm:$0xff]
  %v2495 = vld [vmem:[%s11 + $0x928] sm:$0xff]
  %v2496 = vld [vmem:[%s11 + $0x930] sm:$0xff]
  %v2497 = vld [vmem:[%s11 + $0x938] sm:$0xff]
  %v2498 = vld [vmem:[%s11 + $0x940] sm:$0xff]
  %v2499 = vld [vmem:[%s11 + $0x948] sm:$0xff]
  %v2500 = vld [vmem:[%s11 + $0x950] sm:$0xff]
  %v2501 = vld [vmem:[%s11 + $0x958] sm:$0xff]
  %v2502 = vld [vmem:[%s11 + $0x960] sm:$0xff]
  %v2503 = vld [vmem:[%s11 + $0x968] sm:$0xff]
  %v2504 = vld [vmem:[%s11 + $0x970] sm:$0xff]
  %v2505 = vld [vmem:[%s11 + $0x978] sm:$0xff]
  %v2506 = vld [vmem:[%s11 + $0x980] sm:$0xff]
  %v2507 = vld [vmem:[%s11 + $0x988] sm:$0xff]
  %v2508 = vld [vmem:[%s11 + $0x990] sm:$0xff]
  %v2509 = vld [vmem:[%s11 + $0x998] sm:$0xff]
  %v2510 = vld [vmem:[%s11 + $0x9a0] sm:$0xff]
  %v2511 = vld [vmem:[%s11 + $0x9a8] sm:$0xff]
  %v2512 = vld [vmem:[%s11 + $0x9b0] sm:$0xff]
  %v2513 = vld [vmem:[%s11 + $0x9b8] sm:$0xff]
  %v2514 = vld [vmem:[%s11 + $0x9c0] sm:$0xff]
  %v2515 = vld [vmem:[%s11 + $0x9c8] sm:$0xff]
  %v2516 = vld [vmem:[%s11 + $0x9d0] sm:$0xff]
  %v2517 = vld [vmem:[%s11 + $0x9d8] sm:$0xff]
  %v2518 = vld [vmem:[%s11 + $0x9e0] sm:$0xff]
  %v2519 = vld [vmem:[%s11 + $0x9e8] sm:$0xff]
  %v2520 = vld [vmem:[%s11 + $0x9f0] sm:$0xff]
  %v2521 = vld [vmem:[%s11 + $0x9f8] sm:$0xff]
  %v2522 = vld [vmem:[%s11 + $0xa00] sm:$0xff]
  %v2523 = vld [vmem:[%s11 + $0xa08] sm:$0xff]
  %v2524 = vld [vmem:[%s11 + $0xa10] sm:$0xff]
  %v2525 = vld [vmem:[%s11 + $0xa18] sm:$0xff]
  %v2526 = vld [vmem:[%s11 + $0xa20] sm:$0xff]
  %v2527 = vld [vmem:[%s11 + $0xa28] sm:$0xff]
  %v2528 = vld [vmem:[%s11 + $0xa30] sm:$0xff]
  %v2529 = vld [vmem:[%s11 + $0xa38] sm:$0xff]
  %v2530 = vld [vmem:[%s11 + $0xa40] sm:$0xff]
  %v2531 = vld [vmem:[%s11 + $0xa48] sm:$0xff]
  %v2532 = vld [vmem:[%s11 + $0xa50] sm:$0xff]
  %v2533 = vld [vmem:[%s11 + $0xa58] sm:$0xff]
  %v2534 = vld [vmem:[%s11 + $0xa60] sm:$0xff]
  %v2535 = vld [vmem:[%s11 + $0xa68] sm:$0xff]
  %v2536 = vld [vmem:[%s11 + $0xa70] sm:$0xff]
  %v2537 = vld [vmem:[%s11 + $0xa78] sm:$0xff]
  %v2538 = vld [vmem:[%s11 + $0xa80] sm:$0xff]
  %v2539 = vld [vmem:[%s11 + $0xa88] sm:$0xff]
  %v2540 = vld [vmem:[%s11 + $0xa90] sm:$0xff]
  %v2541 = vld [vmem:[%s11 + $0xa98] sm:$0xff]
  %v2542 = vld [vmem:[%s11 + $0xaa0] sm:$0xff]
  %v2543 = vld [vmem:[%s11 + $0xaa8] sm:$0xff]
  %v2544 = vld [vmem:[%s11 + $0xab0] sm:$0xff]
  %v2545 = vld [vmem:[%s11 + $0xab8] sm:$0xff]
  %v2546 = vld [vmem:[%s11 + $0xac0] sm:$0xff]
  %v2547 = vld [vmem:[%s11 + $0xac8] sm:$0xff]
  %v2548 = vld [vmem:[%s11 + $0xad0] sm:$0xff]
  %v2549 = vld [vmem:[%s11 + $0xad8] sm:$0xff]
  %v2550 = vld [vmem:[%s11 + $0xae0] sm:$0xff]
  %v2551 = vld [vmem:[%s11 + $0xae8] sm:$0xff]
  %v2552 = vld [vmem:[%s11 + $0xaf0] sm:$0xff]
  %v2553 = vld [vmem:[%s11 + $0xaf8] sm:$0xff]
  %v2554 = vld [vmem:[%s11 + $0xb00] sm:$0xff]
  %v2555 = vld [vmem:[%s11 + $0xb08] sm:$0xff]
  %v2556 = vld [vmem:[%s11 + $0xb10] sm:$0xff]
  %v2557 = vld [vmem:[%s11 + $0xb18] sm:$0xff]
  %v2558 = vld [vmem:[%s11 + $0xb20] sm:$0xff]
  %v2559 = vld [vmem:[%s11 + $0xb28] sm:$0xff]
  %v2560 = vld [vmem:[%s11 + $0xb30] sm:$0xff]
  %v2561 = vld [vmem:[%s11 + $0xb38] sm:$0xff]
  %v2562 = vld [vmem:[%s11 + $0xb40] sm:$0xff]
  %v2563 = vld [vmem:[%s11 + $0xb48] sm:$0xff]
  %v2564 = vld [vmem:[%s11 + $0xb50] sm:$0xff]
  %v2565 = vld [vmem:[%s11 + $0xb58] sm:$0xff]
  %v2566 = vld [vmem:[%s11 + $0xb60] sm:$0xff]
  %v2567 = vld [vmem:[%s11 + $0xb68] sm:$0xff]
  %v2568 = vld [vmem:[%s11 + $0xb70] sm:$0xff]
  %v2569 = vld [vmem:[%s11 + $0xb78] sm:$0xff]
  %v2570 = vld [vmem:[%s11 + $0xb80] sm:$0xff]
  %v2571 = vld [vmem:[%s11 + $0xb88] sm:$0xff]
  %v2572 = vld [vmem:[%s11 + $0xb90] sm:$0xff]
  %v2573 = vld [vmem:[%s11 + $0xb98] sm:$0xff]
  %v2574 = vld [vmem:[%s11 + $0xba0] sm:$0xff]
  %v2575 = vld [vmem:[%s11 + $0xba8] sm:$0xff]
  %v2576 = vld [vmem:[%s11 + $0xbb0] sm:$0xff]
  %v2577 = vld [vmem:[%s11 + $0xbb8] sm:$0xff]
  %v2578 = vld [vmem:[%s11 + $0xbc0] sm:$0xff]
  %v2579 = vld [vmem:[%s11 + $0xbc8] sm:$0xff]
  %v2580 = vld [vmem:[%s11 + $0xbd0] sm:$0xff]
  %v2581 = vld [vmem:[%s11 + $0xbd8] sm:$0xff]
  %v2582 = vld [vmem:[%s11 + $0xbe0] sm:$0xff]
  %v2583 = vld [vmem:[%s11 + $0xbe8] sm:$0xff]
  %v2584 = vld [vmem:[%s11 + $0xbf0] sm:$0xff]
  %v2585 = vld [vmem:[%s11 + $0xbf8] sm:$0xff]
  %v2586 = vld [vmem:[%s11 + $0xc00] sm:$0xff]
  %v2587 = vld [vmem:[%s11 + $0xc08] sm:$0xff]
  %v2588 = vld [vmem:[%s11 + $0xc10] sm:$0xff]
  %v2589 = vld [vmem:[%s11 + $0xc18] sm:$0xff]
  %v2590 = vld [vmem:[%s11 + $0xc20] sm:$0xff]
  %v2591 = vld [vmem:[%s11 + $0xc28] sm:$0xff]
  %v2592 = vld [vmem:[%s11 + $0xc30] sm:$0xff]
  %v2593 = vld [vmem:[%s11 + $0xc38] sm:$0xff]
  %v2594 = vld [vmem:[%s11 + $0xc40] sm:$0xff]
  %v2595 = vld [vmem:[%s11 + $0xc48] sm:$0xff]
  %v2596 = vld [vmem:[%s11 + $0xc50] sm:$0xff]
  %v2597 = vld [vmem:[%s11 + $0xc58] sm:$0xff]
  %v2598 = vld [vmem:[%s11 + $0xc60] sm:$0xff]
  %v2599 = vld [vmem:[%s11 + $0xc68] sm:$0xff]
  %v2600 = vld [vmem:[%s11 + $0xc70] sm:$0xff]
  %v2601 = vld [vmem:[%s11 + $0xc78] sm:$0xff]
  %v2602 = vld [vmem:[%s11 + $0xc80] sm:$0xff]
  %v2603 = vld [vmem:[%s11 + $0xc88] sm:$0xff]
  %v2604 = vld [vmem:[%s11 + $0xc90] sm:$0xff]
  %v2605 = vld [vmem:[%s11 + $0xc98] sm:$0xff]
  %v2606 = vld [vmem:[%s11 + $0xca0] sm:$0xff]
  %v2607 = vld [vmem:[%s11 + $0xca8] sm:$0xff]
  %v2608 = vld [vmem:[%s11 + $0xcb0] sm:$0xff]
  %v2609 = vld [vmem:[%s11 + $0xcb8] sm:$0xff]
  %v2610 = vld [vmem:[%s11 + $0xcc0] sm:$0xff]
  %v2611 = vld [vmem:[%s11 + $0xcc8] sm:$0xff]
  %v2612 = vld [vmem:[%s11 + $0xcd0] sm:$0xff]
  %v2613 = vld [vmem:[%s11 + $0xcd8] sm:$0xff]
  %v2614 = vld [vmem:[%s11 + $0xce0] sm:$0xff]
  %v2615 = vld [vmem:[%s11 + $0xce8] sm:$0xff]
  %v2616 = vld [vmem:[%s11 + $0xcf0] sm:$0xff]
  %v2617 = vld [vmem:[%s11 + $0xcf8] sm:$0xff]
  %v2618 = vld [vmem:[%s11 + $0xd00] sm:$0xff]
  %v2619 = vld [vmem:[%s11 + $0xd08] sm:$0xff]
  %v2620 = vld [vmem:[%s11 + $0xd10] sm:$0xff]
  %v2621 = vld [vmem:[%s11 + $0xd18] sm:$0xff]
  %v2622 = vld [vmem:[%s11 + $0xd20] sm:$0xff]
  %v2623 = vld [vmem:[%s11 + $0xd28] sm:$0xff]
  %v2624 = vld [vmem:[%s11 + $0xd30] sm:$0xff]
  %v2625 = vld [vmem:[%s11 + $0xd38] sm:$0xff]
  %v2626 = vld [vmem:[%s11 + $0xd40] sm:$0xff]
  %v2627 = vld [vmem:[%s11 + $0xd48] sm:$0xff]
  %v2628 = vld [vmem:[%s11 + $0xd50] sm:$0xff]
  %v2629 = vld [vmem:[%s11 + $0xd58] sm:$0xff]
  %v2630 = vld [vmem:[%s11 + $0xd60] sm:$0xff]
  %v2631 = vld [vmem:[%s11 + $0xd68] sm:$0xff]
  %v2632 = vld [vmem:[%s11 + $0xd70] sm:$0xff]
  %v2633 = vld [vmem:[%s11 + $0xd78] sm:$0xff]
  %v2634 = vld [vmem:[%s11 + $0xd80] sm:$0xff]
  %v2635 = vld [vmem:[%s11 + $0xd88] sm:$0xff]
  %v2636 = vld [vmem:[%s11 + $0xd90] sm:$0xff]
  %v2637 = vld [vmem:[%s11 + $0xd98] sm:$0xff]
  %v2638 = vld [vmem:[%s11 + $0xda0] sm:$0xff]
  %v2639 = vld [vmem:[%s11 + $0xda8] sm:$0xff]
  %v2640 = vld [vmem:[%s11 + $0xdb0] sm:$0xff]
  %v2641 = vld [vmem:[%s11 + $0xdb8] sm:$0xff]
  %v2642 = vld [vmem:[%s11 + $0xdc0] sm:$0xff]
  %v2643 = vld [vmem:[%s11 + $0xdc8] sm:$0xff]
  %v2644 = vld [vmem:[%s11 + $0xdd0] sm:$0xff]
  %v2645 = vld [vmem:[%s11 + $0xdd8] sm:$0xff]
  %v2646 = vld [vmem:[%s11 + $0xde0] sm:$0xff]
  %v2647 = vld [vmem:[%s11 + $0xde8] sm:$0xff]
  %v2648 = vld [vmem:[%s11 + $0xdf0] sm:$0xff]
  %v2649 = vld [vmem:[%s11 + $0xdf8] sm:$0xff]
  %v2650 = vld [vmem:[%s11 + $0xe00] sm:$0xff]
  %v2651 = vld [vmem:[%s11 + $0xe08] sm:$0xff]
  %v2652 = vld [vmem:[%s11 + $0xe10] sm:$0xff]
  %v2653 = vld [vmem:[%s11 + $0xe18] sm:$0xff]
  %v2654 = vld [vmem:[%s11 + $0xe20] sm:$0xff]
  %v2655 = vld [vmem:[%s11 + $0xe28] sm:$0xff]
  %v2656 = vld [vmem:[%s11 + $0xe30] sm:$0xff]
  %v2657 = vld [vmem:[%s11 + $0xe38] sm:$0xff]
  %v2658 = vld [vmem:[%s11 + $0xe40] sm:$0xff]
  %v2659 = vld [vmem:[%s11 + $0xe48] sm:$0xff]
  %v2660 = vld [vmem:[%s11 + $0xe50] sm:$0xff]
  %v2661 = vld [vmem:[%s11 + $0xe58] sm:$0xff]
  %v2662 = vld [vmem:[%s11 + $0xe60] sm:$0xff]
  %v2663 = vld [vmem:[%s11 + $0xe68] sm:$0xff]
  %v2664 = vld [vmem:[%s11 + $0xe70] sm:$0xff]
  %v2665 = vld [vmem:[%s11 + $0xe78] sm:$0xff]
  %v2666 = vld [vmem:[%s11 + $0xe80] sm:$0xff]
  %v2667 = vld [vmem:[%s11 + $0xe88] sm:$0xff]
  %v2668 = vld [vmem:[%s11 + $0xe90] sm:$0xff]
  %v2669 = vld [vmem:[%s11 + $0xe98] sm:$0xff]
  %v2670 = vld [vmem:[%s11 + $0xea0] sm:$0xff]
  %v2671 = vld [vmem:[%s11 + $0xea8] sm:$0xff]
  %v2672 = vld [vmem:[%s11 + $0xeb0] sm:$0xff]
  %v2673 = vld [vmem:[%s11 + $0xeb8] sm:$0xff]
  %v2674 = vld [vmem:[%s11 + $0xec0] sm:$0xff]
  %v2675 = vld [vmem:[%s11 + $0xec8] sm:$0xff]
  %v2676 = vld [vmem:[%s11 + $0xed0] sm:$0xff]
  %v2677 = vld [vmem:[%s11 + $0xed8] sm:$0xff]
  %v2678 = vld [vmem:[%s11 + $0xee0] sm:$0xff]
  %v2679 = vld [vmem:[%s11 + $0xee8] sm:$0xff]
  %v2680 = vld [vmem:[%s11 + $0xef0] sm:$0xff]
  %v2681 = vld [vmem:[%s11 + $0xef8] sm:$0xff]
  %v2682 = vld [vmem:[%s11 + $0xf00] sm:$0xff]
  %v2683 = vld [vmem:[%s11 + $0xf08] sm:$0xff]
  %v2684 = vld [vmem:[%s11 + $0xf10] sm:$0xff]
  %v2685 = vld [vmem:[%s11 + $0xf18] sm:$0xff]
  %v2686 = vld [vmem:[%s11 + $0xf20] sm:$0xff]
  %v2687 = vld [vmem:[%s11 + $0xf28] sm:$0xff]
  %v2688 = vld [vmem:[%s11 + $0xf30] sm:$0xff]
  %v2689 = vld [vmem:[%s11 + $0xf38] sm:$0xff]
  %v2690 = vld [vmem:[%s11 + $0xf40] sm:$0xff]
  %v2691 = vld [vmem:[%s11 + $0xf48] sm:$0xff]
  %v2692 = vld [vmem:[%s11 + $0xf50] sm:$0xff]
  %v2693 = vld [vmem:[%s11 + $0xf58] sm:$0xff]
  %v2694 = vld [vmem:[%s11 + $0xf60] sm:$0xff]
  %v2695 = vld [vmem:[%s11 + $0xf68] sm:$0xff]
  %v2696 = vld [vmem:[%s11 + $0xf70] sm:$0xff]
  %v2697 = vld [vmem:[%s11 + $0xf78] sm:$0xff]
  %v2698 = vld [vmem:[%s11 + $0xf80] sm:$0xff]
  %v2699 = vld [vmem:[%s11 + $0xf88] sm:$0xff]
  %v2700 = vld [vmem:[%s11 + $0xf90] sm:$0xff]
  %v2701 = vld [vmem:[%s11 + $0xf98] sm:$0xff]
  %v2702 = vld [vmem:[%s11 + $0xfa0] sm:$0xff]
  %v2703 = vld [vmem:[%s11 + $0xfa8] sm:$0xff]
  %v2704 = vld [vmem:[%s11 + $0xfb0] sm:$0xff]
  %v2705 = vld [vmem:[%s11 + $0xfb8] sm:$0xff]
  %v2706 = vld [vmem:[%s11 + $0xfc0] sm:$0xff]
  %v2707 = vld [vmem:[%s11 + $0xfc8] sm:$0xff]
  %v2708 = vld [vmem:[%s11 + $0xfd0] sm:$0xff]
  %v2709 = vld [vmem:[%s11 + $0xfd8] sm:$0xff]
  %v2710 = vld [vmem:[%s11 + $0xfe0] sm:$0xff]
  %v2711 = vld [vmem:[%s11 + $0xfe8] sm:$0xff]
  %v2712 = vld [vmem:[%s11 + $0xff0] sm:$0xff]
  %v2713 = vld [vmem:[%s11 + $0xff8] sm:$0xff]
  %v2714 = vld [vmem:[%s11 + $0x1000] sm:$0xff]
  %v2715 = vld [vmem:[%s11 + $0x1008] sm:$0xff]
  %v2716 = vld [vmem:[%s11 + $0x1010] sm:$0xff]
  %v2717 = vld [vmem:[%s11 + $0x1018] sm:$0xff]
  %v2718 = vld [vmem:[%s11 + $0x1020] sm:$0xff]
  %v2719 = vld [vmem:[%s11 + $0x1028] sm:$0xff]
  %v2720 = vld [vmem:[%s11 + $0x1030] sm:$0xff]
  %v2721 = vld [vmem:[%s11 + $0x1038] sm:$0xff]
  %v2722 = vld [vmem:[%s11 + $0x1040] sm:$0xff]
  %v2723 = vld [vmem:[%s11 + $0x1048] sm:$0xff]
  %v2724 = vld [vmem:[%s11 + $0x1050] sm:$0xff]
  %v2725 = vld [vmem:[%s11 + $0x1058] sm:$0xff]
  %v2726 = vld [vmem:[%s11 + $0x1060] sm:$0xff]
  %v2727 = vld [vmem:[%s11 + $0x1068] sm:$0xff]
  %v2728 = vld [vmem:[%s11 + $0x1070] sm:$0xff]
  %v2729 = vld [vmem:[%s11 + $0x1078] sm:$0xff]
  %v2730 = vld [vmem:[%s11 + $0x1080] sm:$0xff]
  %v2731 = vld [vmem:[%s11 + $0x1088] sm:$0xff]
  %v2732 = vld [vmem:[%s11 + $0x1090] sm:$0xff]
  %v2733 = vld [vmem:[%s11 + $0x1098] sm:$0xff]
  %v2734 = vld [vmem:[%s11 + $0x10a0] sm:$0xff]
  %v2735 = vld [vmem:[%s11 + $0x10a8] sm:$0xff]
  %v2736 = vld [vmem:[%s11 + $0x10b0] sm:$0xff]
  %v2737 = vld [vmem:[%s11 + $0x10b8] sm:$0xff]
  %v2738 = vld [vmem:[%s11 + $0x10c0] sm:$0xff]
  %v2739 = vld [vmem:[%s11 + $0x10c8] sm:$0xff]
  %v2740 = vld [vmem:[%s11 + $0x10d0] sm:$0xff]
  %v2741 = vld [vmem:[%s11 + $0x10d8] sm:$0xff]
  %v2742 = vld [vmem:[%s11 + $0x10e0] sm:$0xff]
  %v2743 = vld [vmem:[%s11 + $0x10e8] sm:$0xff]
  %v2744 = vld [vmem:[%s11 + $0x10f0] sm:$0xff]
  %v2745 = vld [vmem:[%s11 + $0x10f8] sm:$0xff]
  %v2746 = vld [vmem:[%s11 + $0x1100] sm:$0xff]
  %v2747 = vld [vmem:[%s11 + $0x1108] sm:$0xff]
  %v2748 = vld [vmem:[%s11 + $0x1110] sm:$0x1]
  %v2749 = vld [vmem:[%s11 + $0x1118] sm:$0x1]
  %v2750 = vld [vmem:[%s11 + $0x1120] sm:$0x1]
  %v2751 = vld [vmem:[%s11 + $0x1128] sm:$0x1]
  %v2752 = vld [vmem:[%s11 + $0x1130] sm:$0x1]
  %v2753 = vld [vmem:[%s11 + $0x1138] sm:$0x1]
  %v2754 = vld [vmem:[%s11 + $0x1140] sm:$0x1]
  %v2755 = vld [vmem:[%s12] sm:$0x7f]
  %v2757 = vperm.slane %v2755, 0
  %v2758 = vperm.slane %v2755, 1
  %v2759 = vperm.slane %v2755, 2
  %v2760 = vperm.slane %v2755, 3
  %v2761 = vperm.slane %v2755, 4
  %v2762 = vperm.slane %v2755, 5
  %v2763 = vperm.slane %v2755, 6
  %vm2771 = vcmask 924672
  %v2773 = vsel %vm2771, %v2201, 0
  %vm2775 = vcmask 1040384
  %v2777 = vsel %vm2775, %v2748, 0
  %v2780 = vsel %vm2775, %v2749, 0
  %v2783 = vsel %vm2775, %v2750, 0
  %v2786 = vsel %vm2775, %v2751, 0
  %v2789 = vsel %vm2775, %v2752, 0
  %v2792 = vsel %vm2775, %v2753, 0
  %v2795 = vsel %vm2775, %v2754, 0
  %2797 = vmatpush.msra.mxu0 %v2307
  %2798 = vmatpush.msra.mxu0 %v2300
  %2799 = vmatpush.msra.mxu0 %v2293
  %2800 = vmatpush.msra.mxu0 %v2286
  %2801 = vmatpush.msra.mxu0 %v2279
  %2802 = vmatpush.msra.mxu0 %v2272
  %2803 = vmatpush.msra.mxu0 %v2265
  %2804 = vmatpush.msra.mxu0 %v2258
  %2805 = vmatpush.msra.mxu0 %v2251
  %2806 = vmatpush.msra.mxu0 %v2244
  %2807 = vmatpush.msra.mxu0 %v2237
  %2808 = vmatpush.msra.mxu0 %v2230
  %2809 = vmatpush.msra.mxu0 %v2223
  %2810 = vmatpush.msra.mxu0 %v2216
  %2811 = vmatpush.msra.mxu0 %v2209
  %2812 = vmatpush.msra.mxu0 %v2202
  %2813 = vmatmul.f32.gmra.mxu0 %v2197
  %v2814 = vpop.f32.mrf.mxu0
  %v2815 = vadd.f32 %v2757, %v2814
  %2816 = vdwg.mxu0
  %2817 = vmatpush.msra.mxu0 %v2419
  %2818 = vmatpush.msra.mxu0 %v2412
  %2819 = vmatpush.msra.mxu0 %v2405
  %2820 = vmatpush.msra.mxu0 %v2398
  %2821 = vmatpush.msra.mxu0 %v2391
  %2822 = vmatpush.msra.mxu0 %v2384
  %2823 = vmatpush.msra.mxu0 %v2377
  %2824 = vmatpush.msra.mxu0 %v2370
  %2825 = vmatpush.msra.mxu0 %v2363
  %2826 = vmatpush.msra.mxu0 %v2356
  %2827 = vmatpush.msra.mxu0 %v2349
  %2828 = vmatpush.msra.mxu0 %v2342
  %2829 = vmatpush.msra.mxu0 %v2335
  %2830 = vmatpush.msra.mxu0 %v2328
  %2831 = vmatpush.msra.mxu0 %v2321
  %2832 = vmatpush.msra.mxu0 %v2314
  %2833 = vmatmul.f32.gmra.mxu0 %v2198
  %v2834 = vpop.f32.mrf.mxu0
  %v2835 = vadd.f32 %v2815, %v2834
  %2836 = vdwg.mxu0
  %2837 = vmatpush.msra.mxu0 %v2531
  %2838 = vmatpush.msra.mxu0 %v2524
  %2839 = vmatpush.msra.mxu0 %v2517
  %2840 = vmatpush.msra.mxu0 %v2510
  %2841 = vmatpush.msra.mxu0 %v2503
  %2842 = vmatpush.msra.mxu0 %v2496
  %2843 = vmatpush.msra.mxu0 %v2489
  %2844 = vmatpush.msra.mxu0 %v2482
  %2845 = vmatpush.msra.mxu0 %v2475
  %2846 = vmatpush.msra.mxu0 %v2468
  %2847 = vmatpush.msra.mxu0 %v2461
  %2848 = vmatpush.msra.mxu0 %v2454
  %2849 = vmatpush.msra.mxu0 %v2447
  %2850 = vmatpush.msra.mxu0 %v2440
  %2851 = vmatpush.msra.mxu0 %v2433
  %2852 = vmatpush.msra.mxu0 %v2426
  %2853 = vmatmul.f32.gmra.mxu0 %v2199
  %v2854 = vpop.f32.mrf.mxu0
  %v2855 = vadd.f32 %v2835, %v2854
  %2856 = vdwg.mxu0
  %2857 = vmatpush.msra.mxu0 %v2643
  %2858 = vmatpush.msra.mxu0 %v2636
  %2859 = vmatpush.msra.mxu0 %v2629
  %2860 = vmatpush.msra.mxu0 %v2622
  %2861 = vmatpush.msra.mxu0 %v2615
  %2862 = vmatpush.msra.mxu0 %v2608
  %2863 = vmatpush.msra.mxu0 %v2601
  %2864 = vmatpush.msra.mxu0 %v2594
  %2865 = vmatpush.msra.mxu0 %v2587
  %2866 = vmatpush.msra.mxu0 %v2580
  %2867 = vmatpush.msra.mxu0 %v2573
  %2868 = vmatpush.msra.mxu0 %v2566
  %2869 = vmatpush.msra.mxu0 %v2559
  %2870 = vmatpush.msra.mxu0 %v2552
  %2871 = vmatpush.msra.mxu0 %v2545
  %2872 = vmatpush.msra.mxu0 %v2538
  %2873 = vmatmul.f32.gmra.mxu0 %v2200
  %v2874 = vpop.f32.mrf.mxu0
  %v2875 = vadd.f32 %v2855, %v2874
  %2876 = vdwg.mxu0
  %2877 = vmatpush.msra.mxu0 0.0
  %2878 = vmatpush.msra.mxu0 %v2777
  %2879 = vmatpush.msra.mxu0 %v2741
  %2880 = vmatpush.msra.mxu0 %v2734
  %2881 = vmatpush.msra.mxu0 %v2727
  %2882 = vmatpush.msra.mxu0 %v2720
  %2883 = vmatpush.msra.mxu0 %v2713
  %2884 = vmatpush.msra.mxu0 %v2706
  %2885 = vmatpush.msra.mxu0 %v2699
  %2886 = vmatpush.msra.mxu0 %v2692
  %2887 = vmatpush.msra.mxu0 %v2685
  %2888 = vmatpush.msra.mxu0 %v2678
  %2889 = vmatpush.msra.mxu0 %v2671
  %2890 = vmatpush.msra.mxu0 %v2664
  %2891 = vmatpush.msra.mxu0 %v2657
  %2892 = vmatpush.msra.mxu0 %v2650
  %2893 = vmatmul.f32.gmra.mxu0 %v2773
  %v2894 = vpop.f32.mrf.mxu0
  %v2895 = vadd.f32 %v2875, %v2894
  %2896 = vdwg.mxu0
  %2897 = vmatpush.msra.mxu0 %v2308
  %2898 = vmatpush.msra.mxu0 %v2301
  %2899 = vmatpush.msra.mxu0 %v2294
  %2900 = vmatpush.msra.mxu0 %v2287
  %2901 = vmatpush.msra.mxu0 %v2280
  %2902 = vmatpush.msra.mxu0 %v2273
  %2903 = vmatpush.msra.mxu0 %v2266
  %2904 = vmatpush.msra.mxu0 %v2259
  %2905 = vmatpush.msra.mxu0 %v2252
  %2906 = vmatpush.msra.mxu0 %v2245
  %2907 = vmatpush.msra.mxu0 %v2238
  %2908 = vmatpush.msra.mxu0 %v2231
  %2909 = vmatpush.msra.mxu0 %v2224
  %2910 = vmatpush.msra.mxu0 %v2217
  %2911 = vmatpush.msra.mxu0 %v2210
  %2912 = vmatpush.msra.mxu0 %v2203
  %2913 = vmatmul.f32.gmra.mxu0 %v2197
  %v2914 = vpop.f32.mrf.mxu0
  %v2915 = vadd.f32 %v2758, %v2914
  %2916 = vdwg.mxu0
  %2917 = vmatpush.msra.mxu0 %v2420
  %2918 = vmatpush.msra.mxu0 %v2413
  %2919 = vmatpush.msra.mxu0 %v2406
  %2920 = vmatpush.msra.mxu0 %v2399
  %2921 = vmatpush.msra.mxu0 %v2392
  %2922 = vmatpush.msra.mxu0 %v2385
  %2923 = vmatpush.msra.mxu0 %v2378
  %2924 = vmatpush.msra.mxu0 %v2371
  %2925 = vmatpush.msra.mxu0 %v2364
  %2926 = vmatpush.msra.mxu0 %v2357
  %2927 = vmatpush.msra.mxu0 %v2350
  %2928 = vmatpush.msra.mxu0 %v2343
  %2929 = vmatpush.msra.mxu0 %v2336
  %2930 = vmatpush.msra.mxu0 %v2329
  %2931 = vmatpush.msra.mxu0 %v2322
  %2932 = vmatpush.msra.mxu0 %v2315
  %2933 = vmatmul.f32.gmra.mxu0 %v2198
  %v2934 = vpop.f32.mrf.mxu0
  %v2935 = vadd.f32 %v2915, %v2934
  %2936 = vdwg.mxu0
  %2937 = vmatpush.msra.mxu0 %v2532
  %2938 = vmatpush.msra.mxu0 %v2525
  %2939 = vmatpush.msra.mxu0 %v2518
  %2940 = vmatpush.msra.mxu0 %v2511
  %2941 = vmatpush.msra.mxu0 %v2504
  %2942 = vmatpush.msra.mxu0 %v2497
  %2943 = vmatpush.msra.mxu0 %v2490
  %2944 = vmatpush.msra.mxu0 %v2483
  %2945 = vmatpush.msra.mxu0 %v2476
  %2946 = vmatpush.msra.mxu0 %v2469
  %2947 = vmatpush.msra.mxu0 %v2462
  %2948 = vmatpush.msra.mxu0 %v2455
  %2949 = vmatpush.msra.mxu0 %v2448
  %2950 = vmatpush.msra.mxu0 %v2441
  %2951 = vmatpush.msra.mxu0 %v2434
  %2952 = vmatpush.msra.mxu0 %v2427
  %2953 = vmatmul.f32.gmra.mxu0 %v2199
  %v2954 = vpop.f32.mrf.mxu0
  %v2955 = vadd.f32 %v2935, %v2954
  %2956 = vdwg.mxu0
  %2957 = vmatpush.msra.mxu0 %v2644
  %2958 = vmatpush.msra.mxu0 %v2637
  %2959 = vmatpush.msra.mxu0 %v2630
  %2960 = vmatpush.msra.mxu0 %v2623
  %2961 = vmatpush.msra.mxu0 %v2616
  %2962 = vmatpush.msra.mxu0 %v2609
  %2963 = vmatpush.msra.mxu0 %v2602
  %2964 = vmatpush.msra.mxu0 %v2595
  %2965 = vmatpush.msra.mxu0 %v2588
  %2966 = vmatpush.msra.mxu0 %v2581
  %2967 = vmatpush.msra.mxu0 %v2574
  %2968 = vmatpush.msra.mxu0 %v2567
  %2969 = vmatpush.msra.mxu0 %v2560
  %2970 = vmatpush.msra.mxu0 %v2553
  %2971 = vmatpush.msra.mxu0 %v2546
  %2972 = vmatpush.msra.mxu0 %v2539
  %2973 = vmatmul.f32.gmra.mxu0 %v2200
  %v2974 = vpop.f32.mrf.mxu0
  %v2975 = vadd.f32 %v2955, %v2974
  %2976 = vdwg.mxu0
  %2977 = vmatpush.msra.mxu0 0.0
  %2978 = vmatpush.msra.mxu0 %v2780
  %2979 = vmatpush.msra.mxu0 %v2742
  %2980 = vmatpush.msra.mxu0 %v2735
  %2981 = vmatpush.msra.mxu0 %v2728
  %2982 = vmatpush.msra.mxu0 %v2721
  %2983 = vmatpush.msra.mxu0 %v2714
  %2984 = vmatpush.msra.mxu0 %v2707
  %2985 = vmatpush.msra.mxu0 %v2700
  %2986 = vmatpush.msra.mxu0 %v2693
  %2987 = vmatpush.msra.mxu0 %v2686
  %2988 = vmatpush.msra.mxu0 %v2679
  %2989 = vmatpush.msra.mxu0 %v2672
  %2990 = vmatpush.msra.mxu0 %v2665
  %2991 = vmatpush.msra.mxu0 %v2658
  %2992 = vmatpush.msra.mxu0 %v2651
  %2993 = vmatmul.f32.gmra.mxu0 %v2773
  %v2994 = vpop.f32.mrf.mxu0
  %v2995 = vadd.f32 %v2975, %v2994
  %2996 = vdwg.mxu0
  %2997 = vmatpush.msra.mxu0 %v2309
  %2998 = vmatpush.msra.mxu0 %v2302
  %2999 = vmatpush.msra.mxu0 %v2295
  %3000 = vmatpush.msra.mxu0 %v2288
  %3001 = vmatpush.msra.mxu0 %v2281
  %3002 = vmatpush.msra.mxu0 %v2274
  %3003 = vmatpush.msra.mxu0 %v2267
  %3004 = vmatpush.msra.mxu0 %v2260
  %3005 = vmatpush.msra.mxu0 %v2253
  %3006 = vmatpush.msra.mxu0 %v2246
  %3007 = vmatpush.msra.mxu0 %v2239
  %3008 = vmatpush.msra.mxu0 %v2232
  %3009 = vmatpush.msra.mxu0 %v2225
  %3010 = vmatpush.msra.mxu0 %v2218
  %3011 = vmatpush.msra.mxu0 %v2211
  %3012 = vmatpush.msra.mxu0 %v2204
  %3013 = vmatmul.f32.gmra.mxu0 %v2197
  %v3014 = vpop.f32.mrf.mxu0
  %v3015 = vadd.f32 %v2759, %v3014
  %3016 = vdwg.mxu0
  %3017 = vmatpush.msra.mxu0 %v2421
  %3018 = vmatpush.msra.mxu0 %v2414
  %3019 = vmatpush.msra.mxu0 %v2407
  %3020 = vmatpush.msra.mxu0 %v2400
  %3021 = vmatpush.msra.mxu0 %v2393
  %3022 = vmatpush.msra.mxu0 %v2386
  %3023 = vmatpush.msra.mxu0 %v2379
  %3024 = vmatpush.msra.mxu0 %v2372
  %3025 = vmatpush.msra.mxu0 %v2365
  %3026 = vmatpush.msra.mxu0 %v2358
  %3027 = vmatpush.msra.mxu0 %v2351
  %3028 = vmatpush.msra.mxu0 %v2344
  %3029 = vmatpush.msra.mxu0 %v2337
  %3030 = vmatpush.msra.mxu0 %v2330
  %3031 = vmatpush.msra.mxu0 %v2323
  %3032 = vmatpush.msra.mxu0 %v2316
  %3033 = vmatmul.f32.gmra.mxu0 %v2198
  %v3034 = vpop.f32.mrf.mxu0
  %v3035 = vadd.f32 %v3015, %v3034
  %3036 = vdwg.mxu0
  %3037 = vmatpush.msra.mxu0 %v2533
  %3038 = vmatpush.msra.mxu0 %v2526
  %3039 = vmatpush.msra.mxu0 %v2519
  %3040 = vmatpush.msra.mxu0 %v2512
  %3041 = vmatpush.msra.mxu0 %v2505
  %3042 = vmatpush.msra.mxu0 %v2498
  %3043 = vmatpush.msra.mxu0 %v2491
  %3044 = vmatpush.msra.mxu0 %v2484
  %3045 = vmatpush.msra.mxu0 %v2477
  %3046 = vmatpush.msra.mxu0 %v2470
  %3047 = vmatpush.msra.mxu0 %v2463
  %3048 = vmatpush.msra.mxu0 %v2456
  %3049 = vmatpush.msra.mxu0 %v2449
  %3050 = vmatpush.msra.mxu0 %v2442
  %3051 = vmatpush.msra.mxu0 %v2435
  %3052 = vmatpush.msra.mxu0 %v2428
  %3053 = vmatmul.f32.gmra.mxu0 %v2199
  %v3054 = vpop.f32.mrf.mxu0
  %v3055 = vadd.f32 %v3035, %v3054
  %3056 = vdwg.mxu0
  %3057 = vmatpush.msra.mxu0 %v2645
  %3058 = vmatpush.msra.mxu0 %v2638
  %3059 = vmatpush.msra.mxu0 %v2631
  %3060 = vmatpush.msra.mxu0 %v2624
  %3061 = vmatpush.msra.mxu0 %v2617
  %3062 = vmatpush.msra.mxu0 %v2610
  %3063 = vmatpush.msra.mxu0 %v2603
  %3064 = vmatpush.msra.mxu0 %v2596
  %3065 = vmatpush.msra.mxu0 %v2589
  %3066 = vmatpush.msra.mxu0 %v2582
  %3067 = vmatpush.msra.mxu0 %v2575
  %3068 = vmatpush.msra.mxu0 %v2568
  %3069 = vmatpush.msra.mxu0 %v2561
  %3070 = vmatpush.msra.mxu0 %v2554
  %3071 = vmatpush.msra.mxu0 %v2547
  %3072 = vmatpush.msra.mxu0 %v2540
  %3073 = vmatmul.f32.gmra.mxu0 %v2200
  %v3074 = vpop.f32.mrf.mxu0
  %v3075 = vadd.f32 %v3055, %v3074
  %3076 = vdwg.mxu0
  %3077 = vmatpush.msra.mxu0 0.0
  %3078 = vmatpush.msra.mxu0 %v2783
  %3079 = vmatpush.msra.mxu0 %v2743
  %3080 = vmatpush.msra.mxu0 %v2736
  %3081 = vmatpush.msra.mxu0 %v2729
  %3082 = vmatpush.msra.mxu0 %v2722
  %3083 = vmatpush.msra.mxu0 %v2715
  %3084 = vmatpush.msra.mxu0 %v2708
  %3085 = vmatpush.msra.mxu0 %v2701
  %3086 = vmatpush.msra.mxu0 %v2694
  %3087 = vmatpush.msra.mxu0 %v2687
  %3088 = vmatpush.msra.mxu0 %v2680
  %3089 = vmatpush.msra.mxu0 %v2673
  %3090 = vmatpush.msra.mxu0 %v2666
  %3091 = vmatpush.msra.mxu0 %v2659
  %3092 = vmatpush.msra.mxu0 %v2652
  %3093 = vmatmul.f32.gmra.mxu0 %v2773
  %v3094 = vpop.f32.mrf.mxu0
  %v3095 = vadd.f32 %v3075, %v3094
  %3096 = vdwg.mxu0
  %3097 = vmatpush.msra.mxu0 %v2310
  %3098 = vmatpush.msra.mxu0 %v2303
  %3099 = vmatpush.msra.mxu0 %v2296
  %3100 = vmatpush.msra.mxu0 %v2289
  %3101 = vmatpush.msra.mxu0 %v2282
  %3102 = vmatpush.msra.mxu0 %v2275
  %3103 = vmatpush.msra.mxu0 %v2268
  %3104 = vmatpush.msra.mxu0 %v2261
  %3105 = vmatpush.msra.mxu0 %v2254
  %3106 = vmatpush.msra.mxu0 %v2247
  %3107 = vmatpush.msra.mxu0 %v2240
  %3108 = vmatpush.msra.mxu0 %v2233
  %3109 = vmatpush.msra.mxu0 %v2226
  %3110 = vmatpush.msra.mxu0 %v2219
  %3111 = vmatpush.msra.mxu0 %v2212
  %3112 = vmatpush.msra.mxu0 %v2205
  %3113 = vmatmul.f32.gmra.mxu0 %v2197
  %v3114 = vpop.f32.mrf.mxu0
  %v3115 = vadd.f32 %v2760, %v3114
  %3116 = vdwg.mxu0
  %3117 = vmatpush.msra.mxu0 %v2422
  %3118 = vmatpush.msra.mxu0 %v2415
  %3119 = vmatpush.msra.mxu0 %v2408
  %3120 = vmatpush.msra.mxu0 %v2401
  %3121 = vmatpush.msra.mxu0 %v2394
  %3122 = vmatpush.msra.mxu0 %v2387
  %3123 = vmatpush.msra.mxu0 %v2380
  %3124 = vmatpush.msra.mxu0 %v2373
  %3125 = vmatpush.msra.mxu0 %v2366
  %3126 = vmatpush.msra.mxu0 %v2359
  %3127 = vmatpush.msra.mxu0 %v2352
  %3128 = vmatpush.msra.mxu0 %v2345
  %3129 = vmatpush.msra.mxu0 %v2338
  %3130 = vmatpush.msra.mxu0 %v2331
  %3131 = vmatpush.msra.mxu0 %v2324
  %3132 = vmatpush.msra.mxu0 %v2317
  %3133 = vmatmul.f32.gmra.mxu0 %v2198
  %v3134 = vpop.f32.mrf.mxu0
  %v3135 = vadd.f32 %v3115, %v3134
  %3136 = vdwg.mxu0
  %3137 = vmatpush.msra.mxu0 %v2534
  %3138 = vmatpush.msra.mxu0 %v2527
  %3139 = vmatpush.msra.mxu0 %v2520
  %3140 = vmatpush.msra.mxu0 %v2513
  %3141 = vmatpush.msra.mxu0 %v2506
  %3142 = vmatpush.msra.mxu0 %v2499
  %3143 = vmatpush.msra.mxu0 %v2492
  %3144 = vmatpush.msra.mxu0 %v2485
  %3145 = vmatpush.msra.mxu0 %v2478
  %3146 = vmatpush.msra.mxu0 %v2471
  %3147 = vmatpush.msra.mxu0 %v2464
  %3148 = vmatpush.msra.mxu0 %v2457
  %3149 = vmatpush.msra.mxu0 %v2450
  %3150 = vmatpush.msra.mxu0 %v2443
  %3151 = vmatpush.msra.mxu0 %v2436
  %3152 = vmatpush.msra.mxu0 %v2429
  %3153 = vmatmul.f32.gmra.mxu0 %v2199
  %v3154 = vpop.f32.mrf.mxu0
  %v3155 = vadd.f32 %v3135, %v3154
  %3156 = vdwg.mxu0
  %3157 = vmatpush.msra.mxu0 %v2646
  %3158 = vmatpush.msra.mxu0 %v2639
  %3159 = vmatpush.msra.mxu0 %v2632
  %3160 = vmatpush.msra.mxu0 %v2625
  %3161 = vmatpush.msra.mxu0 %v2618
  %3162 = vmatpush.msra.mxu0 %v2611
  %3163 = vmatpush.msra.mxu0 %v2604
  %3164 = vmatpush.msra.mxu0 %v2597
  %3165 = vmatpush.msra.mxu0 %v2590
  %3166 = vmatpush.msra.mxu0 %v2583
  %3167 = vmatpush.msra.mxu0 %v2576
  %3168 = vmatpush.msra.mxu0 %v2569
  %3169 = vmatpush.msra.mxu0 %v2562
  %3170 = vmatpush.msra.mxu0 %v2555
  %3171 = vmatpush.msra.mxu0 %v2548
  %3172 = vmatpush.msra.mxu0 %v2541
  %3173 = vmatmul.f32.gmra.mxu0 %v2200
  %v3174 = vpop.f32.mrf.mxu0
  %v3175 = vadd.f32 %v3155, %v3174
  %3176 = vdwg.mxu0
  %3177 = vmatpush.msra.mxu0 0.0
  %3178 = vmatpush.msra.mxu0 %v2786
  %3179 = vmatpush.msra.mxu0 %v2744
  %3180 = vmatpush.msra.mxu0 %v2737
  %3181 = vmatpush.msra.mxu0 %v2730
  %3182 = vmatpush.msra.mxu0 %v2723
  %3183 = vmatpush.msra.mxu0 %v2716
  %3184 = vmatpush.msra.mxu0 %v2709
  %3185 = vmatpush.msra.mxu0 %v2702
  %3186 = vmatpush.msra.mxu0 %v2695
  %3187 = vmatpush.msra.mxu0 %v2688
  %3188 = vmatpush.msra.mxu0 %v2681
  %3189 = vmatpush.msra.mxu0 %v2674
  %3190 = vmatpush.msra.mxu0 %v2667
  %3191 = vmatpush.msra.mxu0 %v2660
  %3192 = vmatpush.msra.mxu0 %v2653
  %3193 = vmatmul.f32.gmra.mxu0 %v2773
  %v3194 = vpop.f32.mrf.mxu0
  %v3195 = vadd.f32 %v3175, %v3194
  %3196 = vdwg.mxu0
  %3197 = vmatpush.msra.mxu0 %v2311
  %3198 = vmatpush.msra.mxu0 %v2304
  %3199 = vmatpush.msra.mxu0 %v2297
  %3200 = vmatpush.msra.mxu0 %v2290
  %3201 = vmatpush.msra.mxu0 %v2283
  %3202 = vmatpush.msra.mxu0 %v2276
  %3203 = vmatpush.msra.mxu0 %v2269
  %3204 = vmatpush.msra.mxu0 %v2262
  %3205 = vmatpush.msra.mxu0 %v2255
  %3206 = vmatpush.msra.mxu0 %v2248
  %3207 = vmatpush.msra.mxu0 %v2241
  %3208 = vmatpush.msra.mxu0 %v2234
  %3209 = vmatpush.msra.mxu0 %v2227
  %3210 = vmatpush.msra.mxu0 %v2220
  %3211 = vmatpush.msra.mxu0 %v2213
  %3212 = vmatpush.msra.mxu0 %v2206
  %3213 = vmatmul.f32.gmra.mxu0 %v2197
  %v3214 = vpop.f32.mrf.mxu0
  %v3215 = vadd.f32 %v2761, %v3214
  %3216 = vdwg.mxu0
  %3217 = vmatpush.msra.mxu0 %v2423
  %3218 = vmatpush.msra.mxu0 %v2416
  %3219 = vmatpush.msra.mxu0 %v2409
  %3220 = vmatpush.msra.mxu0 %v2402
  %3221 = vmatpush.msra.mxu0 %v2395
  %3222 = vmatpush.msra.mxu0 %v2388
  %3223 = vmatpush.msra.mxu0 %v2381
  %3224 = vmatpush.msra.mxu0 %v2374
  %3225 = vmatpush.msra.mxu0 %v2367
  %3226 = vmatpush.msra.mxu0 %v2360
  %3227 = vmatpush.msra.mxu0 %v2353
  %3228 = vmatpush.msra.mxu0 %v2346
  %3229 = vmatpush.msra.mxu0 %v2339
  %3230 = vmatpush.msra.mxu0 %v2332
  %3231 = vmatpush.msra.mxu0 %v2325
  %3232 = vmatpush.msra.mxu0 %v2318
  %3233 = vmatmul.f32.gmra.mxu0 %v2198
  %v3234 = vpop.f32.mrf.mxu0
  %v3235 = vadd.f32 %v3215, %v3234
  %3236 = vdwg.mxu0
  %3237 = vmatpush.msra.mxu0 %v2535
  %3238 = vmatpush.msra.mxu0 %v2528
  %3239 = vmatpush.msra.mxu0 %v2521
  %3240 = vmatpush.msra.mxu0 %v2514
  %3241 = vmatpush.msra.mxu0 %v2507
  %3242 = vmatpush.msra.mxu0 %v2500
  %3243 = vmatpush.msra.mxu0 %v2493
  %3244 = vmatpush.msra.mxu0 %v2486
  %3245 = vmatpush.msra.mxu0 %v2479
  %3246 = vmatpush.msra.mxu0 %v2472
  %3247 = vmatpush.msra.mxu0 %v2465
  %3248 = vmatpush.msra.mxu0 %v2458
  %3249 = vmatpush.msra.mxu0 %v2451
  %3250 = vmatpush.msra.mxu0 %v2444
  %3251 = vmatpush.msra.mxu0 %v2437
  %3252 = vmatpush.msra.mxu0 %v2430
  %3253 = vmatmul.f32.gmra.mxu0 %v2199
  %v3254 = vpop.f32.mrf.mxu0
  %v3255 = vadd.f32 %v3235, %v3254
  %3256 = vdwg.mxu0
  %3257 = vmatpush.msra.mxu0 %v2647
  %3258 = vmatpush.msra.mxu0 %v2640
  %3259 = vmatpush.msra.mxu0 %v2633
  %3260 = vmatpush.msra.mxu0 %v2626
  %3261 = vmatpush.msra.mxu0 %v2619
  %3262 = vmatpush.msra.mxu0 %v2612
  %3263 = vmatpush.msra.mxu0 %v2605
  %3264 = vmatpush.msra.mxu0 %v2598
  %3265 = vmatpush.msra.mxu0 %v2591
  %3266 = vmatpush.msra.mxu0 %v2584
  %3267 = vmatpush.msra.mxu0 %v2577
  %3268 = vmatpush.msra.mxu0 %v2570
  %3269 = vmatpush.msra.mxu0 %v2563
  %3270 = vmatpush.msra.mxu0 %v2556
  %3271 = vmatpush.msra.mxu0 %v2549
  %3272 = vmatpush.msra.mxu0 %v2542
  %3273 = vmatmul.f32.gmra.mxu0 %v2200
  %v3274 = vpop.f32.mrf.mxu0
  %v3275 = vadd.f32 %v3255, %v3274
  %3276 = vdwg.mxu0
  %3277 = vmatpush.msra.mxu0 0.0
  %3278 = vmatpush.msra.mxu0 %v2789
  %3279 = vmatpush.msra.mxu0 %v2745
  %3280 = vmatpush.msra.mxu0 %v2738
  %3281 = vmatpush.msra.mxu0 %v2731
  %3282 = vmatpush.msra.mxu0 %v2724
  %3283 = vmatpush.msra.mxu0 %v2717
  %3284 = vmatpush.msra.mxu0 %v2710
  %3285 = vmatpush.msra.mxu0 %v2703
  %3286 = vmatpush.msra.mxu0 %v2696
  %3287 = vmatpush.msra.mxu0 %v2689
  %3288 = vmatpush.msra.mxu0 %v2682
  %3289 = vmatpush.msra.mxu0 %v2675
  %3290 = vmatpush.msra.mxu0 %v2668
  %3291 = vmatpush.msra.mxu0 %v2661
  %3292 = vmatpush.msra.mxu0 %v2654
  %3293 = vmatmul.f32.gmra.mxu0 %v2773
  %v3294 = vpop.f32.mrf.mxu0
  %v3295 = vadd.f32 %v3275, %v3294
  %3296 = vdwg.mxu0
  %3297 = vmatpush.msra.mxu0 %v2312
  %3298 = vmatpush.msra.mxu0 %v2305
  %3299 = vmatpush.msra.mxu0 %v2298
  %3300 = vmatpush.msra.mxu0 %v2291
  %3301 = vmatpush.msra.mxu0 %v2284
  %3302 = vmatpush.msra.mxu0 %v2277
  %3303 = vmatpush.msra.mxu0 %v2270
  %3304 = vmatpush.msra.mxu0 %v2263
  %3305 = vmatpush.msra.mxu0 %v2256
  %3306 = vmatpush.msra.mxu0 %v2249
  %3307 = vmatpush.msra.mxu0 %v2242
  %3308 = vmatpush.msra.mxu0 %v2235
  %3309 = vmatpush.msra.mxu0 %v2228
  %3310 = vmatpush.msra.mxu0 %v2221
  %3311 = vmatpush.msra.mxu0 %v2214
  %3312 = vmatpush.msra.mxu0 %v2207
  %3313 = vmatmul.f32.gmra.mxu0 %v2197
  %v3314 = vpop.f32.mrf.mxu0
  %v3315 = vadd.f32 %v2762, %v3314
  %3316 = vdwg.mxu0
  %3317 = vmatpush.msra.mxu0 %v2424
  %3318 = vmatpush.msra.mxu0 %v2417
  %3319 = vmatpush.msra.mxu0 %v2410
  %3320 = vmatpush.msra.mxu0 %v2403
  %3321 = vmatpush.msra.mxu0 %v2396
  %3322 = vmatpush.msra.mxu0 %v2389
  %3323 = vmatpush.msra.mxu0 %v2382
  %3324 = vmatpush.msra.mxu0 %v2375
  %3325 = vmatpush.msra.mxu0 %v2368
  %3326 = vmatpush.msra.mxu0 %v2361
  %3327 = vmatpush.msra.mxu0 %v2354
  %3328 = vmatpush.msra.mxu0 %v2347
  %3329 = vmatpush.msra.mxu0 %v2340
  %3330 = vmatpush.msra.mxu0 %v2333
  %3331 = vmatpush.msra.mxu0 %v2326
  %3332 = vmatpush.msra.mxu0 %v2319
  %3333 = vmatmul.f32.gmra.mxu0 %v2198
  %v3334 = vpop.f32.mrf.mxu0
  %v3335 = vadd.f32 %v3315, %v3334
  %3336 = vdwg.mxu0
  %3337 = vmatpush.msra.mxu0 %v2536
  %3338 = vmatpush.msra.mxu0 %v2529
  %3339 = vmatpush.msra.mxu0 %v2522
  %3340 = vmatpush.msra.mxu0 %v2515
  %3341 = vmatpush.msra.mxu0 %v2508
  %3342 = vmatpush.msra.mxu0 %v2501
  %3343 = vmatpush.msra.mxu0 %v2494
  %3344 = vmatpush.msra.mxu0 %v2487
  %3345 = vmatpush.msra.mxu0 %v2480
  %3346 = vmatpush.msra.mxu0 %v2473
  %3347 = vmatpush.msra.mxu0 %v2466
  %3348 = vmatpush.msra.mxu0 %v2459
  %3349 = vmatpush.msra.mxu0 %v2452
  %3350 = vmatpush.msra.mxu0 %v2445
  %3351 = vmatpush.msra.mxu0 %v2438
  %3352 = vmatpush.msra.mxu0 %v2431
  %3353 = vmatmul.f32.gmra.mxu0 %v2199
  %v3354 = vpop.f32.mrf.mxu0
  %v3355 = vadd.f32 %v3335, %v3354
  %3356 = vdwg.mxu0
  %3357 = vmatpush.msra.mxu0 %v2648
  %3358 = vmatpush.msra.mxu0 %v2641
  %3359 = vmatpush.msra.mxu0 %v2634
  %3360 = vmatpush.msra.mxu0 %v2627
  %3361 = vmatpush.msra.mxu0 %v2620
  %3362 = vmatpush.msra.mxu0 %v2613
  %3363 = vmatpush.msra.mxu0 %v2606
  %3364 = vmatpush.msra.mxu0 %v2599
  %3365 = vmatpush.msra.mxu0 %v2592
  %3366 = vmatpush.msra.mxu0 %v2585
  %3367 = vmatpush.msra.mxu0 %v2578
  %3368 = vmatpush.msra.mxu0 %v2571
  %3369 = vmatpush.msra.mxu0 %v2564
  %3370 = vmatpush.msra.mxu0 %v2557
  %3371 = vmatpush.msra.mxu0 %v2550
  %3372 = vmatpush.msra.mxu0 %v2543
  %3373 = vmatmul.f32.gmra.mxu0 %v2200
  %v3374 = vpop.f32.mrf.mxu0
  %v3375 = vadd.f32 %v3355, %v3374
  %3376 = vdwg.mxu0
  %3377 = vmatpush.msra.mxu0 0.0
  %3378 = vmatpush.msra.mxu0 %v2792
  %3379 = vmatpush.msra.mxu0 %v2746
  %3380 = vmatpush.msra.mxu0 %v2739
  %3381 = vmatpush.msra.mxu0 %v2732
  %3382 = vmatpush.msra.mxu0 %v2725
  %3383 = vmatpush.msra.mxu0 %v2718
  %3384 = vmatpush.msra.mxu0 %v2711
  %3385 = vmatpush.msra.mxu0 %v2704
  %3386 = vmatpush.msra.mxu0 %v2697
  %3387 = vmatpush.msra.mxu0 %v2690
  %3388 = vmatpush.msra.mxu0 %v2683
  %3389 = vmatpush.msra.mxu0 %v2676
  %3390 = vmatpush.msra.mxu0 %v2669
  %3391 = vmatpush.msra.mxu0 %v2662
  %3392 = vmatpush.msra.mxu0 %v2655
  %3393 = vmatmul.f32.gmra.mxu0 %v2773
  %v3394 = vpop.f32.mrf.mxu0
  %v3395 = vadd.f32 %v3375, %v3394
  %3396 = vdwg.mxu0
  %3397 = vmatpush.msra.mxu0 %v2313
  %3398 = vmatpush.msra.mxu0 %v2306
  %3399 = vmatpush.msra.mxu0 %v2299
  %3400 = vmatpush.msra.mxu0 %v2292
  %3401 = vmatpush.msra.mxu0 %v2285
  %3402 = vmatpush.msra.mxu0 %v2278
  %3403 = vmatpush.msra.mxu0 %v2271
  %3404 = vmatpush.msra.mxu0 %v2264
  %3405 = vmatpush.msra.mxu0 %v2257
  %3406 = vmatpush.msra.mxu0 %v2250
  %3407 = vmatpush.msra.mxu0 %v2243
  %3408 = vmatpush.msra.mxu0 %v2236
  %3409 = vmatpush.msra.mxu0 %v2229
  %3410 = vmatpush.msra.mxu0 %v2222
  %3411 = vmatpush.msra.mxu0 %v2215
  %3412 = vmatpush.msra.mxu0 %v2208
  %3413 = vmatmul.f32.gmra.mxu0 %v2197
  %v3414 = vpop.f32.mrf.mxu0
  %v3415 = vadd.f32 %v2763, %v3414
  %3416 = vdwg.mxu0
  %3417 = vmatpush.msra.mxu0 %v2425
  %3418 = vmatpush.msra.mxu0 %v2418
  %3419 = vmatpush.msra.mxu0 %v2411
  %3420 = vmatpush.msra.mxu0 %v2404
  %3421 = vmatpush.msra.mxu0 %v2397
  %3422 = vmatpush.msra.mxu0 %v2390
  %3423 = vmatpush.msra.mxu0 %v2383
  %3424 = vmatpush.msra.mxu0 %v2376
  %3425 = vmatpush.msra.mxu0 %v2369
  %3426 = vmatpush.msra.mxu0 %v2362
  %3427 = vmatpush.msra.mxu0 %v2355
  %3428 = vmatpush.msra.mxu0 %v2348
  %3429 = vmatpush.msra.mxu0 %v2341
  %3430 = vmatpush.msra.mxu0 %v2334
  %3431 = vmatpush.msra.mxu0 %v2327
  %3432 = vmatpush.msra.mxu0 %v2320
  %3433 = vmatmul.f32.gmra.mxu0 %v2198
  %v3434 = vpop.f32.mrf.mxu0
  %v3435 = vadd.f32 %v3415, %v3434
  %3436 = vdwg.mxu0
  %3437 = vmatpush.msra.mxu0 %v2537
  %3438 = vmatpush.msra.mxu0 %v2530
  %3439 = vmatpush.msra.mxu0 %v2523
  %3440 = vmatpush.msra.mxu0 %v2516
  %3441 = vmatpush.msra.mxu0 %v2509
  %3442 = vmatpush.msra.mxu0 %v2502
  %3443 = vmatpush.msra.mxu0 %v2495
  %3444 = vmatpush.msra.mxu0 %v2488
  %3445 = vmatpush.msra.mxu0 %v2481
  %3446 = vmatpush.msra.mxu0 %v2474
  %3447 = vmatpush.msra.mxu0 %v2467
  %3448 = vmatpush.msra.mxu0 %v2460
  %3449 = vmatpush.msra.mxu0 %v2453
  %3450 = vmatpush.msra.mxu0 %v2446
  %3451 = vmatpush.msra.mxu0 %v2439
  %3452 = vmatpush.msra.mxu0 %v2432
  %3453 = vmatmul.f32.gmra.mxu0 %v2199
  %v3454 = vpop.f32.mrf.mxu0
  %v3455 = vadd.f32 %v3435, %v3454
  %3456 = vdwg.mxu0
  %3457 = vmatpush.msra.mxu0 %v2649
  %3458 = vmatpush.msra.mxu0 %v2642
  %3459 = vmatpush.msra.mxu0 %v2635
  %3460 = vmatpush.msra.mxu0 %v2628
  %3461 = vmatpush.msra.mxu0 %v2621
  %3462 = vmatpush.msra.mxu0 %v2614
  %3463 = vmatpush.msra.mxu0 %v2607
  %3464 = vmatpush.msra.mxu0 %v2600
  %3465 = vmatpush.msra.mxu0 %v2593
  %3466 = vmatpush.msra.mxu0 %v2586
  %3467 = vmatpush.msra.mxu0 %v2579
  %3468 = vmatpush.msra.mxu0 %v2572
  %3469 = vmatpush.msra.mxu0 %v2565
  %3470 = vmatpush.msra.mxu0 %v2558
  %3471 = vmatpush.msra.mxu0 %v2551
  %3472 = vmatpush.msra.mxu0 %v2544
  %3473 = vmatmul.f32.gmra.mxu0 %v2200
  %v3474 = vpop.f32.mrf.mxu0
  %v3475 = vadd.f32 %v3455, %v3474
  %3476 = vdwg.mxu0
  %3477 = vmatpush.msra.mxu0 0.0
  %3478 = vmatpush.msra.mxu0 %v2795
  %3479 = vmatpush.msra.mxu0 %v2747
  %3480 = vmatpush.msra.mxu0 %v2740
  %3481 = vmatpush.msra.mxu0 %v2733
  %3482 = vmatpush.msra.mxu0 %v2726
  %3483 = vmatpush.msra.mxu0 %v2719
  %3484 = vmatpush.msra.mxu0 %v2712
  %3485 = vmatpush.msra.mxu0 %v2705
  %3486 = vmatpush.msra.mxu0 %v2698
  %3487 = vmatpush.msra.mxu0 %v2691
  %3488 = vmatpush.msra.mxu0 %v2684
  %3489 = vmatpush.msra.mxu0 %v2677
  %3490 = vmatpush.msra.mxu0 %v2670
  %3491 = vmatpush.msra.mxu0 %v2663
  %3492 = vmatpush.msra.mxu0 %v2656
  %3493 = vmatmul.f32.gmra.mxu0 %v2773
  %v3494 = vpop.f32.mrf.mxu0
  %v3495 = vadd.f32 %v3475, %v3494
  %3496 = vdwg.mxu0
  %v3497 = vxor.u32 %v2895, 2147483648
  %v3498 = vxor.u32 %v2995, 2147483648
  %v3499 = vxor.u32 %v3095, 2147483648
  %v3500 = vxor.u32 %v3195, 2147483648
  %v3501 = vxor.u32 %v3295, 2147483648
  %v3502 = vxor.u32 %v3395, 2147483648
  %v3503 = vxor.u32 %v3495, 2147483648
  %v3504 = vmul.f32 %v3497, 1.442695
  %v3505 = vpow.pop %v3504
  %v3506 = vmul.f32 %v3498, 1.442695
  %v3507 = vpow.pop %v3506
  %v3508 = vmul.f32 %v3499, 1.442695
  %v3509 = vpow.pop %v3508
  %v3510 = vmul.f32 %v3500, 1.442695
  %v3511 = vpow.pop %v3510
  %v3512 = vmul.f32 %v3501, 1.442695
  %v3513 = vpow.pop %v3512
  %v3514 = vmul.f32 %v3502, 1.442695
  %v3515 = vpow.pop %v3514
  %v3516 = vmul.f32 %v3503, 1.442695
  %v3517 = vpow.pop %v3516
  %v3518 = vadd.f32 %v3505, 1.0
  %v3519 = vadd.f32 %v3507, 1.0
  %v3520 = vadd.f32 %v3509, 1.0
  %v3521 = vadd.f32 %v3511, 1.0
  %v3522 = vadd.f32 %v3513, 1.0
  %v3523 = vadd.f32 %v3515, 1.0
  %v3524 = vadd.f32 %v3517, 1.0
  %v3525 = vrcp.pop %v3518
  %v3526 = vmul.f32 %v3518, %v3525
  %v3527 = vsub.f32 1.0, %v3526
  %v3528 = vmul.f32 %v3525, %v3527
  %v3529 = vadd.f32 %v3525, %v3528
  %vm3530 = vweird.f32 %v3518
  %vm3531 = vweird.f32 %v3525
  %vm3532 = vmor %vm3530, %vm3531
  %v3533 = vsel %vm3532, %v3525, %v3529
  %v3534 = vand.u32 2147483647, %v3518
  %vm3535 = vcmp.eq.f32.partialorder %v3534, 8.507059e+37
  %v3536 = vand.u32 %v3518, 2147483648
  %v3537 = vor.u32 1.1754944e-38, %v3536
  %v3538 = vsel %vm3535, %v3537, %v3533
  %v3539 = vmul.f32 1.0, %v3538
  %v3540 = vrcp.pop %v3519
  %v3541 = vmul.f32 %v3519, %v3540
  %v3542 = vsub.f32 1.0, %v3541
  %v3543 = vmul.f32 %v3540, %v3542
  %v3544 = vadd.f32 %v3540, %v3543
  %vm3545 = vweird.f32 %v3519
  %vm3546 = vweird.f32 %v3540
  %vm3547 = vmor %vm3545, %vm3546
  %v3548 = vsel %vm3547, %v3540, %v3544
  %v3549 = vand.u32 2147483647, %v3519
  %vm3550 = vcmp.eq.f32.partialorder %v3549, 8.507059e+37
  %v3551 = vand.u32 %v3519, 2147483648
  %v3552 = vor.u32 1.1754944e-38, %v3551
  %v3553 = vsel %vm3550, %v3552, %v3548
  %v3554 = vmul.f32 1.0, %v3553
  %v3555 = vrcp.pop %v3520
  %v3556 = vmul.f32 %v3520, %v3555
  %v3557 = vsub.f32 1.0, %v3556
  %v3558 = vmul.f32 %v3555, %v3557
  %v3559 = vadd.f32 %v3555, %v3558
  %vm3560 = vweird.f32 %v3520
  %vm3561 = vweird.f32 %v3555
  %vm3562 = vmor %vm3560, %vm3561
  %v3563 = vsel %vm3562, %v3555, %v3559
  %v3564 = vand.u32 2147483647, %v3520
  %vm3565 = vcmp.eq.f32.partialorder %v3564, 8.507059e+37
  %v3566 = vand.u32 %v3520, 2147483648
  %v3567 = vor.u32 1.1754944e-38, %v3566
  %v3568 = vsel %vm3565, %v3567, %v3563
  %v3569 = vmul.f32 1.0, %v3568
  %v3570 = vrcp.pop %v3521
  %v3571 = vmul.f32 %v3521, %v3570
  %v3572 = vsub.f32 1.0, %v3571
  %v3573 = vmul.f32 %v3570, %v3572
  %v3574 = vadd.f32 %v3570, %v3573
  %vm3575 = vweird.f32 %v3521
  %vm3576 = vweird.f32 %v3570
  %vm3577 = vmor %vm3575, %vm3576
  %v3578 = vsel %vm3577, %v3570, %v3574
  %v3579 = vand.u32 2147483647, %v3521
  %vm3580 = vcmp.eq.f32.partialorder %v3579, 8.507059e+37
  %v3581 = vand.u32 %v3521, 2147483648
  %v3582 = vor.u32 1.1754944e-38, %v3581
  %v3583 = vsel %vm3580, %v3582, %v3578
  %v3584 = vmul.f32 1.0, %v3583
  %v3585 = vrcp.pop %v3522
  %v3586 = vmul.f32 %v3522, %v3585
  %v3587 = vsub.f32 1.0, %v3586
  %v3588 = vmul.f32 %v3585, %v3587
  %v3589 = vadd.f32 %v3585, %v3588
  %vm3590 = vweird.f32 %v3522
  %vm3591 = vweird.f32 %v3585
  %vm3592 = vmor %vm3590, %vm3591
  %v3593 = vsel %vm3592, %v3585, %v3589
  %v3594 = vand.u32 2147483647, %v3522
  %vm3595 = vcmp.eq.f32.partialorder %v3594, 8.507059e+37
  %v3596 = vand.u32 %v3522, 2147483648
  %v3597 = vor.u32 1.1754944e-38, %v3596
  %v3598 = vsel %vm3595, %v3597, %v3593
  %v3599 = vmul.f32 1.0, %v3598
  %v3600 = vrcp.pop %v3523
  %v3601 = vmul.f32 %v3523, %v3600
  %v3602 = vsub.f32 1.0, %v3601
  %v3603 = vmul.f32 %v3600, %v3602
  %v3604 = vadd.f32 %v3600, %v3603
  %vm3605 = vweird.f32 %v3523
  %vm3606 = vweird.f32 %v3600
  %vm3607 = vmor %vm3605, %vm3606
  %v3608 = vsel %vm3607, %v3600, %v3604
  %v3609 = vand.u32 2147483647, %v3523
  %vm3610 = vcmp.eq.f32.partialorder %v3609, 8.507059e+37
  %v3611 = vand.u32 %v3523, 2147483648
  %v3612 = vor.u32 1.1754944e-38, %v3611
  %v3613 = vsel %vm3610, %v3612, %v3608
  %v3614 = vmul.f32 1.0, %v3613
  %v3615 = vrcp.pop %v3524
  %v3616 = vmul.f32 %v3524, %v3615
  %v3617 = vsub.f32 1.0, %v3616
  %v3618 = vmul.f32 %v3615, %v3617
  %v3619 = vadd.f32 %v3615, %v3618
  %vm3620 = vweird.f32 %v3524
  %vm3621 = vweird.f32 %v3615
  %vm3622 = vmor %vm3620, %vm3621
  %v3623 = vsel %vm3622, %v3615, %v3619
  %v3624 = vand.u32 2147483647, %v3524
  %vm3625 = vcmp.eq.f32.partialorder %v3624, 8.507059e+37
  %v3626 = vand.u32 %v3524, 2147483648
  %v3627 = vor.u32 1.1754944e-38, %v3626
  %v3628 = vsel %vm3625, %v3627, %v3623
  %v3629 = vmul.f32 1.0, %v3628
  %v3637 = vrot.slane %v3554, 6
  %v3638 = vrot.slane %v3569, 4
  %v3639 = vrot.slane %v3584, 2
  %v3640 = vrot.slane %v3614, 6
  %v3641 = vrot.slane %v3629, 4
  %vm3642 = vcmask 1041408
  %v3643 = vsel %vm3642, %v3539, %v3637
  %vm3644 = vcmask 1045508
  %v3645 = vsel %vm3644, %v3638, %v3639
  %v3646 = vsel %vm52, %v3643, %v3645
  %v3647 = vsel %vm3642, %v3599, %v3640
  %v3648 = vsel %vm52, %v3647, %v3641
  %3651 = vst [vmem:[%s13] sm:$0xff] %v3646
  %vm3652 = vcmask 1043458
  %vm3653 = vmor %vm3652, %vm3642
  %vm3654 = vcmask 128004
  %vm3655 = vmor %vm3654, %vm3653
  %3656 = vst.msk [vmem:[%s13 + $0x8] sm:$0x3f] %vm3655, %v3648
  // Predicated region
  $region54: #{conv_conditional_decoder.1} parent=0 // pred_check
    _
  $region55: #{conv_conditional_decoder.1} parent=0 // pred_check_branch
    %3658 = sbr.rel (0) target = $region57
  $region56: #{conv_conditional_decoder.1} parent=0 // pred_region
    _
  $region57: #{conv_conditional_decoder.1} parent=0 // pred_fallthru
    _
  // Predicated region
  $region58: #{conv_conditional_decoder.1} parent=0 // pred_check
    _
  $region59: #{conv_conditional_decoder.1} parent=0 // pred_check_branch
    %3660 = sbr.rel (0) target = $region61
  $region60: #{conv_conditional_decoder.1} parent=0 // pred_region
    _
  $region61: #{conv_conditional_decoder.1} parent=0 // pred_fallthru
    _

</llo_original>
